<compile_context>
chip_gen: v7x
topology: tpu7x:2x2x1
jax: 0.10.0
libtpu: 0.0.40
codegen_flags: <defaults>
</compile_context>

<pallas_src>
import functools

import jax
import jax.numpy as jnp
from jax import lax
from jax.experimental import pallas as pl
from jax.experimental.pallas import tpu as pltpu


def _round_up(x, n):
    return ((x + n - 1) // n) * n


# ---------------------------------------------------------------------------
# Pallas kernel: class-stacked weighted Gram matrices, accumulated over m.
# ---------------------------------------------------------------------------
def _gram_kernel(pi_ref, w_ref, gram_ref, vec_ref, wp_ref, *, matmul_dtype):
    # pi_ref  : (kp, tm)     per-class diagonal weights for this sample tile
    # w_ref   : (pp, tm)     W = X.T tile (features x samples)
    # gram_ref: (kp*pp, pp)  row-block j = W diag(pi_j) W^T  (accumulator)
    # vec_ref : (kp, pp)     row j       = W pi_j            (accumulator)
    # wp_ref  : (kp*pp, tm)  VMEM scratch for the class-stacked diag(pi_j) W
    step = pl.program_id(0)

    @pl.when(step == 0)
    def _init():
        gram_ref[...] = jnp.zeros_like(gram_ref)
        vec_ref[...] = jnp.zeros_like(vec_ref)

    w = w_ref[...]                                   # (pp, tm) f32
    pi = pi_ref[...]                                 # (kp, tm) f32
    kp = pi_ref.shape[0]
    pp = w_ref.shape[0]

    # Stack all classes along the matmul M dimension so a single MXU call
    # computes every per-class Gram (fills the systolic array instead of
    # issuing kp under-sized matmuls).
    w_mm = w.astype(matmul_dtype)
    for j in range(kp):                              # static unroll; kp small
        wp_ref[j * pp:(j + 1) * pp, :] = (w * pi[j:j + 1, :]).astype(matmul_dtype)

    # Contract both operands on the sample axis (dim 1): no in-kernel W.T,
    # so no XLU relayout per grid step.
    dn = (((1,), (1,)), ((), ()))
    gram_ref[...] += lax.dot_general(
        wp_ref[...], w_mm, dimension_numbers=dn,
        preferred_element_type=jnp.float32)
    # vec_j = W @ pi_j on the MXU (instead of a cross-lane XLU sum).
    vec_ref[...] += lax.dot_general(
        pi.astype(matmul_dtype), w_mm, dimension_numbers=dn,
        preferred_element_type=jnp.float32)


def _choose_tm(m, kp, pp):
    m128 = _round_up(m, 128)
    # Keep the class-stacked (kp*pp, tm) scratch around <= 8 MiB.
    budget_elems = (8 << 20) // 4
    tm_cap = max(128, (budget_elems // max(kp * pp, 1)) // 128 * 128)
    return int(min(m128, 1024, tm_cap))


def _compute_grams(w_pad, pi_pad, *, tm, matmul_dtype=jnp.float32):
    """w_pad: (pp, m_pad) f32;  pi_pad: (kp, m_pad) f32 (zero-padded).

    Returns grams (kp, pp, pp) f32 and vecs (kp, pp) f32.
    """
    pp, m_pad = w_pad.shape
    kp = pi_pad.shape[0]
    n_steps = m_pad // tm
    itemsize = jnp.dtype(matmul_dtype).itemsize

    # VMEM budget: double-buffered input tiles + resident outputs + scratch.
    est_bytes = (2 * (kp + pp) * tm * 4
                 + (kp * pp * pp + kp * pp) * 4
                 + kp * pp * tm * itemsize)
    vmem_limit = min(max(32 * 1024 * 1024, int(1.5 * est_bytes)),
                     96 * 1024 * 1024)

    kernel = functools.partial(_gram_kernel, matmul_dtype=matmul_dtype)
    gram_flat, vecs = pl.pallas_call(
        kernel,
        out_shape=(
            jax.ShapeDtypeStruct((kp * pp, pp), jnp.float32),
            jax.ShapeDtypeStruct((kp, pp), jnp.float32),
        ),
        grid=(n_steps,),
        in_specs=[
            pl.BlockSpec((kp, tm), lambda s: (0, s)),
            pl.BlockSpec((pp, tm), lambda s: (0, s)),
        ],
        out_specs=(
            pl.BlockSpec((kp * pp, pp), lambda s: (0, 0)),   # resident accumulator
            pl.BlockSpec((kp, pp), lambda s: (0, 0)),        # resident accumulator
        ),
        scratch_shapes=[pltpu.VMEM((kp * pp, tm), matmul_dtype)],
        compiler_params=pltpu.CompilerParams(
            dimension_semantics=("arbitrary",),              # m is a reduction axis
            vmem_limit_bytes=vmem_limit,
        ),
    )(pi_pad, w_pad)
    return gram_flat.reshape(kp, pp, pp), vecs


# ---------------------------------------------------------------------------
# CodingRate forward (mirrors the PyTorch module's forward()).
# ---------------------------------------------------------------------------
def coding_rate_forward(
    X,
    Y,
    epsilon_sq,
    num_classes=None,
    overlapping=False,
    detachEps=False,
    cosineLoss=False,
    gam1=1.0,
    gam2=1.0,
    d=0,
    matmul_dtype=jnp.float32,   # set jnp.bfloat16 for faster MXU path if tolerance allows
    return_full_Pi=False,       # full (k, m, m) Pi is O(k*m^2); off by default
):
    X = jnp.asarray(X, jnp.float32)
    m, p = X.shape
    W = X.T                                              # (p, m)

    if overlapping:
        pi = jnp.asarray(Y, jnp.float32).T               # (k, m) soft memberships
        num_classes = pi.shape[0]
    else:
        if num_classes is None:
            # Avoid a host sync (jax.device_get) / keep the forward jittable.
            raise ValueError("num_classes must be provided for the hard-label path")
        pi = (jnp.asarray(Y)[None, :] ==
              jnp.arange(num_classes)[:, None]).astype(jnp.float32)   # (k, m)

    eps = jnp.asarray(epsilon_sq, jnp.float32)
    if detachEps:
        eps = jax.lax.stop_gradient(eps)

    # Hard labels partition the samples, so the "total" Gram equals the sum of
    # per-class Grams -> skip the redundant all-ones row in that case.
    if overlapping:
        pi_rows = jnp.concatenate([jnp.ones((1, m), jnp.float32), pi], axis=0)
    else:
        pi_rows = pi

    kp = pi_rows.shape[0]
    pp = _round_up(p, 128)                               # lane-dense feature dim
    tm = _choose_tm(m, kp, pp)
    m_pad = _round_up(m, tm)

    W_pad = jnp.pad(W, ((0, pp - p), (0, m_pad - m)))
    pi_pad = jnp.pad(pi_rows, ((0, 0), (0, m_pad - m)))

    grams, vecs = _compute_grams(W_pad, pi_pad, tm=tm, matmul_dtype=matmul_dtype)

    if overlapping:
        gram_total, gram_cls = grams[0], grams[1:]
        vec_total, vec_cls = vecs[0], vecs[1:]
    else:
        gram_cls, vec_cls = grams, vecs
        gram_total = jnp.sum(gram_cls, axis=0)
        vec_total = jnp.sum(vec_cls, axis=0)

    I = jnp.eye(pp, dtype=jnp.float32)                   # padded rows give log(1)=0

    # --- discriminative loss ---
    # TODO(synk): logdet (slogdet / LU) has no clean Pallas primitive; kept in JAX.
    scalar_d = p / (m * eps)
    logdet_d = jnp.linalg.slogdet(I + gam1 * scalar_d * gram_total)[1]
    discrimn_loss = (m + d) / m * logdet_d / 2.0

    # --- compressive loss ---
    tr = jnp.sum(pi, axis=1) + 1e-8                      # trace(Pi_j) + 1e-8
    scalars = p / (tr * eps)
    mats = I[None] + scalars[:, None, None] * gram_cls
    logdets = jnp.linalg.slogdet(mats)[1]
    compress_loss = jnp.sum(logdets * (tr + d) / m) / 2.0

    # --- cosine loss (reference calls it with X = W.T) ---
    total_sim = jnp.sum(vec_total ** 2)                  # sum(X @ X.T)
    inner_sum = jnp.sum(vec_cls ** 2)                    # sum_j pi_j^T (X X^T) pi_j
    inter_sim = total_sim - inner_sum
    cosine_loss = (jnp.abs(inter_sim) - jnp.abs(inner_sum)) / m

    total_loss = gam2 * (-discrimn_loss) + compress_loss

    if return_full_Pi:
        Pi_out = pi[:, :, None] * jnp.eye(m, dtype=jnp.float32)[None]   # (k, m, m)
    else:
        Pi_out = pi                                       # compact diagonal (k, m)

    if cosineLoss:
        return (-total_loss, discrimn_loss, compress_loss, Pi_out, cosine_loss)
    return (-total_loss, discrimn_loss, compress_loss, Pi_out)


# ---------------------------------------------------------------------------
# Pure-JAX reference (takes the membership diagonal pi of shape (k, m)).
# ---------------------------------------------------------------------------
def _reference(X, pi, epsilon_sq, gam1=1.0, gam2=1.0, d=0):
    X = X.astype(jnp.float32)
    m, p = X.shape
    W = X.T
    I = jnp.eye(p, dtype=jnp.float32)
    scalar = p / (m * epsilon_sq)
    discrimn = (m + d) / m * jnp.linalg.slogdet(I + gam1 * scalar * W @ W.T)[1] / 2.0
    compress = 0.0
    k = pi.shape[0]
    for j in range(k):
        trj = jnp.sum(pi[j]) + 1e-8
        sc = p / (trj * epsilon_sq)
        compress = compress + jnp.linalg.slogdet(
            I + sc * (W * pi[j][None, :]) @ W.T)[1] * (trj + d) / m
    compress = compress / 2.0
    G = X @ X.T
    total_sim = jnp.sum(G)
    inner = 0.0
    for j in range(k):
        inner = inner + pi[j] @ G @ pi[j]
    cos = (jnp.abs(total_sim - inner) - jnp.abs(inner)) / m
    total = gam2 * (-discrimn) + compress
    return -total, discrimn, compress, cos


if __name__ == "__main__":
    key = jax.random.PRNGKey(0)
    kx, ky, ks = jax.random.split(key, 3)

    m, p, k = 16, 32, 4                      # samples, feature dim, classes
    X = jax.random.normal(kx, (m, p), dtype=jnp.float32)
    X = X / jnp.linalg.norm(X, axis=1, keepdims=True)
    Y = jax.random.randint(ky, (m,), 0, k)
    epsilon_sq = 0.5

    # ---- hard-label (non-overlapping) path ----
    fwd = jax.jit(functools.partial(
        coding_rate_forward, num_classes=k, cosineLoss=True, return_full_Pi=True))
    out = jax.block_until_ready(fwd(X, Y, epsilon_sq))
    neg_total, discrimn, compress, Pi_full, cos = out

    pi_hard = (Y[None, :] == jnp.arange(k)[:, None]).astype(jnp.float32)
    r_neg_total, r_discrimn, r_compress, r_cos = _reference(X, pi_hard, epsilon_sq)
    assert jnp.allclose(neg_total, r_neg_total, atol=1e-4, rtol=1e-4)
    assert jnp.allclose(discrimn, r_discrimn, atol=1e-4, rtol=1e-4)
    assert jnp.allclose(compress, r_compress, atol=1e-4, rtol=1e-4)
    assert jnp.allclose(cos, r_cos, atol=1e-4, rtol=1e-4)
    assert Pi_full.shape == (k, m, m)

    # ---- overlapping (soft membership) path ----
    Yp = jax.nn.softmax(jax.random.normal(ks, (m, k)), axis=-1)
    fwd_o = jax.jit(functools.partial(
        coding_rate_forward, overlapping=True, cosineLoss=True))
    out_o = jax.block_until_ready(fwd_o(X, Yp, epsilon_sq))
    o_neg_total, o_discrimn, o_compress, o_pi, o_cos = out_o
    ro = _reference(X, Yp.T.astype(jnp.float32), epsilon_sq)
    assert jnp.allclose(o_neg_total, ro[0], atol=1e-4, rtol=1e-4)
    assert jnp.allclose(o_discrimn, ro[1], atol=1e-4, rtol=1e-4)
    assert jnp.allclose(o_compress, ro[2], atol=1e-4, rtol=1e-4)
    assert jnp.allclose(o_cos, ro[3], atol=1e-4, rtol=1e-4)

    print("KERNEL_OK")
</pallas_src>

<mosaic_0001>
module attributes {stable_mosaic.version = 11 : i64} {
  func.func @_gram_kernel(%arg0: i32, %arg1: memref<4x128xf32, #tpu.memory_space<vmem>>, %arg2: memref<128x128xf32, #tpu.memory_space<vmem>>, %arg3: memref<512x128xf32, #tpu.memory_space<vmem>>, %arg4: memref<4x128xf32, #tpu.memory_space<vmem>>, %arg5: memref<512x128xf32, #tpu.memory_space<vmem>>) attributes {dimension_semantics = [#tpu.dimension_semantics<arbitrary>], iteration_bounds = array<i64: 1>, scalar_prefetch = 0 : i64, scratch_operands = 1 : i64, tpu.core_type = #tpu.core_type<tc>, window_params = [{transform_indices = @transform_0, window_bounds = array<i64: 4, 128>}, {transform_indices = @transform_1, window_bounds = array<i64: 128, 128>}, {pipeline_mode = #tpu.pipeline_mode<synchronous>, transform_indices = @transform_2, window_bounds = array<i64: 512, 128>}, {pipeline_mode = #tpu.pipeline_mode<synchronous>, transform_indices = @transform_3, window_bounds = array<i64: 4, 128>}]} {
    %c0_i32 = arith.constant 0 : i32
    %0 = arith.cmpi eq, %arg0, %c0_i32 : i32
    %1 = arith.extui %0 : i1 to i32
    %c0_i32_0 = arith.constant 0 : i32
    %2 = arith.cmpi ne, %1, %c0_i32_0 : i32
    scf.if %2 {
      %cst_20 = arith.constant 0.000000e+00 : f32
      %30 = vector.broadcast %cst_20 : f32 to vector<512x128xf32>
      %c0_21 = arith.constant 0 : index
      %c0_22 = arith.constant 0 : index
      %31 = vector.load %arg3[%c0_21, %c0_22] : memref<512x128xf32, #tpu.memory_space<vmem>>, vector<512x128xf32>
      tpu.vector_store %arg3[%c0_21, %c0_22], %30 {strides = array<i32>} : memref<512x128xf32, #tpu.memory_space<vmem>>, vector<512x128xf32>,
      %cst_23 = arith.constant 0.000000e+00 : f32
      %32 = vector.broadcast %cst_23 : f32 to vector<4x128xf32>
      %c0_24 = arith.constant 0 : index
      %c0_25 = arith.constant 0 : index
      %33 = vector.load %arg4[%c0_24, %c0_25] : memref<4x128xf32, #tpu.memory_space<vmem>>, vector<4x128xf32>
      tpu.vector_store %arg4[%c0_24, %c0_25], %32 {strides = array<i32>} : memref<4x128xf32, #tpu.memory_space<vmem>>, vector<4x128xf32>,
    } else {
    }
    %c0 = arith.constant 0 : index
    %c0_1 = arith.constant 0 : index
    %3 = vector.load %arg2[%c0, %c0_1] : memref<128x128xf32, #tpu.memory_space<vmem>>, vector<128x128xf32>
    %c0_2 = arith.constant 0 : index
    %c0_3 = arith.constant 0 : index
    %4 = vector.load %arg1[%c0_2, %c0_3] : memref<4x128xf32, #tpu.memory_space<vmem>>, vector<4x128xf32>
    %5 = vector.extract_strided_slice %4 {offsets = [0, 0], sizes = [1, 128], strides = [1, 1]} : vector<4x128xf32> to vector<1x128xf32>
    %6 = vector.broadcast %5 : vector<1x128xf32> to vector<128x128xf32>
    %7 = arith.mulf %3, %6 : vector<128x128xf32>
    %c0_4 = arith.constant 0 : index
    %c0_5 = arith.constant 0 : index
    %8 = vector.load %arg5[%c0_4, %c0_5] : memref<512x128xf32, #tpu.memory_space<vmem>>, vector<128x128xf32>
    tpu.vector_store %arg5[%c0_4, %c0_5], %7 {strides = array<i32>} : memref<512x128xf32, #tpu.memory_space<vmem>>, vector<128x128xf32>,
    %9 = vector.extract_strided_slice %4 {offsets = [1, 0], sizes = [1, 128], strides = [1, 1]} : vector<4x128xf32> to vector<1x128xf32>
    %10 = vector.broadcast %9 : vector<1x128xf32> to vector<128x128xf32>
    %11 = arith.mulf %3, %10 : vector<128x128xf32>
    %c128 = arith.constant 128 : index
    %c0_6 = arith.constant 0 : index
    %12 = vector.load %arg5[%c128, %c0_6] : memref<512x128xf32, #tpu.memory_space<vmem>>, vector<128x128xf32>
    tpu.vector_store %arg5[%c128, %c0_6], %11 {strides = array<i32>} : memref<512x128xf32, #tpu.memory_space<vmem>>, vector<128x128xf32>,
    %13 = vector.extract_strided_slice %4 {offsets = [2, 0], sizes = [1, 128], strides = [1, 1]} : vector<4x128xf32> to vector<1x128xf32>
    %14 = vector.broadcast %13 : vector<1x128xf32> to vector<128x128xf32>
    %15 = arith.mulf %3, %14 : vector<128x128xf32>
    %c256 = arith.constant 256 : index
    %c0_7 = arith.constant 0 : index
    %16 = vector.load %arg5[%c256, %c0_7] : memref<512x128xf32, #tpu.memory_space<vmem>>, vector<128x128xf32>
    tpu.vector_store %arg5[%c256, %c0_7], %15 {strides = array<i32>} : memref<512x128xf32, #tpu.memory_space<vmem>>, vector<128x128xf32>,
    %17 = vector.extract_strided_slice %4 {offsets = [3, 0], sizes = [1, 128], strides = [1, 1]} : vector<4x128xf32> to vector<1x128xf32>
    %18 = vector.broadcast %17 : vector<1x128xf32> to vector<128x128xf32>
    %19 = arith.mulf %3, %18 : vector<128x128xf32>
    %c384 = arith.constant 384 : index
    %c0_8 = arith.constant 0 : index
    %20 = vector.load %arg5[%c384, %c0_8] : memref<512x128xf32, #tpu.memory_space<vmem>>, vector<128x128xf32>
    tpu.vector_store %arg5[%c384, %c0_8], %19 {strides = array<i32>} : memref<512x128xf32, #tpu.memory_space<vmem>>, vector<128x128xf32>,
    %c0_9 = arith.constant 0 : index
    %c0_10 = arith.constant 0 : index
    %21 = vector.load %arg3[%c0_9, %c0_10] : memref<512x128xf32, #tpu.memory_space<vmem>>, vector<512x128xf32>
    %c0_11 = arith.constant 0 : index
    %c0_12 = arith.constant 0 : index
    %22 = vector.load %arg5[%c0_11, %c0_12] : memref<512x128xf32, #tpu.memory_space<vmem>>, vector<512x128xf32>
    %cst = arith.constant dense<0.000000e+00> : vector<512x128xf32>
    %23 = tpu.matmul %22, %3, %cst {dimension_numbers = #tpu.dot_dimension_numbers<[1], [1], [0], [0], [0, 0, 1, 0], [], []>} : vector<512x128xf32>, vector<128x128xf32>, vector<512x128xf32> -> vector<512x128xf32>
    %24 = arith.addf %21, %23 : vector<512x128xf32>
    %c0_13 = arith.constant 0 : index
    %c0_14 = arith.constant 0 : index
    %25 = vector.load %arg3[%c0_13, %c0_14] : memref<512x128xf32, #tpu.memory_space<vmem>>, vector<512x128xf32>
    tpu.vector_store %arg3[%c0_13, %c0_14], %24 {strides = array<i32>} : memref<512x128xf32, #tpu.memory_space<vmem>>, vector<512x128xf32>,
    %c0_15 = arith.constant 0 : index
    %c0_16 = arith.constant 0 : index
    %26 = vector.load %arg4[%c0_15, %c0_16] : memref<4x128xf32, #tpu.memory_space<vmem>>, vector<4x128xf32>
    %cst_17 = arith.constant dense<0.000000e+00> : vector<4x128xf32>
    %27 = tpu.matmul %4, %3, %cst_17 {dimension_numbers = #tpu.dot_dimension_numbers<[1], [1], [0], [0], [0, 0, 1, 0], [], []>} : vector<4x128xf32>, vector<128x128xf32>, vector<4x128xf32> -> vector<4x128xf32>
    %28 = arith.addf %26, %27 : vector<4x128xf32>
    %c0_18 = arith.constant 0 : index
    %c0_19 = arith.constant 0 : index
    %29 = vector.load %arg4[%c0_18, %c0_19] : memref<4x128xf32, #tpu.memory_space<vmem>>, vector<4x128xf32>
    tpu.vector_store %arg4[%c0_18, %c0_19], %28 {strides = array<i32>} : memref<4x128xf32, #tpu.memory_space<vmem>>, vector<4x128xf32>,
    return
  }
  func.func @transform_0(%arg0: i32) -> (i32, i32) {
    %c0_i32 = arith.constant 0 : i32
    %c0_i32_0 = arith.constant 0 : i32
    return %c0_i32, %arg0 : i32, i32
  }
  func.func @transform_1(%arg0: i32) -> (i32, i32) {
    %c0_i32 = arith.constant 0 : i32
    %c0_i32_0 = arith.constant 0 : i32
    return %c0_i32, %arg0 : i32, i32
  }
  func.func @transform_2(%arg0: i32) -> (i32, i32) {
    %c0_i32 = arith.constant 0 : i32
    %c0_i32_0 = arith.constant 0 : i32
    %c0_i32_1 = arith.constant 0 : i32
    return %c0_i32, %c0_i32_0 : i32, i32
  }
  func.func @transform_3(%arg0: i32) -> (i32, i32) {
    %c0_i32 = arith.constant 0 : i32
    %c0_i32_0 = arith.constant 0 : i32
    %c0_i32_1 = arith.constant 0 : i32
    return %c0_i32, %c0_i32_0 : i32, i32
  }
}

</mosaic_0001>

<llo_original>
// kernel: custom-call.4
$region0: #{custom-call.4}
  %s0 = inlined_call_operand.vmem [shape: f32[128,128], index: 0, kind: input, shape index: {}]
  %s1 = inlined_call_operand.vmem [shape: f32[128,128], index: 1, kind: output, shape index: {0}]
  %s2 = inlined_call_operand.hbm [shape: s32[128], index: 2, kind: output, shape index: {1}]
  %s3 = inlined_call_operand.hbm [shape: s32[128], index: 3, kind: output, shape index: {2}]
  %4 = xla_tuple %s1, %s2, %s3
  $region1: #{custom-call.4} parent=0
    #allocation0 [shape = 'u8[65536]{0}', space=vmem, size = 0x10000, scoped, tag = 'operand span for operand 0']
    #allocation1 [shape = 'u8[65536]{0}', space=vmem, size = 0x10000, scoped, tag = 'operand span for operand 1']
    #allocation2 [shape = 'u8[4096]{0}', space=vmem, size = 0x1000, scoped, tag = 'operand span for operand 2']
    #allocation3 [shape = 'u8[512]{0}', space=vmem, size = 0x400, scoped, tag = 'packed  for operand 2']
    #allocation4 [shape = 's32[1]{0}', space=sflag, size = 0x4, scoped, tag = 'scoped memory for custom-call.4']
    #allocation5 [shape = 'u8[4096]{0}', space=vmem, size = 0x1000, scoped, tag = 'operand span for operand 3']
    #allocation6 [shape = 'u8[512]{0}', space=vmem, size = 0x400, scoped, tag = 'packed  for operand 3']
    #allocation7 [shape = 's32[1]{0}', space=sflag, size = 0x4, scoped, tag = 'scoped memory for custom-call.4']
    #allocation8 [shape = 's32[128,128]{1,0}', space=vmem, size = 0x10000, scoped, tag = 'scratch for permutations']
    %5 = vsyncpa [#allocation4], 0
    %6 = vsyncpa [#allocation7], 0
    %p8 = scmp.gt.s32.totalorder 128, 0
    // Predicated region
    $region2: #{custom-call.4} parent=1 // pred_check
      %p9 = pneg %p8
    $region3: #{custom-call.4} parent=1 // pred_check_branch
      %11 = sbr.rel (%p9) target = $region5
    $region4: #{custom-call.4} parent=1 // pred_region
      %s12 = sshra.s32 128, 3
      %p13 = scmp.gt.s32.totalorder %s12, 0
      // Predicated region
      $region6: #{custom-call.4} parent=4 // pred_check
        %p14 = pneg %p13
      $region7: #{custom-call.4} parent=4 // pred_check_branch
        %16 = sbr.rel (%p14) target = $region9
      $region8: #{custom-call.4} parent=4 // pred_region
        %s17 = ssub.s32 %s12, 1
        %s18 = smul.u32 %s17, 128
        %s19 = sshra.s32 %s18, 4
        %s20 = scalar_lea.vmem %s0, %s19
        %v21 = vld [vmem:[%s0] sm:$0xff]
        // While loop
        $region10: #{custom-call.4} parent=8 // loop_pre_header
          _
        $region11: #{custom-call.4} parent=8 // loop_header
          %s22 = sphi %s0, %s44
          %s23 = sphi [#allocation0], %s45
          %v24 = vphi %v21, %v46
          %s25 = ssub.s32 %s20, 64
          %p26 = scmp.gt.s32.totalorder %s22, %s25
        $region12: #{custom-call.4} parent=8 // loop_header_branch
          %28 = sbr.rel (%p26) target = $region16
        $region13: #{custom-call.4} parent=8 // loop_body
          %29 = vst [vmem:[%s23] sm:$0xff] %v24
          %v30 = vld [vmem:[%s22 + $0x8] sm:$0xff]
          %31 = vst [vmem:[%s23 + $0x8] sm:$0xff] %v30
          %v32 = vld [vmem:[%s22 + $0x10] sm:$0xff]
          %33 = vst [vmem:[%s23 + $0x10] sm:$0xff] %v32
          %v34 = vld [vmem:[%s22 + $0x18] sm:$0xff]
          %35 = vst [vmem:[%s23 + $0x18] sm:$0xff] %v34
          %v36 = vld [vmem:[%s22 + $0x20] sm:$0xff]
          %37 = vst [vmem:[%s23 + $0x20] sm:$0xff] %v36
          %v38 = vld [vmem:[%s22 + $0x28] sm:$0xff]
          %39 = vst [vmem:[%s23 + $0x28] sm:$0xff] %v38
          %v40 = vld [vmem:[%s22 + $0x30] sm:$0xff]
          %41 = vst [vmem:[%s23 + $0x30] sm:$0xff] %v40
          %v42 = vld [vmem:[%s22 + $0x38] sm:$0xff]
          %43 = vst [vmem:[%s23 + $0x38] sm:$0xff] %v42
        $region14: #{custom-call.4} parent=8 // loop_footer
          %s44 = scalar_lea.vmem %s22, 64
          %s45 = scalar_lea.vmem %s23, 64
          %v46 = vld [vmem:[%s22 + $0x40] sm:$0xff]
        $region15: #{custom-call.4} parent=8 // loop_footer_branch
          %47 = sbr.rel target = $region11
        $region16: #{custom-call.4} parent=8 // loop_exit
          _
        // While loop
        $region17: #{custom-call.4} parent=8 // loop_pre_header
          _
        $region18: #{custom-call.4} parent=8 // loop_header
          %s48 = sphi %s22, %s56
          %s49 = sphi %s23, %s57
          %v50 = vphi %v24, %v50
          %p51 = scmp.gt.s32.totalorder %s48, %s20
        $region19: #{custom-call.4} parent=8 // loop_header_branch
          %53 = sbr.rel (%p51) target = $region23
        $region20: #{custom-call.4} parent=8 // loop_body
          %v54 = vld [vmem:[%s48] sm:$0xff]
          %55 = vst [vmem:[%s49] sm:$0xff] %v54
        $region21: #{custom-call.4} parent=8 // loop_footer
          %s56 = scalar_lea.vmem %s48, 8
          %s57 = scalar_lea.vmem %s49, 8
        $region22: #{custom-call.4} parent=8 // loop_footer_branch
          %58 = sbr.rel target = $region18
        $region23: #{custom-call.4} parent=8 // loop_exit
          _
      $region9: #{custom-call.4} parent=4 // pred_fallthru
        _
      %s59 = sand.u32 128, 7
      %s60 = sshllo.u32 0, %s59
      %s61 = smul.u32 %s12, 128
      %s62 = sshra.s32 %s61, 4
      %s63 = scalar_lea.vmem [#allocation0], %s62
      %s64 = smul.u32 %s12, 128
      %s65 = sshra.s32 %s64, 4
      %s66 = scalar_lea.vmem %s0, %s65
      %v67 = vld [vmem:[%s66] sm:%s60]
      %68 = vst [vmem:[%s63] sm:%s60] %v67
    $region5: #{custom-call.4} parent=1 // pred_fallthru
      _
    %v69 = vld [vmem:[#allocation0] sm:$0xff]
    %70 = vst [vmem:[#allocation1] sm:$0xff] %v69
    %s71 = scalar_lea.vmem [#allocation1], 8
    %s72 = scalar_lea.vmem [#allocation0], 8
    %v73 = vld [vmem:[%s72] sm:$0xff]
    %74 = vst [vmem:[%s71] sm:$0xff] %v73
    %s75 = scalar_lea.vmem [#allocation1], 16
    %s76 = scalar_lea.vmem [#allocation0], 16
    %v77 = vld [vmem:[%s76] sm:$0xff]
    %78 = vst [vmem:[%s75] sm:$0xff] %v77
    %s79 = scalar_lea.vmem [#allocation1], 24
    %s80 = scalar_lea.vmem [#allocation0], 24
    %v81 = vld [vmem:[%s80] sm:$0xff]
    %82 = vst [vmem:[%s79] sm:$0xff] %v81
    %s83 = scalar_lea.vmem [#allocation1], 32
    %s84 = scalar_lea.vmem [#allocation0], 32
    %v85 = vld [vmem:[%s84] sm:$0xff]
    %86 = vst [vmem:[%s83] sm:$0xff] %v85
    %s87 = scalar_lea.vmem [#allocation1], 40
    %s88 = scalar_lea.vmem [#allocation0], 40
    %v89 = vld [vmem:[%s88] sm:$0xff]
    %90 = vst [vmem:[%s87] sm:$0xff] %v89
    %s91 = scalar_lea.vmem [#allocation1], 48
    %s92 = scalar_lea.vmem [#allocation0], 48
    %v93 = vld [vmem:[%s92] sm:$0xff]
    %94 = vst [vmem:[%s91] sm:$0xff] %v93
    %s95 = scalar_lea.vmem [#allocation1], 56
    %s96 = scalar_lea.vmem [#allocation0], 56
    %v97 = vld [vmem:[%s96] sm:$0xff]
    %98 = vst [vmem:[%s95] sm:$0xff] %v97
    %s99 = scalar_lea.vmem [#allocation1], 64
    %s100 = scalar_lea.vmem [#allocation0], 64
    %v101 = vld [vmem:[%s100] sm:$0xff]
    %102 = vst [vmem:[%s99] sm:$0xff] %v101
    %s103 = scalar_lea.vmem [#allocation1], 72
    %s104 = scalar_lea.vmem [#allocation0], 72
    %v105 = vld [vmem:[%s104] sm:$0xff]
    %106 = vst [vmem:[%s103] sm:$0xff] %v105
    %s107 = scalar_lea.vmem [#allocation1], 80
    %s108 = scalar_lea.vmem [#allocation0], 80
    %v109 = vld [vmem:[%s108] sm:$0xff]
    %110 = vst [vmem:[%s107] sm:$0xff] %v109
    %s111 = scalar_lea.vmem [#allocation1], 88
    %s112 = scalar_lea.vmem [#allocation0], 88
    %v113 = vld [vmem:[%s112] sm:$0xff]
    %114 = vst [vmem:[%s111] sm:$0xff] %v113
    %s115 = scalar_lea.vmem [#allocation1], 96
    %s116 = scalar_lea.vmem [#allocation0], 96
    %v117 = vld [vmem:[%s116] sm:$0xff]
    %118 = vst [vmem:[%s115] sm:$0xff] %v117
    %s119 = scalar_lea.vmem [#allocation1], 104
    %s120 = scalar_lea.vmem [#allocation0], 104
    %v121 = vld [vmem:[%s120] sm:$0xff]
    %122 = vst [vmem:[%s119] sm:$0xff] %v121
    %s123 = scalar_lea.vmem [#allocation1], 112
    %s124 = scalar_lea.vmem [#allocation0], 112
    %v125 = vld [vmem:[%s124] sm:$0xff]
    %126 = vst [vmem:[%s123] sm:$0xff] %v125
    %s127 = scalar_lea.vmem [#allocation1], 120
    %s128 = scalar_lea.vmem [#allocation0], 120
    %v129 = vld [vmem:[%s128] sm:$0xff]
    %130 = vst [vmem:[%s127] sm:$0xff] %v129
    %131 = vst [vmem:[#allocation2] sm:$0x1] 0
    %v132 = vlaneseq
    %v133 = vshrl.u32 %v132, 7
    %v134 = vmov %v133
    loop: start=0, step=1, limit=16
    $region24: #{custom-call.4} parent=1 // loop_pre_header
      _
    $region25: #{custom-call.4} parent=1 // loop_header
      %s136 = sphi 0, %s140
      %p137 = scmp.ge.s32.totalorder %s136, 16
    $region26: #{custom-call.4} parent=1 // loop_header_branch
      %139 = sbr.rel (%p137) target = $region30
    $region27: #{custom-call.4} parent=1 // loop_body
      %s141 = smul.addr %s136, 8
      %s142 = scalar_lea.vmem [#allocation8], %s141
      %s143 = smul.u32 %s136, 8
      %v144 = vstv %s143
      %v145 = vadd.s32 %v134, %v144
      %146 = vst [vmem:[%s142] sm:$0xff] %v145
    $region28: #{custom-call.4} parent=1 // loop_footer
      %s140 = sadd.s32 1, %s136
    $region29: #{custom-call.4} parent=1 // loop_footer_branch
      %135 = sbr.rel target = $region25
    $region30: #{custom-call.4} parent=1 // loop_exit
      _
    loop: start=0, step=1, limit=128
    $region31: #{custom-call.4} parent=1 // loop_pre_header
      _
    $region32: #{custom-call.4} parent=1 // loop_header
      %s148 = sphi 0, %s152
      %p149 = scmp.ge.s32.totalorder %s148, 128
    $region33: #{custom-call.4} parent=1 // loop_header_branch
      %151 = sbr.rel (%p149) target = $region37
    $region34: #{custom-call.4} parent=1 // loop_body
      %v153 = vstv %s148
      %v154 = vlaneseq
      %v155 = vshrl.u32 %v154, 7
      %v156 = vmov %v155
      %v157 = vld [vmem:[#allocation1] sm:$0xff]
      %v158 = vand.u32 2147483647, %v157
      %v160 = vstv %s148
      %vm161 = vcmp.ge.s32.totalorder %v156, %v160
      %vm162 = vcmp.lt.s32.totalorder %v156, 128
      %vm163 = vmand %vm161, %vm162
      %vm164 = vcmp.lt.f32.partialorder -inf, %v158
      %vm165 = vmand %vm163, %vm164
      %v166 = vsel %vm165, %v156, %v153
      %v167 = vsel %vm165, %v158, -inf
      %s168 = scalar_lea.vmem [#allocation1], 8
      %v169 = vld [vmem:[%s168] sm:$0xff]
      %v170 = vand.u32 2147483647, %v169
      %v171 = vadd.s32 %v156, 8
      %v172 = vstv %s148
      %vm173 = vcmp.ge.s32.totalorder %v171, %v172
      %vm174 = vcmp.lt.s32.totalorder %v171, 128
      %vm175 = vmand %vm173, %vm174
      %vm176 = vcmp.lt.f32.partialorder %v167, %v170
      %vm177 = vmand %vm175, %vm176
      %v178 = vsel %vm177, %v171, %v166
      %v179 = vsel %vm177, %v170, %v167
      %s180 = scalar_lea.vmem [#allocation1], 16
      %v181 = vld [vmem:[%s180] sm:$0xff]
      %v182 = vand.u32 2147483647, %v181
      %v183 = vadd.s32 %v156, 16
      %v184 = vstv %s148
      %vm185 = vcmp.ge.s32.totalorder %v183, %v184
      %vm186 = vcmp.lt.s32.totalorder %v183, 128
      %vm187 = vmand %vm185, %vm186
      %vm188 = vcmp.lt.f32.partialorder %v179, %v182
      %vm189 = vmand %vm187, %vm188
      %v190 = vsel %vm189, %v183, %v178
      %v191 = vsel %vm189, %v182, %v179
      %s192 = scalar_lea.vmem [#allocation1], 24
      %v193 = vld [vmem:[%s192] sm:$0xff]
      %v194 = vand.u32 2147483647, %v193
      %v195 = vadd.s32 %v156, 24
      %v196 = vstv %s148
      %vm197 = vcmp.ge.s32.totalorder %v195, %v196
      %vm198 = vcmp.lt.s32.totalorder %v195, 128
      %vm199 = vmand %vm197, %vm198
      %vm200 = vcmp.lt.f32.partialorder %v191, %v194
      %vm201 = vmand %vm199, %vm200
      %v202 = vsel %vm201, %v195, %v190
      %v203 = vsel %vm201, %v194, %v191
      %s204 = scalar_lea.vmem [#allocation1], 32
      %v205 = vld [vmem:[%s204] sm:$0xff]
      %v206 = vand.u32 2147483647, %v205
      %v207 = vadd.s32 %v156, 32
      %v208 = vstv %s148
      %vm209 = vcmp.ge.s32.totalorder %v207, %v208
      %vm210 = vcmp.lt.s32.totalorder %v207, 128
      %vm211 = vmand %vm209, %vm210
      %vm212 = vcmp.lt.f32.partialorder %v203, %v206
      %vm213 = vmand %vm211, %vm212
      %v214 = vsel %vm213, %v207, %v202
      %v215 = vsel %vm213, %v206, %v203
      %s216 = scalar_lea.vmem [#allocation1], 40
      %v217 = vld [vmem:[%s216] sm:$0xff]
      %v218 = vand.u32 2147483647, %v217
      %v219 = vadd.s32 %v156, 40
      %v220 = vstv %s148
      %vm221 = vcmp.ge.s32.totalorder %v219, %v220
      %vm222 = vcmp.lt.s32.totalorder %v219, 128
      %vm223 = vmand %vm221, %vm222
      %vm224 = vcmp.lt.f32.partialorder %v215, %v218
      %vm225 = vmand %vm223, %vm224
      %v226 = vsel %vm225, %v219, %v214
      %v227 = vsel %vm225, %v218, %v215
      %s228 = scalar_lea.vmem [#allocation1], 48
      %v229 = vld [vmem:[%s228] sm:$0xff]
      %v230 = vand.u32 2147483647, %v229
      %v231 = vadd.s32 %v156, 48
      %v232 = vstv %s148
      %vm233 = vcmp.ge.s32.totalorder %v231, %v232
      %vm234 = vcmp.lt.s32.totalorder %v231, 128
      %vm235 = vmand %vm233, %vm234
      %vm236 = vcmp.lt.f32.partialorder %v227, %v230
      %vm237 = vmand %vm235, %vm236
      %v238 = vsel %vm237, %v231, %v226
      %v239 = vsel %vm237, %v230, %v227
      %s240 = scalar_lea.vmem [#allocation1], 56
      %v241 = vld [vmem:[%s240] sm:$0xff]
      %v242 = vand.u32 2147483647, %v241
      %v243 = vadd.s32 %v156, 56
      %v244 = vstv %s148
      %vm245 = vcmp.ge.s32.totalorder %v243, %v244
      %vm246 = vcmp.lt.s32.totalorder %v243, 128
      %vm247 = vmand %vm245, %vm246
      %vm248 = vcmp.lt.f32.partialorder %v239, %v242
      %vm249 = vmand %vm247, %vm248
      %v250 = vsel %vm249, %v243, %v238
      %v251 = vsel %vm249, %v242, %v239
      %s252 = scalar_lea.vmem [#allocation1], 64
      %v253 = vld [vmem:[%s252] sm:$0xff]
      %v254 = vand.u32 2147483647, %v253
      %v255 = vadd.s32 %v156, 64
      %v256 = vstv %s148
      %vm257 = vcmp.ge.s32.totalorder %v255, %v256
      %vm258 = vcmp.lt.s32.totalorder %v255, 128
      %vm259 = vmand %vm257, %vm258
      %vm260 = vcmp.lt.f32.partialorder %v251, %v254
      %vm261 = vmand %vm259, %vm260
      %v262 = vsel %vm261, %v255, %v250
      %v263 = vsel %vm261, %v254, %v251
      %s264 = scalar_lea.vmem [#allocation1], 72
      %v265 = vld [vmem:[%s264] sm:$0xff]
      %v266 = vand.u32 2147483647, %v265
      %v267 = vadd.s32 %v156, 72
      %v268 = vstv %s148
      %vm269 = vcmp.ge.s32.totalorder %v267, %v268
      %vm270 = vcmp.lt.s32.totalorder %v267, 128
      %vm271 = vmand %vm269, %vm270
      %vm272 = vcmp.lt.f32.partialorder %v263, %v266
      %vm273 = vmand %vm271, %vm272
      %v274 = vsel %vm273, %v267, %v262
      %v275 = vsel %vm273, %v266, %v263
      %s276 = scalar_lea.vmem [#allocation1], 80
      %v277 = vld [vmem:[%s276] sm:$0xff]
      %v278 = vand.u32 2147483647, %v277
      %v279 = vadd.s32 %v156, 80
      %v280 = vstv %s148
      %vm281 = vcmp.ge.s32.totalorder %v279, %v280
      %vm282 = vcmp.lt.s32.totalorder %v279, 128
      %vm283 = vmand %vm281, %vm282
      %vm284 = vcmp.lt.f32.partialorder %v275, %v278
      %vm285 = vmand %vm283, %vm284
      %v286 = vsel %vm285, %v279, %v274
      %v287 = vsel %vm285, %v278, %v275
      %s288 = scalar_lea.vmem [#allocation1], 88
      %v289 = vld [vmem:[%s288] sm:$0xff]
      %v290 = vand.u32 2147483647, %v289
      %v291 = vadd.s32 %v156, 88
      %v292 = vstv %s148
      %vm293 = vcmp.ge.s32.totalorder %v291, %v292
      %vm294 = vcmp.lt.s32.totalorder %v291, 128
      %vm295 = vmand %vm293, %vm294
      %vm296 = vcmp.lt.f32.partialorder %v287, %v290
      %vm297 = vmand %vm295, %vm296
      %v298 = vsel %vm297, %v291, %v286
      %v299 = vsel %vm297, %v290, %v287
      %s300 = scalar_lea.vmem [#allocation1], 96
      %v301 = vld [vmem:[%s300] sm:$0xff]
      %v302 = vand.u32 2147483647, %v301
      %v303 = vadd.s32 %v156, 96
      %v304 = vstv %s148
      %vm305 = vcmp.ge.s32.totalorder %v303, %v304
      %vm306 = vcmp.lt.s32.totalorder %v303, 128
      %vm307 = vmand %vm305, %vm306
      %vm308 = vcmp.lt.f32.partialorder %v299, %v302
      %vm309 = vmand %vm307, %vm308
      %v310 = vsel %vm309, %v303, %v298
      %v311 = vsel %vm309, %v302, %v299
      %s312 = scalar_lea.vmem [#allocation1], 104
      %v313 = vld [vmem:[%s312] sm:$0xff]
      %v314 = vand.u32 2147483647, %v313
      %v315 = vadd.s32 %v156, 104
      %v316 = vstv %s148
      %vm317 = vcmp.ge.s32.totalorder %v315, %v316
      %vm318 = vcmp.lt.s32.totalorder %v315, 128
      %vm319 = vmand %vm317, %vm318
      %vm320 = vcmp.lt.f32.partialorder %v311, %v314
      %vm321 = vmand %vm319, %vm320
      %v322 = vsel %vm321, %v315, %v310
      %v323 = vsel %vm321, %v314, %v311
      %s324 = scalar_lea.vmem [#allocation1], 112
      %v325 = vld [vmem:[%s324] sm:$0xff]
      %v326 = vand.u32 2147483647, %v325
      %v327 = vadd.s32 %v156, 112
      %v328 = vstv %s148
      %vm329 = vcmp.ge.s32.totalorder %v327, %v328
      %vm330 = vcmp.lt.s32.totalorder %v327, 128
      %vm331 = vmand %vm329, %vm330
      %vm332 = vcmp.lt.f32.partialorder %v323, %v326
      %vm333 = vmand %vm331, %vm332
      %v334 = vsel %vm333, %v327, %v322
      %v335 = vsel %vm333, %v326, %v323
      %s336 = scalar_lea.vmem [#allocation1], 120
      %v337 = vld [vmem:[%s336] sm:$0xff]
      %v338 = vand.u32 2147483647, %v337
      %v339 = vadd.s32 %v156, 120
      %v340 = vstv %s148
      %vm341 = vcmp.ge.s32.totalorder %v339, %v340
      %vm342 = vcmp.lt.s32.totalorder %v339, 128
      %vm343 = vmand %vm341, %vm342
      %vm344 = vcmp.lt.f32.partialorder %v335, %v338
      %vm345 = vmand %vm343, %vm344
      %v346 = vsel %vm345, %v339, %v334
      %v347 = vsel %vm345, %v338, %v335
      %v348 = vrot.slane %v347, 1
      %v349 = vrot.slane %v346, 1
      %vm350 = vcmp.ge.f32.partialorder %v348, %v347
      %v351 = vsel %vm350, %v348, %v347
      %v352 = vsel %vm350, %v349, %v346
      %v353 = vrot.slane %v348, 1
      %v354 = vrot.slane %v349, 1
      %vm355 = vcmp.ge.f32.partialorder %v353, %v351
      %v356 = vsel %vm355, %v353, %v351
      %v357 = vsel %vm355, %v354, %v352
      %v358 = vrot.slane %v353, 1
      %v359 = vrot.slane %v354, 1
      %vm360 = vcmp.ge.f32.partialorder %v358, %v356
      %v361 = vsel %vm360, %v358, %v356
      %v362 = vsel %vm360, %v359, %v357
      %v363 = vrot.slane %v358, 1
      %v364 = vrot.slane %v359, 1
      %vm365 = vcmp.ge.f32.partialorder %v363, %v361
      %v366 = vsel %vm365, %v363, %v361
      %v367 = vsel %vm365, %v364, %v362
      %v368 = vrot.slane %v363, 1
      %v369 = vrot.slane %v364, 1
      %vm370 = vcmp.ge.f32.partialorder %v368, %v366
      %v371 = vsel %vm370, %v368, %v366
      %v372 = vsel %vm370, %v369, %v367
      %v373 = vrot.slane %v368, 1
      %v374 = vrot.slane %v369, 1
      %vm375 = vcmp.ge.f32.partialorder %v373, %v371
      %v376 = vsel %vm375, %v373, %v371
      %v377 = vsel %vm375, %v374, %v372
      %v378 = vrot.slane %v373, 1
      %v379 = vrot.slane %v374, 1
      %vm380 = vcmp.ge.f32.partialorder %v378, %v376
      %v381 = vsel %vm380, %v378, %v376
      %v382 = vsel %vm380, %v379, %v377
      %s383 = ssub.s32 128, %s148
      %384 = vrot.lane.b32.xlu0 %v382, %s383
      %v385 = vpop.permute.xlu0 %384
      %s386 = vtos %v385
      %v387 = vstv %s148
      %v388 = vlaneseq
      %v389 = vand.u32 %v388, 127
      %vm390 = vcmp.eq.s32.totalorder %v389, %v387
      %v391 = vstv %s386
      %v392 = vld [vmem:[#allocation2] ss:$0 sm:$0xff]
      %v393 = vsel %vm390, %v391, %v392
      %394 = vst [vmem:[#allocation2] sm:$0x1] %v393
      %s395 = scalar_lea.vmem [#allocation1], %s148
      %s396 = scalar_lea.vmem [#allocation1], %s386
      %v397 = vld [vmem:[%s395] ss:$0 sm:$0xff]
      %v398 = vld [vmem:[%s396] ss:$0 sm:$0xff]
      %399 = vst [vmem:[%s396] sm:$0x1] %v397
      %400 = vst [vmem:[%s395] sm:$0x1] %v398
      %s401 = scalar_lea.vmem [#allocation8], %s148
      %s402 = scalar_lea.vmem [#allocation8], %s386
      %v403 = vld [vmem:[%s401] ss:$0 sm:$0xff]
      %v404 = vld [vmem:[%s402] ss:$0 sm:$0xff]
      %405 = vst [vmem:[%s402] sm:$0x1] %v403
      %406 = vst [vmem:[%s401] sm:$0x1] %v404
      %vm407 = vcmp.ne.f32.partialorder %v398, 0.0
      %vm408 = vmand %vm390, %vm407
      %v409 = vsel %vm408, %v398, 1.0
      %v410 = vlaneseq
      %v411 = vand.u32 %v410, 127
      %v412 = vstv %s148
      %vm413 = vcmp.gt.s32.totalorder %v411, %v412
      %v414 = vsel %vm413, %v398, 0.0
      %v415 = vlaneseq
      %v416 = vshrl.u32 %v415, 7
      %v417 = vmov %v416
      %v418 = vld [vmem:[#allocation1] sm:$0xff]
      %v420 = vstv %s148
      %vm421 = vcmp.gt.s32.totalorder %v417, %v420
      %v422 = vsel %vm421, %v409, 1.0
      %v423 = vrcp.pop %v422
      %v424 = vmul.f32 %v418, %v423
      %vm425 = vmand %vm421, %vm390
      %v426 = vsel %vm425, %v424, 0.0
      %427 = vadd.xlane.f32.xlu0 %v426
      %v428 = vpop.xlane.xlu0 %427
      %v429 = vmul.f32 %v428, %v414
      %v430 = vsub.f32 %v424, %v429
      %431 = vst [vmem:[#allocation1] sm:$0xff] %v430
      %s432 = scalar_lea.vmem [#allocation1], 8
      %v433 = vld [vmem:[%s432] sm:$0xff]
      %v434 = vadd.s32 %v417, 8
      %v435 = vstv %s148
      %vm436 = vcmp.gt.s32.totalorder %v434, %v435
      %v437 = vsel %vm436, %v409, 1.0
      %v438 = vrcp.pop %v437
      %v439 = vmul.f32 %v433, %v438
      %vm440 = vmand %vm436, %vm390
      %v441 = vsel %vm440, %v439, 0.0
      %442 = vadd.xlane.f32.xlu0 %v441
      %v443 = vpop.xlane.xlu0 %442
      %v444 = vmul.f32 %v443, %v414
      %v445 = vsub.f32 %v439, %v444
      %446 = vst [vmem:[%s432] sm:$0xff] %v445
      %s447 = scalar_lea.vmem [#allocation1], 16
      %v448 = vld [vmem:[%s447] sm:$0xff]
      %v449 = vadd.s32 %v417, 16
      %v450 = vstv %s148
      %vm451 = vcmp.gt.s32.totalorder %v449, %v450
      %v452 = vsel %vm451, %v409, 1.0
      %v453 = vrcp.pop %v452
      %v454 = vmul.f32 %v448, %v453
      %vm455 = vmand %vm451, %vm390
      %v456 = vsel %vm455, %v454, 0.0
      %457 = vadd.xlane.f32.xlu0 %v456
      %v458 = vpop.xlane.xlu0 %457
      %v459 = vmul.f32 %v458, %v414
      %v460 = vsub.f32 %v454, %v459
      %461 = vst [vmem:[%s447] sm:$0xff] %v460
      %s462 = scalar_lea.vmem [#allocation1], 24
      %v463 = vld [vmem:[%s462] sm:$0xff]
      %v464 = vadd.s32 %v417, 24
      %v465 = vstv %s148
      %vm466 = vcmp.gt.s32.totalorder %v464, %v465
      %v467 = vsel %vm466, %v409, 1.0
      %v468 = vrcp.pop %v467
      %v469 = vmul.f32 %v463, %v468
      %vm470 = vmand %vm466, %vm390
      %v471 = vsel %vm470, %v469, 0.0
      %472 = vadd.xlane.f32.xlu0 %v471
      %v473 = vpop.xlane.xlu0 %472
      %v474 = vmul.f32 %v473, %v414
      %v475 = vsub.f32 %v469, %v474
      %476 = vst [vmem:[%s462] sm:$0xff] %v475
      %s477 = scalar_lea.vmem [#allocation1], 32
      %v478 = vld [vmem:[%s477] sm:$0xff]
      %v479 = vadd.s32 %v417, 32
      %v480 = vstv %s148
      %vm481 = vcmp.gt.s32.totalorder %v479, %v480
      %v482 = vsel %vm481, %v409, 1.0
      %v483 = vrcp.pop %v482
      %v484 = vmul.f32 %v478, %v483
      %vm485 = vmand %vm481, %vm390
      %v486 = vsel %vm485, %v484, 0.0
      %487 = vadd.xlane.f32.xlu0 %v486
      %v488 = vpop.xlane.xlu0 %487
      %v489 = vmul.f32 %v488, %v414
      %v490 = vsub.f32 %v484, %v489
      %491 = vst [vmem:[%s477] sm:$0xff] %v490
      %s492 = scalar_lea.vmem [#allocation1], 40
      %v493 = vld [vmem:[%s492] sm:$0xff]
      %v494 = vadd.s32 %v417, 40
      %v495 = vstv %s148
      %vm496 = vcmp.gt.s32.totalorder %v494, %v495
      %v497 = vsel %vm496, %v409, 1.0
      %v498 = vrcp.pop %v497
      %v499 = vmul.f32 %v493, %v498
      %vm500 = vmand %vm496, %vm390
      %v501 = vsel %vm500, %v499, 0.0
      %502 = vadd.xlane.f32.xlu0 %v501
      %v503 = vpop.xlane.xlu0 %502
      %v504 = vmul.f32 %v503, %v414
      %v505 = vsub.f32 %v499, %v504
      %506 = vst [vmem:[%s492] sm:$0xff] %v505
      %s507 = scalar_lea.vmem [#allocation1], 48
      %v508 = vld [vmem:[%s507] sm:$0xff]
      %v509 = vadd.s32 %v417, 48
      %v510 = vstv %s148
      %vm511 = vcmp.gt.s32.totalorder %v509, %v510
      %v512 = vsel %vm511, %v409, 1.0
      %v513 = vrcp.pop %v512
      %v514 = vmul.f32 %v508, %v513
      %vm515 = vmand %vm511, %vm390
      %v516 = vsel %vm515, %v514, 0.0
      %517 = vadd.xlane.f32.xlu0 %v516
      %v518 = vpop.xlane.xlu0 %517
      %v519 = vmul.f32 %v518, %v414
      %v520 = vsub.f32 %v514, %v519
      %521 = vst [vmem:[%s507] sm:$0xff] %v520
      %s522 = scalar_lea.vmem [#allocation1], 56
      %v523 = vld [vmem:[%s522] sm:$0xff]
      %v524 = vadd.s32 %v417, 56
      %v525 = vstv %s148
      %vm526 = vcmp.gt.s32.totalorder %v524, %v525
      %v527 = vsel %vm526, %v409, 1.0
      %v528 = vrcp.pop %v527
      %v529 = vmul.f32 %v523, %v528
      %vm530 = vmand %vm526, %vm390
      %v531 = vsel %vm530, %v529, 0.0
      %532 = vadd.xlane.f32.xlu0 %v531
      %v533 = vpop.xlane.xlu0 %532
      %v534 = vmul.f32 %v533, %v414
      %v535 = vsub.f32 %v529, %v534
      %536 = vst [vmem:[%s522] sm:$0xff] %v535
      %s537 = scalar_lea.vmem [#allocation1], 64
      %v538 = vld [vmem:[%s537] sm:$0xff]
      %v539 = vadd.s32 %v417, 64
      %v540 = vstv %s148
      %vm541 = vcmp.gt.s32.totalorder %v539, %v540
      %v542 = vsel %vm541, %v409, 1.0
      %v543 = vrcp.pop %v542
      %v544 = vmul.f32 %v538, %v543
      %vm545 = vmand %vm541, %vm390
      %v546 = vsel %vm545, %v544, 0.0
      %547 = vadd.xlane.f32.xlu0 %v546
      %v548 = vpop.xlane.xlu0 %547
      %v549 = vmul.f32 %v548, %v414
      %v550 = vsub.f32 %v544, %v549
      %551 = vst [vmem:[%s537] sm:$0xff] %v550
      %s552 = scalar_lea.vmem [#allocation1], 72
      %v553 = vld [vmem:[%s552] sm:$0xff]
      %v554 = vadd.s32 %v417, 72
      %v555 = vstv %s148
      %vm556 = vcmp.gt.s32.totalorder %v554, %v555
      %v557 = vsel %vm556, %v409, 1.0
      %v558 = vrcp.pop %v557
      %v559 = vmul.f32 %v553, %v558
      %vm560 = vmand %vm556, %vm390
      %v561 = vsel %vm560, %v559, 0.0
      %562 = vadd.xlane.f32.xlu0 %v561
      %v563 = vpop.xlane.xlu0 %562
      %v564 = vmul.f32 %v563, %v414
      %v565 = vsub.f32 %v559, %v564
      %566 = vst [vmem:[%s552] sm:$0xff] %v565
      %s567 = scalar_lea.vmem [#allocation1], 80
      %v568 = vld [vmem:[%s567] sm:$0xff]
      %v569 = vadd.s32 %v417, 80
      %v570 = vstv %s148
      %vm571 = vcmp.gt.s32.totalorder %v569, %v570
      %v572 = vsel %vm571, %v409, 1.0
      %v573 = vrcp.pop %v572
      %v574 = vmul.f32 %v568, %v573
      %vm575 = vmand %vm571, %vm390
      %v576 = vsel %vm575, %v574, 0.0
      %577 = vadd.xlane.f32.xlu0 %v576
      %v578 = vpop.xlane.xlu0 %577
      %v579 = vmul.f32 %v578, %v414
      %v580 = vsub.f32 %v574, %v579
      %581 = vst [vmem:[%s567] sm:$0xff] %v580
      %s582 = scalar_lea.vmem [#allocation1], 88
      %v583 = vld [vmem:[%s582] sm:$0xff]
      %v584 = vadd.s32 %v417, 88
      %v585 = vstv %s148
      %vm586 = vcmp.gt.s32.totalorder %v584, %v585
      %v587 = vsel %vm586, %v409, 1.0
      %v588 = vrcp.pop %v587
      %v589 = vmul.f32 %v583, %v588
      %vm590 = vmand %vm586, %vm390
      %v591 = vsel %vm590, %v589, 0.0
      %592 = vadd.xlane.f32.xlu0 %v591
      %v593 = vpop.xlane.xlu0 %592
      %v594 = vmul.f32 %v593, %v414
      %v595 = vsub.f32 %v589, %v594
      %596 = vst [vmem:[%s582] sm:$0xff] %v595
      %s597 = scalar_lea.vmem [#allocation1], 96
      %v598 = vld [vmem:[%s597] sm:$0xff]
      %v599 = vadd.s32 %v417, 96
      %v600 = vstv %s148
      %vm601 = vcmp.gt.s32.totalorder %v599, %v600
      %v602 = vsel %vm601, %v409, 1.0
      %v603 = vrcp.pop %v602
      %v604 = vmul.f32 %v598, %v603
      %vm605 = vmand %vm601, %vm390
      %v606 = vsel %vm605, %v604, 0.0
      %607 = vadd.xlane.f32.xlu0 %v606
      %v608 = vpop.xlane.xlu0 %607
      %v609 = vmul.f32 %v608, %v414
      %v610 = vsub.f32 %v604, %v609
      %611 = vst [vmem:[%s597] sm:$0xff] %v610
      %s612 = scalar_lea.vmem [#allocation1], 104
      %v613 = vld [vmem:[%s612] sm:$0xff]
      %v614 = vadd.s32 %v417, 104
      %v615 = vstv %s148
      %vm616 = vcmp.gt.s32.totalorder %v614, %v615
      %v617 = vsel %vm616, %v409, 1.0
      %v618 = vrcp.pop %v617
      %v619 = vmul.f32 %v613, %v618
      %vm620 = vmand %vm616, %vm390
      %v621 = vsel %vm620, %v619, 0.0
      %622 = vadd.xlane.f32.xlu0 %v621
      %v623 = vpop.xlane.xlu0 %622
      %v624 = vmul.f32 %v623, %v414
      %v625 = vsub.f32 %v619, %v624
      %626 = vst [vmem:[%s612] sm:$0xff] %v625
      %s627 = scalar_lea.vmem [#allocation1], 112
      %v628 = vld [vmem:[%s627] sm:$0xff]
      %v629 = vadd.s32 %v417, 112
      %v630 = vstv %s148
      %vm631 = vcmp.gt.s32.totalorder %v629, %v630
      %v632 = vsel %vm631, %v409, 1.0
      %v633 = vrcp.pop %v632
      %v634 = vmul.f32 %v628, %v633
      %vm635 = vmand %vm631, %vm390
      %v636 = vsel %vm635, %v634, 0.0
      %637 = vadd.xlane.f32.xlu0 %v636
      %v638 = vpop.xlane.xlu0 %637
      %v639 = vmul.f32 %v638, %v414
      %v640 = vsub.f32 %v634, %v639
      %641 = vst [vmem:[%s627] sm:$0xff] %v640
      %s642 = scalar_lea.vmem [#allocation1], 120
      %v643 = vld [vmem:[%s642] sm:$0xff]
      %v644 = vadd.s32 %v417, 120
      %v645 = vstv %s148
      %vm646 = vcmp.gt.s32.totalorder %v644, %v645
      %v647 = vsel %vm646, %v409, 1.0
      %v648 = vrcp.pop %v647
      %v649 = vmul.f32 %v643, %v648
      %vm650 = vmand %vm646, %vm390
      %v651 = vsel %vm650, %v649, 0.0
      %652 = vadd.xlane.f32.xlu0 %v651
      %v653 = vpop.xlane.xlu0 %652
      %v654 = vmul.f32 %v653, %v414
      %v655 = vsub.f32 %v649, %v654
      %656 = vst [vmem:[%s642] sm:$0xff] %v655
    $region35: #{custom-call.4} parent=1 // loop_footer
      %s152 = sadd.s32 1, %s148
    $region36: #{custom-call.4} parent=1 // loop_footer_branch
      %147 = sbr.rel target = $region32
    $region37: #{custom-call.4} parent=1 // loop_exit
      _
    %v657 = vld [vmem:[#allocation8] sm:$0xff]
    %s658 = scalar_lea.vmem [#allocation8], 8
    %v659 = vld [vmem:[%s658] sm:$0xff]
    %s660 = scalar_lea.vmem [#allocation8], 16
    %v661 = vld [vmem:[%s660] sm:$0xff]
    %s662 = scalar_lea.vmem [#allocation8], 24
    %v663 = vld [vmem:[%s662] sm:$0xff]
    %s664 = scalar_lea.vmem [#allocation8], 32
    %v665 = vld [vmem:[%s664] sm:$0xff]
    %s666 = scalar_lea.vmem [#allocation8], 40
    %v667 = vld [vmem:[%s666] sm:$0xff]
    %s668 = scalar_lea.vmem [#allocation8], 48
    %v669 = vld [vmem:[%s668] sm:$0xff]
    %s670 = scalar_lea.vmem [#allocation8], 56
    %v671 = vld [vmem:[%s670] sm:$0xff]
    %s672 = scalar_lea.vmem [#allocation8], 64
    %v673 = vld [vmem:[%s672] sm:$0xff]
    %s674 = scalar_lea.vmem [#allocation8], 72
    %v675 = vld [vmem:[%s674] sm:$0xff]
    %s676 = scalar_lea.vmem [#allocation8], 80
    %v677 = vld [vmem:[%s676] sm:$0xff]
    %s678 = scalar_lea.vmem [#allocation8], 88
    %v679 = vld [vmem:[%s678] sm:$0xff]
    %s680 = scalar_lea.vmem [#allocation8], 96
    %v681 = vld [vmem:[%s680] sm:$0xff]
    %s682 = scalar_lea.vmem [#allocation8], 104
    %v683 = vld [vmem:[%s682] sm:$0xff]
    %s684 = scalar_lea.vmem [#allocation8], 112
    %v685 = vld [vmem:[%s684] sm:$0xff]
    %s686 = scalar_lea.vmem [#allocation8], 120
    %v687 = vld [vmem:[%s686] sm:$0xff]
    %688 = vxpose.xlu0.b32.start [1/16] %v657, 128
    %689 = vxpose.xlu0.b32.cont [2/16] %v659, 128
    %690 = vxpose.xlu0.b32.cont [3/16] %v661, 128
    %691 = vxpose.xlu0.b32.cont [4/16] %v663, 128
    %692 = vxpose.xlu0.b32.cont [5/16] %v665, 128
    %693 = vxpose.xlu0.b32.cont [6/16] %v667, 128
    %694 = vxpose.xlu0.b32.cont [7/16] %v669, 128
    %695 = vxpose.xlu0.b32.cont [8/16] %v671, 128
    %696 = vxpose.xlu0.b32.cont [9/16] %v673, 128
    %697 = vxpose.xlu0.b32.cont [10/16] %v675, 128
    %698 = vxpose.xlu0.b32.cont [11/16] %v677, 128
    %699 = vxpose.xlu0.b32.cont [12/16] %v679, 128
    %700 = vxpose.xlu0.b32.cont [13/16] %v681, 128
    %701 = vxpose.xlu0.b32.cont [14/16] %v683, 128
    %702 = vxpose.xlu0.b32.cont [15/16] %v685, 128
    %703 = vxpose.xlu0.b32.end [16/16] %v687, 128
    %v704 = vpop.trf.xlu0
    %v705 = vpop.trf.xlu0
    %v706 = vpop.trf.xlu0
    %v707 = vpop.trf.xlu0
    %v708 = vpop.trf.xlu0
    %v709 = vpop.trf.xlu0
    %v710 = vpop.trf.xlu0
    %v711 = vpop.trf.xlu0
    %v712 = vpop.trf.xlu0
    %v713 = vpop.trf.xlu0
    %v714 = vpop.trf.xlu0
    %v715 = vpop.trf.xlu0
    %v716 = vpop.trf.xlu0
    %v717 = vpop.trf.xlu0
    %v718 = vpop.trf.xlu0
    %v719 = vpop.trf.xlu0
    %720 = vst [vmem:[#allocation5] sm:$0x1] %v704
    %s722 = sshllo.u32 0, 1
    %v724 = vld [vmem:[#allocation2] sm:%s722]
    %s725 = sshllo.u32 0, 1
    %726 = vst [vmem:[#allocation3] sm:%s725] %v724
    %s728 = sshllo.u32 0, 1
    %v730 = vld [vmem:[#allocation5] sm:%s728]
    %s731 = sshllo.u32 0, 1
    %732 = vst [vmem:[#allocation6] sm:%s731] %v730
    %p734 = scmp.gt.s32.totalorder 128, 0
    // Predicated region
    $region38: #{custom-call.4} parent=1 // pred_check
      %p735 = pneg %p734
    $region39: #{custom-call.4} parent=1 // pred_check_branch
      %737 = sbr.rel (%p735) target = $region41
    $region40: #{custom-call.4} parent=1 // pred_region
      %s738 = sshra.s32 128, 3
      %p739 = scmp.gt.s32.totalorder %s738, 0
      // Predicated region
      $region42: #{custom-call.4} parent=40 // pred_check
        %p740 = pneg %p739
      $region43: #{custom-call.4} parent=40 // pred_check_branch
        %742 = sbr.rel (%p740) target = $region45
      $region44: #{custom-call.4} parent=40 // pred_region
        %s743 = ssub.s32 %s738, 1
        %s744 = smul.u32 %s743, 128
        %s745 = sshra.s32 %s744, 4
        %s746 = scalar_lea.vmem [#allocation1], %s745
        %v747 = vld [vmem:[#allocation1] sm:$0xff]
        // While loop
        $region46: #{custom-call.4} parent=44 // loop_pre_header
          _
        $region47: #{custom-call.4} parent=44 // loop_header
          %s748 = sphi [#allocation1], %s770
          %s749 = sphi %s1, %s771
          %v750 = vphi %v747, %v772
          %s751 = ssub.s32 %s746, 64
          %p752 = scmp.gt.s32.totalorder %s748, %s751
        $region48: #{custom-call.4} parent=44 // loop_header_branch
          %754 = sbr.rel (%p752) target = $region52
        $region49: #{custom-call.4} parent=44 // loop_body
          %755 = vst [vmem:[%s749] sm:$0xff] %v750
          %v756 = vld [vmem:[%s748 + $0x8] sm:$0xff]
          %757 = vst [vmem:[%s749 + $0x8] sm:$0xff] %v756
          %v758 = vld [vmem:[%s748 + $0x10] sm:$0xff]
          %759 = vst [vmem:[%s749 + $0x10] sm:$0xff] %v758
          %v760 = vld [vmem:[%s748 + $0x18] sm:$0xff]
          %761 = vst [vmem:[%s749 + $0x18] sm:$0xff] %v760
          %v762 = vld [vmem:[%s748 + $0x20] sm:$0xff]
          %763 = vst [vmem:[%s749 + $0x20] sm:$0xff] %v762
          %v764 = vld [vmem:[%s748 + $0x28] sm:$0xff]
          %765 = vst [vmem:[%s749 + $0x28] sm:$0xff] %v764
          %v766 = vld [vmem:[%s748 + $0x30] sm:$0xff]
          %767 = vst [vmem:[%s749 + $0x30] sm:$0xff] %v766
          %v768 = vld [vmem:[%s748 + $0x38] sm:$0xff]
          %769 = vst [vmem:[%s749 + $0x38] sm:$0xff] %v768
        $region50: #{custom-call.4} parent=44 // loop_footer
          %s770 = scalar_lea.vmem %s748, 64
          %s771 = scalar_lea.vmem %s749, 64
          %v772 = vld [vmem:[%s748 + $0x40] sm:$0xff]
        $region51: #{custom-call.4} parent=44 // loop_footer_branch
          %773 = sbr.rel target = $region47
        $region52: #{custom-call.4} parent=44 // loop_exit
          _
        // While loop
        $region53: #{custom-call.4} parent=44 // loop_pre_header
          _
        $region54: #{custom-call.4} parent=44 // loop_header
          %s774 = sphi %s748, %s782
          %s775 = sphi %s749, %s783
          %v776 = vphi %v750, %v776
          %p777 = scmp.gt.s32.totalorder %s774, %s746
        $region55: #{custom-call.4} parent=44 // loop_header_branch
          %779 = sbr.rel (%p777) target = $region59
        $region56: #{custom-call.4} parent=44 // loop_body
          %v780 = vld [vmem:[%s774] sm:$0xff]
          %781 = vst [vmem:[%s775] sm:$0xff] %v780
        $region57: #{custom-call.4} parent=44 // loop_footer
          %s782 = scalar_lea.vmem %s774, 8
          %s783 = scalar_lea.vmem %s775, 8
        $region58: #{custom-call.4} parent=44 // loop_footer_branch
          %784 = sbr.rel target = $region54
        $region59: #{custom-call.4} parent=44 // loop_exit
          _
      $region45: #{custom-call.4} parent=40 // pred_fallthru
        _
      %s785 = sand.u32 128, 7
      %s786 = sshllo.u32 0, %s785
      %s787 = smul.u32 %s738, 128
      %s788 = sshra.s32 %s787, 4
      %s789 = scalar_lea.vmem %s1, %s788
      %s790 = smul.u32 %s738, 128
      %s791 = sshra.s32 %s790, 4
      %s792 = scalar_lea.vmem [#allocation1], %s791
      %v793 = vld [vmem:[%s792] sm:%s786]
      %794 = vst [vmem:[%s789] sm:%s786] %v793
    $region41: #{custom-call.4} parent=1 // pred_fallthru
      _
    // Predicated region
    $region60: #{custom-call.4} parent=1 // pred_check
      _
    $region61: #{custom-call.4} parent=1 // pred_check_branch
      %796 = sbr.rel (0) target = $region63
    $region62: #{custom-call.4} parent=1 // pred_region
      %s798 = ssub.s32 16, 16
      %799 = vsyncadd [#allocation4], %s798
      %s800 = sshll.u32 [#allocation3], 4
      %s801 = int_to_ptr.vmem [resolvable:$true] %s800
      %803 = dma.vmem_to_hbm [thread:$0]  %s801, 16, %s2, [#allocation4]
    $region63: #{custom-call.4} parent=1 // pred_fallthru
      _
    // Predicated region
    $region64: #{custom-call.4} parent=1 // pred_check
      _
    $region65: #{custom-call.4} parent=1 // pred_check_branch
      %805 = sbr.rel (0) target = $region67
    $region66: #{custom-call.4} parent=1 // pred_region
      %s807 = ssub.s32 16, 16
      %808 = vsyncadd [#allocation7], %s807
      %s809 = sshll.u32 [#allocation6], 4
      %s810 = int_to_ptr.vmem [resolvable:$true] %s809
      %812 = dma.vmem_to_hbm [thread:$0]  %s810, 16, %s3, [#allocation7]
    $region67: #{custom-call.4} parent=1 // pred_fallthru
      _
    // Predicated region
    $region68: #{custom-call.4} parent=1 // pred_check
      _
    $region69: #{custom-call.4} parent=1 // pred_check_branch
      %814 = sbr.rel (0) target = $region71
    $region70: #{custom-call.4} parent=1 // pred_region
      %815 = dma.done [#allocation4], 16
    $region71: #{custom-call.4} parent=1 // pred_fallthru
      _
    // Predicated region
    $region72: #{custom-call.4} parent=1 // pred_check
      _
    $region73: #{custom-call.4} parent=1 // pred_check_branch
      %817 = sbr.rel (0) target = $region75
    $region74: #{custom-call.4} parent=1 // pred_region
      %818 = dma.done [#allocation7], 16
    $region75: #{custom-call.4} parent=1 // pred_fallthru
      _
    %819 = vsyncpa [#allocation4], 1
    %820 = vsyncpa [#allocation7], 1

// kernel: custom-call.5
$region0: #{custom-call.5}
  %s0 = inlined_call_operand.vmem [shape: f32[4,128,128], index: 0, kind: input, shape index: {}]
  %s1 = inlined_call_operand.vmem [shape: f32[4,128,128], index: 1, kind: output, shape index: {0}]
  %s2 = inlined_call_operand.hbm [shape: s32[4,128], index: 2, kind: output, shape index: {1}]
  %s3 = inlined_call_operand.hbm [shape: s32[4,128], index: 3, kind: output, shape index: {2}]
  %4 = xla_tuple %s1, %s2, %s3
  $region1: #{custom-call.5} parent=0
    #allocation0 [shape = 'u8[131072]{0}', space=vmem, size = 0x20000, scoped, tag = 'operand span for operand 0']
    #allocation1 [shape = 'u8[131072]{0}', space=vmem, size = 0x20000, scoped, tag = 'operand span for operand 1']
    #allocation2 [shape = 'u8[4096]{0}', space=vmem, size = 0x1000, scoped, tag = 'operand span for operand 2']
    #allocation3 [shape = 'u8[4096]{0}', space=vmem, size = 0x1000, scoped, tag = 'packed  for operand 2']
    #allocation4 [shape = 's32[2]{0}', space=sflag, size = 0x8, scoped, tag = 'scoped memory for custom-call.5']
    #allocation5 [shape = 'u8[4096]{0}', space=vmem, size = 0x1000, scoped, tag = 'operand span for operand 3']
    #allocation6 [shape = 'u8[4096]{0}', space=vmem, size = 0x1000, scoped, tag = 'packed  for operand 3']
    #allocation7 [shape = 's32[2]{0}', space=sflag, size = 0x8, scoped, tag = 'scoped memory for custom-call.5']
    %5 = vsyncpa [#allocation4], 0
    %s6 = scalar_lea.sflag [#allocation4], 1
    %7 = vsyncpa %s6, 0
    %8 = vsyncpa [#allocation7], 0
    %s9 = scalar_lea.sflag [#allocation7], 1
    %10 = vsyncpa %s9, 0
    loop: start=0, step=1, limit=6
    $region2: #{custom-call.5} parent=1 // loop_pre_header
      _
    $region3: #{custom-call.5} parent=1 // loop_header
      %s12 = sphi 0, %s16
      %p13 = scmp.ge.s32.totalorder %s12, 6
      %s24 = sphi 0, %s26
      %s27 = sphi 0, %s24
      %s28 = sphi 0, %s27
      %s44 = sphi 0, %s28
      %s52 = sphi 0, %s54
      %s55 = sphi 0, %s52
      %s56 = sphi 0, %s55
      %s72 = sphi 0, %s56
    $region4: #{custom-call.5} parent=1 // loop_header_branch
      %15 = sbr.rel (%p13) target = $region8
    $region5: #{custom-call.5} parent=1 // loop_body
      %s17 = ssub.s32 %s12, 1
      %s18 = ssub.s32 %s12, 2
      %s19 = sadd.s32 %s12, 1
      %s20 = sshrl.u32 %s12, 3
      %s21 = sshrl.u32 %s19, 3
      %s22 = ssub.s32 %s20, %s21
      %p23 = scmp.eq.s32.totalorder %s22, 0
      %s25 = sadd.s32 %s24, 1
      %s26 = scalar_select %p23, %s24, %s25
      %p29 = pneg %p23
      %p30 = scmp.eq.s32.totalorder %s12, 3
      %p31 = por %p29, %p30
      %p32 = scmp.ne.s32.totalorder %s24, %s27
      %p33 = scmp.eq.s32.totalorder %s12, 0
      %p34 = por %p32, %p33
      %p35 = scmp.ne.s32.totalorder %s24, %s27
      %p36 = scmp.eq.s32.totalorder %s17, 3
      %p37 = por %p35, %p36
      %p38 = scmp.ne.s32.totalorder %s27, %s28
      %p39 = scmp.eq.s32.totalorder %s17, 0
      %p40 = por %p38, %p39
      %p41 = scmp.ne.s32.totalorder %s27, %s28
      %p42 = scmp.eq.s32.totalorder %s18, 3
      %p43 = por %p41, %p42
      %p45 = scmp.ne.s32.totalorder %s28, %s44
      %p46 = scmp.eq.s32.totalorder %s18, 0
      %p47 = por %p45, %p46
      %s48 = sshrl.u32 %s12, 3
      %s49 = sshrl.u32 %s19, 3
      %s50 = ssub.s32 %s48, %s49
      %p51 = scmp.eq.s32.totalorder %s50, 0
      %s53 = sadd.s32 %s52, 1
      %s54 = scalar_select %p51, %s52, %s53
      %p57 = pneg %p51
      %p58 = scmp.eq.s32.totalorder %s12, 3
      %p59 = por %p57, %p58
      %p60 = scmp.ne.s32.totalorder %s52, %s55
      %p61 = scmp.eq.s32.totalorder %s12, 0
      %p62 = por %p60, %p61
      %p63 = scmp.ne.s32.totalorder %s52, %s55
      %p64 = scmp.eq.s32.totalorder %s17, 3
      %p65 = por %p63, %p64
      %p66 = scmp.ne.s32.totalorder %s55, %s56
      %p67 = scmp.eq.s32.totalorder %s17, 0
      %p68 = por %p66, %p67
      %p69 = scmp.ne.s32.totalorder %s55, %s56
      %p70 = scmp.eq.s32.totalorder %s18, 3
      %p71 = por %p69, %p70
      %p73 = scmp.ne.s32.totalorder %s56, %s72
      %p74 = scmp.eq.s32.totalorder %s18, 0
      %p75 = por %p73, %p74
      %p76 = scmp.le.s32.totalorder 1, %s12
      %p77 = scmp.lt.s32.totalorder %s12, 5
      %p78 = pnand %p76, %p77
      %p79 = pneg %p78
      // Predicated region
      $region9: #{custom-call.5} parent=5 // pred_check
        _
      $region10: #{custom-call.5} parent=5 // pred_check_branch
        %81 = sbr.rel (%p78) target = $region12
      $region11: #{custom-call.5} parent=5 // pred_region
        %s82 = ssub.s32 %s12, 1
      $region12: #{custom-call.5} parent=5 // pred_fallthru
        _
      %p83 = scmp.lt.s32.totalorder %s12, 4
      // Predicated region
      $region13: #{custom-call.5} parent=5 // pred_check
        %p84 = pneg %p83
      $region14: #{custom-call.5} parent=5 // pred_check_branch
        %86 = sbr.rel (%p84) target = $region16
      $region15: #{custom-call.5} parent=5 // pred_region
        %s87 = sand.u32 %s12, 1
        %s88 = sand.u32 %s12, 1
        %s89 = smul.addr %s88, 128
        %s90 = scalar_lea.vmem [#allocation0], %s89
        %s91 = smul.addr %s12, 128
        %s92 = scalar_lea.vmem %s0, %s91
        // Predicated region
        $region17: #{custom-call.5} parent=15 // pred_check
          _
        $region18: #{custom-call.5} parent=15 // pred_check_branch
          %94 = sbr.rel (0) target = $region20
        $region19: #{custom-call.5} parent=15 // pred_region
          // Predicated region
          $region21: #{custom-call.5} parent=19 // pred_check
            _
          $region22: #{custom-call.5} parent=19 // pred_check_branch
            %96 = sbr.rel (0) target = $region24
          $region23: #{custom-call.5} parent=19 // pred_region
            loop: start=0, step=1, limit=1
            $region25: #{custom-call.5} parent=23 // loop_pre_header
              _
            $region26: #{custom-call.5} parent=23 // loop_header
              %s98 = sphi 0, %s102
              %p99 = scmp.ge.s32.totalorder %s98, 1
              %s103 = sphi %s92, %s92
              %s104 = sphi %s90, %s90
            $region27: #{custom-call.5} parent=23 // loop_header_branch
              %101 = sbr.rel (%p99) target = $region31
            $region28: #{custom-call.5} parent=23 // loop_body
              %v105 = vld [vmem:[%s103] sm:$0xff]
              %106 = vst [vmem:[%s104] sm:$0xff] %v105
              %v107 = vld [vmem:[%s103 + $0x8] sm:$0xff]
              %108 = vst [vmem:[%s104 + $0x8] sm:$0xff] %v107
              %v109 = vld [vmem:[%s103 + $0x10] sm:$0xff]
              %110 = vst [vmem:[%s104 + $0x10] sm:$0xff] %v109
              %v111 = vld [vmem:[%s103 + $0x18] sm:$0xff]
              %112 = vst [vmem:[%s104 + $0x18] sm:$0xff] %v111
              %v113 = vld [vmem:[%s103 + $0x20] sm:$0xff]
              %114 = vst [vmem:[%s104 + $0x20] sm:$0xff] %v113
              %v115 = vld [vmem:[%s103 + $0x28] sm:$0xff]
              %116 = vst [vmem:[%s104 + $0x28] sm:$0xff] %v115
              %v117 = vld [vmem:[%s103 + $0x30] sm:$0xff]
              %118 = vst [vmem:[%s104 + $0x30] sm:$0xff] %v117
              %v119 = vld [vmem:[%s103 + $0x38] sm:$0xff]
              %120 = vst [vmem:[%s104 + $0x38] sm:$0xff] %v119
              %v121 = vld [vmem:[%s103 + $0x40] sm:$0xff]
              %122 = vst [vmem:[%s104 + $0x40] sm:$0xff] %v121
              %v123 = vld [vmem:[%s103 + $0x48] sm:$0xff]
              %124 = vst [vmem:[%s104 + $0x48] sm:$0xff] %v123
              %v125 = vld [vmem:[%s103 + $0x50] sm:$0xff]
              %126 = vst [vmem:[%s104 + $0x50] sm:$0xff] %v125
              %v127 = vld [vmem:[%s103 + $0x58] sm:$0xff]
              %128 = vst [vmem:[%s104 + $0x58] sm:$0xff] %v127
              %v129 = vld [vmem:[%s103 + $0x60] sm:$0xff]
              %130 = vst [vmem:[%s104 + $0x60] sm:$0xff] %v129
              %v131 = vld [vmem:[%s103 + $0x68] sm:$0xff]
              %132 = vst [vmem:[%s104 + $0x68] sm:$0xff] %v131
              %v133 = vld [vmem:[%s103 + $0x70] sm:$0xff]
              %134 = vst [vmem:[%s104 + $0x70] sm:$0xff] %v133
              %v135 = vld [vmem:[%s103 + $0x78] sm:$0xff]
              %136 = vst [vmem:[%s104 + $0x78] sm:$0xff] %v135
            $region29: #{custom-call.5} parent=23 // loop_footer
              %s102 = sadd.s32 1, %s98
            $region30: #{custom-call.5} parent=23 // loop_footer_branch
              %97 = sbr.rel target = $region26
            $region31: #{custom-call.5} parent=23 // loop_exit
              _
          $region24: #{custom-call.5} parent=19 // pred_fallthru
            _
          // Predicated region
          $region32: #{custom-call.5} parent=19 // pred_check
            _
          $region33: #{custom-call.5} parent=19 // pred_check_branch
            %138 = sbr.rel target = $region35
          $region34: #{custom-call.5} parent=19 // pred_region
            _
          $region35: #{custom-call.5} parent=19 // pred_fallthru
            _
        $region20: #{custom-call.5} parent=15 // pred_fallthru
          _
        %139 = vnop
      $region16: #{custom-call.5} parent=5 // pred_fallthru
        _
      %p140 = scmp.le.s32.totalorder 1, %s12
      %p141 = scmp.lt.s32.totalorder %s12, 5
      %p142 = pnand %p140, %p141
      %p143 = pneg %p142
      // Predicated region
      $region36: #{custom-call.5} parent=5 // pred_check
        _
      $region37: #{custom-call.5} parent=5 // pred_check_branch
        %145 = sbr.rel (%p142) target = $region39
      $region38: #{custom-call.5} parent=5 // pred_region
        #allocation8 [shape = 's32[128,128]{1,0}', space=vmem, size = 0x10000, scoped, tag = 'scratch for permutations']
        %s146 = ssub.s32 %s12, 1
        %s147 = sand.u32 %s17, 1
        %s148 = sand.u32 %s17, 1
        %s149 = smul.addr %s148, 128
        %s150 = scalar_lea.vmem [#allocation0], %s149
        %s151 = sand.u32 %s17, 1
        %s152 = sand.u32 %s17, 1
        %s153 = smul.addr %s152, 128
        %s154 = scalar_lea.vmem [#allocation0], %s153
        %s155 = sand.u32 %s17, 1
        %s156 = sand.u32 %s17, 1
        %s157 = smul.addr %s156, 128
        %s158 = scalar_lea.vmem [#allocation1], %s157
        %p159 = pneg %p40
        %p160 = pneg %p37
        %s161 = sand.u32 %s27, 1
        %s162 = scalar_lea.sflag [#allocation4], %s161
        %s163 = sand.u32 %s27, 1
        %s164 = smul.addr %s163, 4
        %s165 = scalar_lea.vmem [#allocation3], %s164
        %p166 = pneg %p68
        %p167 = pneg %p65
        %s168 = sand.u32 %s55, 1
        %s169 = scalar_lea.sflag [#allocation7], %s168
        %s170 = sand.u32 %s55, 1
        %s171 = smul.addr %s170, 4
        %s172 = scalar_lea.vmem [#allocation6], %s171
        %s173 = sshrl.u32 %s17, 3
        %s174 = sshrl.u32 %s17, 3
        %v175 = vld [vmem:[%s150] sm:$0xff]
        %176 = vst [vmem:[%s158] sm:$0xff] %v175
        %s177 = scalar_lea.vmem %s158, 8 [#allocation1]
        %s178 = scalar_lea.vmem %s150, 8 [#allocation0]
        %v179 = vld [vmem:[%s178] sm:$0xff]
        %180 = vst [vmem:[%s177] sm:$0xff] %v179
        %s181 = scalar_lea.vmem %s158, 16 [#allocation1]
        %s182 = scalar_lea.vmem %s150, 16 [#allocation0]
        %v183 = vld [vmem:[%s182] sm:$0xff]
        %184 = vst [vmem:[%s181] sm:$0xff] %v183
        %s185 = scalar_lea.vmem %s158, 24 [#allocation1]
        %s186 = scalar_lea.vmem %s150, 24 [#allocation0]
        %v187 = vld [vmem:[%s186] sm:$0xff]
        %188 = vst [vmem:[%s185] sm:$0xff] %v187
        %s189 = scalar_lea.vmem %s158, 32 [#allocation1]
        %s190 = scalar_lea.vmem %s150, 32 [#allocation0]
        %v191 = vld [vmem:[%s190] sm:$0xff]
        %192 = vst [vmem:[%s189] sm:$0xff] %v191
        %s193 = scalar_lea.vmem %s158, 40 [#allocation1]
        %s194 = scalar_lea.vmem %s150, 40 [#allocation0]
        %v195 = vld [vmem:[%s194] sm:$0xff]
        %196 = vst [vmem:[%s193] sm:$0xff] %v195
        %s197 = scalar_lea.vmem %s158, 48 [#allocation1]
        %s198 = scalar_lea.vmem %s150, 48 [#allocation0]
        %v199 = vld [vmem:[%s198] sm:$0xff]
        %200 = vst [vmem:[%s197] sm:$0xff] %v199
        %s201 = scalar_lea.vmem %s158, 56 [#allocation1]
        %s202 = scalar_lea.vmem %s150, 56 [#allocation0]
        %v203 = vld [vmem:[%s202] sm:$0xff]
        %204 = vst [vmem:[%s201] sm:$0xff] %v203
        %s205 = scalar_lea.vmem %s158, 64 [#allocation1]
        %s206 = scalar_lea.vmem %s150, 64 [#allocation0]
        %v207 = vld [vmem:[%s206] sm:$0xff]
        %208 = vst [vmem:[%s205] sm:$0xff] %v207
        %s209 = scalar_lea.vmem %s158, 72 [#allocation1]
        %s210 = scalar_lea.vmem %s150, 72 [#allocation0]
        %v211 = vld [vmem:[%s210] sm:$0xff]
        %212 = vst [vmem:[%s209] sm:$0xff] %v211
        %s213 = scalar_lea.vmem %s158, 80 [#allocation1]
        %s214 = scalar_lea.vmem %s150, 80 [#allocation0]
        %v215 = vld [vmem:[%s214] sm:$0xff]
        %216 = vst [vmem:[%s213] sm:$0xff] %v215
        %s217 = scalar_lea.vmem %s158, 88 [#allocation1]
        %s218 = scalar_lea.vmem %s150, 88 [#allocation0]
        %v219 = vld [vmem:[%s218] sm:$0xff]
        %220 = vst [vmem:[%s217] sm:$0xff] %v219
        %s221 = scalar_lea.vmem %s158, 96 [#allocation1]
        %s222 = scalar_lea.vmem %s150, 96 [#allocation0]
        %v223 = vld [vmem:[%s222] sm:$0xff]
        %224 = vst [vmem:[%s221] sm:$0xff] %v223
        %s225 = scalar_lea.vmem %s158, 104 [#allocation1]
        %s226 = scalar_lea.vmem %s150, 104 [#allocation0]
        %v227 = vld [vmem:[%s226] sm:$0xff]
        %228 = vst [vmem:[%s225] sm:$0xff] %v227
        %s229 = scalar_lea.vmem %s158, 112 [#allocation1]
        %s230 = scalar_lea.vmem %s150, 112 [#allocation0]
        %v231 = vld [vmem:[%s230] sm:$0xff]
        %232 = vst [vmem:[%s229] sm:$0xff] %v231
        %s233 = scalar_lea.vmem %s158, 120 [#allocation1]
        %s234 = scalar_lea.vmem %s150, 120 [#allocation0]
        %v235 = vld [vmem:[%s234] sm:$0xff]
        %236 = vst [vmem:[%s233] sm:$0xff] %v235
        %s237 = sand.u32 %s17, 7
        %s238 = scalar_lea.vmem [#allocation2], %s237
        %s239 = sand.u32 %s17, 7
        %s240 = scalar_lea.vmem [#allocation5], %s239
        %241 = vst [vmem:[%s238] sm:$0x1] 0
        %v242 = vlaneseq
        %v243 = vshrl.u32 %v242, 7
        %v244 = vmov %v243
        loop: start=0, step=1, limit=16
        $region40: #{custom-call.5} parent=38 // loop_pre_header
          _
        $region41: #{custom-call.5} parent=38 // loop_header
          %s246 = sphi 0, %s250
          %p247 = scmp.ge.s32.totalorder %s246, 16
        $region42: #{custom-call.5} parent=38 // loop_header_branch
          %249 = sbr.rel (%p247) target = $region46
        $region43: #{custom-call.5} parent=38 // loop_body
          %s251 = smul.addr %s246, 8
          %s252 = scalar_lea.vmem [#allocation8], %s251
          %s253 = smul.u32 %s246, 8
          %v254 = vstv %s253
          %v255 = vadd.s32 %v244, %v254
          %256 = vst [vmem:[%s252] sm:$0xff] %v255
        $region44: #{custom-call.5} parent=38 // loop_footer
          %s250 = sadd.s32 1, %s246
        $region45: #{custom-call.5} parent=38 // loop_footer_branch
          %245 = sbr.rel target = $region41
        $region46: #{custom-call.5} parent=38 // loop_exit
          _
        loop: start=0, step=1, limit=128
        $region47: #{custom-call.5} parent=38 // loop_pre_header
          _
        $region48: #{custom-call.5} parent=38 // loop_header
          %s258 = sphi 0, %s262
          %p259 = scmp.ge.s32.totalorder %s258, 128
        $region49: #{custom-call.5} parent=38 // loop_header_branch
          %261 = sbr.rel (%p259) target = $region53
        $region50: #{custom-call.5} parent=38 // loop_body
          %v263 = vstv %s258
          %v264 = vlaneseq
          %v265 = vshrl.u32 %v264, 7
          %v266 = vmov %v265
          %v267 = vld [vmem:[%s158] sm:$0xff]
          %v268 = vand.u32 2147483647, %v267
          %v270 = vstv %s258
          %vm271 = vcmp.ge.s32.totalorder %v266, %v270
          %vm272 = vcmp.lt.s32.totalorder %v266, 128
          %vm273 = vmand %vm271, %vm272
          %vm274 = vcmp.lt.f32.partialorder -inf, %v268
          %vm275 = vmand %vm273, %vm274
          %v276 = vsel %vm275, %v266, %v263
          %v277 = vsel %vm275, %v268, -inf
          %s278 = scalar_lea.vmem %s158, 8 [#allocation1]
          %v279 = vld [vmem:[%s278] sm:$0xff]
          %v280 = vand.u32 2147483647, %v279
          %v281 = vadd.s32 %v266, 8
          %v282 = vstv %s258
          %vm283 = vcmp.ge.s32.totalorder %v281, %v282
          %vm284 = vcmp.lt.s32.totalorder %v281, 128
          %vm285 = vmand %vm283, %vm284
          %vm286 = vcmp.lt.f32.partialorder %v277, %v280
          %vm287 = vmand %vm285, %vm286
          %v288 = vsel %vm287, %v281, %v276
          %v289 = vsel %vm287, %v280, %v277
          %s290 = scalar_lea.vmem %s158, 16 [#allocation1]
          %v291 = vld [vmem:[%s290] sm:$0xff]
          %v292 = vand.u32 2147483647, %v291
          %v293 = vadd.s32 %v266, 16
          %v294 = vstv %s258
          %vm295 = vcmp.ge.s32.totalorder %v293, %v294
          %vm296 = vcmp.lt.s32.totalorder %v293, 128
          %vm297 = vmand %vm295, %vm296
          %vm298 = vcmp.lt.f32.partialorder %v289, %v292
          %vm299 = vmand %vm297, %vm298
          %v300 = vsel %vm299, %v293, %v288
          %v301 = vsel %vm299, %v292, %v289
          %s302 = scalar_lea.vmem %s158, 24 [#allocation1]
          %v303 = vld [vmem:[%s302] sm:$0xff]
          %v304 = vand.u32 2147483647, %v303
          %v305 = vadd.s32 %v266, 24
          %v306 = vstv %s258
          %vm307 = vcmp.ge.s32.totalorder %v305, %v306
          %vm308 = vcmp.lt.s32.totalorder %v305, 128
          %vm309 = vmand %vm307, %vm308
          %vm310 = vcmp.lt.f32.partialorder %v301, %v304
          %vm311 = vmand %vm309, %vm310
          %v312 = vsel %vm311, %v305, %v300
          %v313 = vsel %vm311, %v304, %v301
          %s314 = scalar_lea.vmem %s158, 32 [#allocation1]
          %v315 = vld [vmem:[%s314] sm:$0xff]
          %v316 = vand.u32 2147483647, %v315
          %v317 = vadd.s32 %v266, 32
          %v318 = vstv %s258
          %vm319 = vcmp.ge.s32.totalorder %v317, %v318
          %vm320 = vcmp.lt.s32.totalorder %v317, 128
          %vm321 = vmand %vm319, %vm320
          %vm322 = vcmp.lt.f32.partialorder %v313, %v316
          %vm323 = vmand %vm321, %vm322
          %v324 = vsel %vm323, %v317, %v312
          %v325 = vsel %vm323, %v316, %v313
          %s326 = scalar_lea.vmem %s158, 40 [#allocation1]
          %v327 = vld [vmem:[%s326] sm:$0xff]
          %v328 = vand.u32 2147483647, %v327
          %v329 = vadd.s32 %v266, 40
          %v330 = vstv %s258
          %vm331 = vcmp.ge.s32.totalorder %v329, %v330
          %vm332 = vcmp.lt.s32.totalorder %v329, 128
          %vm333 = vmand %vm331, %vm332
          %vm334 = vcmp.lt.f32.partialorder %v325, %v328
          %vm335 = vmand %vm333, %vm334
          %v336 = vsel %vm335, %v329, %v324
          %v337 = vsel %vm335, %v328, %v325
          %s338 = scalar_lea.vmem %s158, 48 [#allocation1]
          %v339 = vld [vmem:[%s338] sm:$0xff]
          %v340 = vand.u32 2147483647, %v339
          %v341 = vadd.s32 %v266, 48
          %v342 = vstv %s258
          %vm343 = vcmp.ge.s32.totalorder %v341, %v342
          %vm344 = vcmp.lt.s32.totalorder %v341, 128
          %vm345 = vmand %vm343, %vm344
          %vm346 = vcmp.lt.f32.partialorder %v337, %v340
          %vm347 = vmand %vm345, %vm346
          %v348 = vsel %vm347, %v341, %v336
          %v349 = vsel %vm347, %v340, %v337
          %s350 = scalar_lea.vmem %s158, 56 [#allocation1]
          %v351 = vld [vmem:[%s350] sm:$0xff]
          %v352 = vand.u32 2147483647, %v351
          %v353 = vadd.s32 %v266, 56
          %v354 = vstv %s258
          %vm355 = vcmp.ge.s32.totalorder %v353, %v354
          %vm356 = vcmp.lt.s32.totalorder %v353, 128
          %vm357 = vmand %vm355, %vm356
          %vm358 = vcmp.lt.f32.partialorder %v349, %v352
          %vm359 = vmand %vm357, %vm358
          %v360 = vsel %vm359, %v353, %v348
          %v361 = vsel %vm359, %v352, %v349
          %s362 = scalar_lea.vmem %s158, 64 [#allocation1]
          %v363 = vld [vmem:[%s362] sm:$0xff]
          %v364 = vand.u32 2147483647, %v363
          %v365 = vadd.s32 %v266, 64
          %v366 = vstv %s258
          %vm367 = vcmp.ge.s32.totalorder %v365, %v366
          %vm368 = vcmp.lt.s32.totalorder %v365, 128
          %vm369 = vmand %vm367, %vm368
          %vm370 = vcmp.lt.f32.partialorder %v361, %v364
          %vm371 = vmand %vm369, %vm370
          %v372 = vsel %vm371, %v365, %v360
          %v373 = vsel %vm371, %v364, %v361
          %s374 = scalar_lea.vmem %s158, 72 [#allocation1]
          %v375 = vld [vmem:[%s374] sm:$0xff]
          %v376 = vand.u32 2147483647, %v375
          %v377 = vadd.s32 %v266, 72
          %v378 = vstv %s258
          %vm379 = vcmp.ge.s32.totalorder %v377, %v378
          %vm380 = vcmp.lt.s32.totalorder %v377, 128
          %vm381 = vmand %vm379, %vm380
          %vm382 = vcmp.lt.f32.partialorder %v373, %v376
          %vm383 = vmand %vm381, %vm382
          %v384 = vsel %vm383, %v377, %v372
          %v385 = vsel %vm383, %v376, %v373
          %s386 = scalar_lea.vmem %s158, 80 [#allocation1]
          %v387 = vld [vmem:[%s386] sm:$0xff]
          %v388 = vand.u32 2147483647, %v387
          %v389 = vadd.s32 %v266, 80
          %v390 = vstv %s258
          %vm391 = vcmp.ge.s32.totalorder %v389, %v390
          %vm392 = vcmp.lt.s32.totalorder %v389, 128
          %vm393 = vmand %vm391, %vm392
          %vm394 = vcmp.lt.f32.partialorder %v385, %v388
          %vm395 = vmand %vm393, %vm394
          %v396 = vsel %vm395, %v389, %v384
          %v397 = vsel %vm395, %v388, %v385
          %s398 = scalar_lea.vmem %s158, 88 [#allocation1]
          %v399 = vld [vmem:[%s398] sm:$0xff]
          %v400 = vand.u32 2147483647, %v399
          %v401 = vadd.s32 %v266, 88
          %v402 = vstv %s258
          %vm403 = vcmp.ge.s32.totalorder %v401, %v402
          %vm404 = vcmp.lt.s32.totalorder %v401, 128
          %vm405 = vmand %vm403, %vm404
          %vm406 = vcmp.lt.f32.partialorder %v397, %v400
          %vm407 = vmand %vm405, %vm406
          %v408 = vsel %vm407, %v401, %v396
          %v409 = vsel %vm407, %v400, %v397
          %s410 = scalar_lea.vmem %s158, 96 [#allocation1]
          %v411 = vld [vmem:[%s410] sm:$0xff]
          %v412 = vand.u32 2147483647, %v411
          %v413 = vadd.s32 %v266, 96
          %v414 = vstv %s258
          %vm415 = vcmp.ge.s32.totalorder %v413, %v414
          %vm416 = vcmp.lt.s32.totalorder %v413, 128
          %vm417 = vmand %vm415, %vm416
          %vm418 = vcmp.lt.f32.partialorder %v409, %v412
          %vm419 = vmand %vm417, %vm418
          %v420 = vsel %vm419, %v413, %v408
          %v421 = vsel %vm419, %v412, %v409
          %s422 = scalar_lea.vmem %s158, 104 [#allocation1]
          %v423 = vld [vmem:[%s422] sm:$0xff]
          %v424 = vand.u32 2147483647, %v423
          %v425 = vadd.s32 %v266, 104
          %v426 = vstv %s258
          %vm427 = vcmp.ge.s32.totalorder %v425, %v426
          %vm428 = vcmp.lt.s32.totalorder %v425, 128
          %vm429 = vmand %vm427, %vm428
          %vm430 = vcmp.lt.f32.partialorder %v421, %v424
          %vm431 = vmand %vm429, %vm430
          %v432 = vsel %vm431, %v425, %v420
          %v433 = vsel %vm431, %v424, %v421
          %s434 = scalar_lea.vmem %s158, 112 [#allocation1]
          %v435 = vld [vmem:[%s434] sm:$0xff]
          %v436 = vand.u32 2147483647, %v435
          %v437 = vadd.s32 %v266, 112
          %v438 = vstv %s258
          %vm439 = vcmp.ge.s32.totalorder %v437, %v438
          %vm440 = vcmp.lt.s32.totalorder %v437, 128
          %vm441 = vmand %vm439, %vm440
          %vm442 = vcmp.lt.f32.partialorder %v433, %v436
          %vm443 = vmand %vm441, %vm442
          %v444 = vsel %vm443, %v437, %v432
          %v445 = vsel %vm443, %v436, %v433
          %s446 = scalar_lea.vmem %s158, 120 [#allocation1]
          %v447 = vld [vmem:[%s446] sm:$0xff]
          %v448 = vand.u32 2147483647, %v447
          %v449 = vadd.s32 %v266, 120
          %v450 = vstv %s258
          %vm451 = vcmp.ge.s32.totalorder %v449, %v450
          %vm452 = vcmp.lt.s32.totalorder %v449, 128
          %vm453 = vmand %vm451, %vm452
          %vm454 = vcmp.lt.f32.partialorder %v445, %v448
          %vm455 = vmand %vm453, %vm454
          %v456 = vsel %vm455, %v449, %v444
          %v457 = vsel %vm455, %v448, %v445
          %v458 = vrot.slane %v457, 1
          %v459 = vrot.slane %v456, 1
          %vm460 = vcmp.ge.f32.partialorder %v458, %v457
          %v461 = vsel %vm460, %v458, %v457
          %v462 = vsel %vm460, %v459, %v456
          %v463 = vrot.slane %v458, 1
          %v464 = vrot.slane %v459, 1
          %vm465 = vcmp.ge.f32.partialorder %v463, %v461
          %v466 = vsel %vm465, %v463, %v461
          %v467 = vsel %vm465, %v464, %v462
          %v468 = vrot.slane %v463, 1
          %v469 = vrot.slane %v464, 1
          %vm470 = vcmp.ge.f32.partialorder %v468, %v466
          %v471 = vsel %vm470, %v468, %v466
          %v472 = vsel %vm470, %v469, %v467
          %v473 = vrot.slane %v468, 1
          %v474 = vrot.slane %v469, 1
          %vm475 = vcmp.ge.f32.partialorder %v473, %v471
          %v476 = vsel %vm475, %v473, %v471
          %v477 = vsel %vm475, %v474, %v472
          %v478 = vrot.slane %v473, 1
          %v479 = vrot.slane %v474, 1
          %vm480 = vcmp.ge.f32.partialorder %v478, %v476
          %v481 = vsel %vm480, %v478, %v476
          %v482 = vsel %vm480, %v479, %v477
          %v483 = vrot.slane %v478, 1
          %v484 = vrot.slane %v479, 1
          %vm485 = vcmp.ge.f32.partialorder %v483, %v481
          %v486 = vsel %vm485, %v483, %v481
          %v487 = vsel %vm485, %v484, %v482
          %v488 = vrot.slane %v483, 1
          %v489 = vrot.slane %v484, 1
          %vm490 = vcmp.ge.f32.partialorder %v488, %v486
          %v491 = vsel %vm490, %v488, %v486
          %v492 = vsel %vm490, %v489, %v487
          %s493 = ssub.s32 128, %s258
          %494 = vrot.lane.b32.xlu0 %v492, %s493
          %v495 = vpop.permute.xlu0 %494
          %s496 = vtos %v495
          %v497 = vstv %s258
          %v498 = vlaneseq
          %v499 = vand.u32 %v498, 127
          %vm500 = vcmp.eq.s32.totalorder %v499, %v497
          %v501 = vstv %s496
          %v502 = vld [vmem:[%s238] ss:$0 sm:$0xff]
          %v503 = vsel %vm500, %v501, %v502
          %504 = vst [vmem:[%s238] sm:$0x1] %v503
          %s505 = scalar_lea.vmem %s158, %s258 [#allocation1]
          %s506 = scalar_lea.vmem %s158, %s496 [#allocation1]
          %v507 = vld [vmem:[%s505] ss:$0 sm:$0xff]
          %v508 = vld [vmem:[%s506] ss:$0 sm:$0xff]
          %509 = vst [vmem:[%s506] sm:$0x1] %v507
          %510 = vst [vmem:[%s505] sm:$0x1] %v508
          %s511 = scalar_lea.vmem [#allocation8], %s258
          %s512 = scalar_lea.vmem [#allocation8], %s496
          %v513 = vld [vmem:[%s511] ss:$0 sm:$0xff]
          %v514 = vld [vmem:[%s512] ss:$0 sm:$0xff]
          %515 = vst [vmem:[%s512] sm:$0x1] %v513
          %516 = vst [vmem:[%s511] sm:$0x1] %v514
          %vm517 = vcmp.ne.f32.partialorder %v508, 0.0
          %vm518 = vmand %vm500, %vm517
          %v519 = vsel %vm518, %v508, 1.0
          %v520 = vlaneseq
          %v521 = vand.u32 %v520, 127
          %v522 = vstv %s258
          %vm523 = vcmp.gt.s32.totalorder %v521, %v522
          %v524 = vsel %vm523, %v508, 0.0
          %v525 = vlaneseq
          %v526 = vshrl.u32 %v525, 7
          %v527 = vmov %v526
          %v528 = vld [vmem:[%s158] sm:$0xff]
          %v530 = vstv %s258
          %vm531 = vcmp.gt.s32.totalorder %v527, %v530
          %v532 = vsel %vm531, %v519, 1.0
          %v533 = vrcp.pop %v532
          %v534 = vmul.f32 %v528, %v533
          %vm535 = vmand %vm531, %vm500
          %v536 = vsel %vm535, %v534, 0.0
          %537 = vadd.xlane.f32.xlu0 %v536
          %v538 = vpop.xlane.xlu0 %537
          %v539 = vmul.f32 %v538, %v524
          %v540 = vsub.f32 %v534, %v539
          %541 = vst [vmem:[%s158] sm:$0xff] %v540
          %s542 = scalar_lea.vmem %s158, 8 [#allocation1]
          %v543 = vld [vmem:[%s542] sm:$0xff]
          %v544 = vadd.s32 %v527, 8
          %v545 = vstv %s258
          %vm546 = vcmp.gt.s32.totalorder %v544, %v545
          %v547 = vsel %vm546, %v519, 1.0
          %v548 = vrcp.pop %v547
          %v549 = vmul.f32 %v543, %v548
          %vm550 = vmand %vm546, %vm500
          %v551 = vsel %vm550, %v549, 0.0
          %552 = vadd.xlane.f32.xlu0 %v551
          %v553 = vpop.xlane.xlu0 %552
          %v554 = vmul.f32 %v553, %v524
          %v555 = vsub.f32 %v549, %v554
          %556 = vst [vmem:[%s542] sm:$0xff] %v555
          %s557 = scalar_lea.vmem %s158, 16 [#allocation1]
          %v558 = vld [vmem:[%s557] sm:$0xff]
          %v559 = vadd.s32 %v527, 16
          %v560 = vstv %s258
          %vm561 = vcmp.gt.s32.totalorder %v559, %v560
          %v562 = vsel %vm561, %v519, 1.0
          %v563 = vrcp.pop %v562
          %v564 = vmul.f32 %v558, %v563
          %vm565 = vmand %vm561, %vm500
          %v566 = vsel %vm565, %v564, 0.0
          %567 = vadd.xlane.f32.xlu0 %v566
          %v568 = vpop.xlane.xlu0 %567
          %v569 = vmul.f32 %v568, %v524
          %v570 = vsub.f32 %v564, %v569
          %571 = vst [vmem:[%s557] sm:$0xff] %v570
          %s572 = scalar_lea.vmem %s158, 24 [#allocation1]
          %v573 = vld [vmem:[%s572] sm:$0xff]
          %v574 = vadd.s32 %v527, 24
          %v575 = vstv %s258
          %vm576 = vcmp.gt.s32.totalorder %v574, %v575
          %v577 = vsel %vm576, %v519, 1.0
          %v578 = vrcp.pop %v577
          %v579 = vmul.f32 %v573, %v578
          %vm580 = vmand %vm576, %vm500
          %v581 = vsel %vm580, %v579, 0.0
          %582 = vadd.xlane.f32.xlu0 %v581
          %v583 = vpop.xlane.xlu0 %582
          %v584 = vmul.f32 %v583, %v524
          %v585 = vsub.f32 %v579, %v584
          %586 = vst [vmem:[%s572] sm:$0xff] %v585
          %s587 = scalar_lea.vmem %s158, 32 [#allocation1]
          %v588 = vld [vmem:[%s587] sm:$0xff]
          %v589 = vadd.s32 %v527, 32
          %v590 = vstv %s258
          %vm591 = vcmp.gt.s32.totalorder %v589, %v590
          %v592 = vsel %vm591, %v519, 1.0
          %v593 = vrcp.pop %v592
          %v594 = vmul.f32 %v588, %v593
          %vm595 = vmand %vm591, %vm500
          %v596 = vsel %vm595, %v594, 0.0
          %597 = vadd.xlane.f32.xlu0 %v596
          %v598 = vpop.xlane.xlu0 %597
          %v599 = vmul.f32 %v598, %v524
          %v600 = vsub.f32 %v594, %v599
          %601 = vst [vmem:[%s587] sm:$0xff] %v600
          %s602 = scalar_lea.vmem %s158, 40 [#allocation1]
          %v603 = vld [vmem:[%s602] sm:$0xff]
          %v604 = vadd.s32 %v527, 40
          %v605 = vstv %s258
          %vm606 = vcmp.gt.s32.totalorder %v604, %v605
          %v607 = vsel %vm606, %v519, 1.0
          %v608 = vrcp.pop %v607
          %v609 = vmul.f32 %v603, %v608
          %vm610 = vmand %vm606, %vm500
          %v611 = vsel %vm610, %v609, 0.0
          %612 = vadd.xlane.f32.xlu0 %v611
          %v613 = vpop.xlane.xlu0 %612
          %v614 = vmul.f32 %v613, %v524
          %v615 = vsub.f32 %v609, %v614
          %616 = vst [vmem:[%s602] sm:$0xff] %v615
          %s617 = scalar_lea.vmem %s158, 48 [#allocation1]
          %v618 = vld [vmem:[%s617] sm:$0xff]
          %v619 = vadd.s32 %v527, 48
          %v620 = vstv %s258
          %vm621 = vcmp.gt.s32.totalorder %v619, %v620
          %v622 = vsel %vm621, %v519, 1.0
          %v623 = vrcp.pop %v622
          %v624 = vmul.f32 %v618, %v623
          %vm625 = vmand %vm621, %vm500
          %v626 = vsel %vm625, %v624, 0.0
          %627 = vadd.xlane.f32.xlu0 %v626
          %v628 = vpop.xlane.xlu0 %627
          %v629 = vmul.f32 %v628, %v524
          %v630 = vsub.f32 %v624, %v629
          %631 = vst [vmem:[%s617] sm:$0xff] %v630
          %s632 = scalar_lea.vmem %s158, 56 [#allocation1]
          %v633 = vld [vmem:[%s632] sm:$0xff]
          %v634 = vadd.s32 %v527, 56
          %v635 = vstv %s258
          %vm636 = vcmp.gt.s32.totalorder %v634, %v635
          %v637 = vsel %vm636, %v519, 1.0
          %v638 = vrcp.pop %v637
          %v639 = vmul.f32 %v633, %v638
          %vm640 = vmand %vm636, %vm500
          %v641 = vsel %vm640, %v639, 0.0
          %642 = vadd.xlane.f32.xlu0 %v641
          %v643 = vpop.xlane.xlu0 %642
          %v644 = vmul.f32 %v643, %v524
          %v645 = vsub.f32 %v639, %v644
          %646 = vst [vmem:[%s632] sm:$0xff] %v645
          %s647 = scalar_lea.vmem %s158, 64 [#allocation1]
          %v648 = vld [vmem:[%s647] sm:$0xff]
          %v649 = vadd.s32 %v527, 64
          %v650 = vstv %s258
          %vm651 = vcmp.gt.s32.totalorder %v649, %v650
          %v652 = vsel %vm651, %v519, 1.0
          %v653 = vrcp.pop %v652
          %v654 = vmul.f32 %v648, %v653
          %vm655 = vmand %vm651, %vm500
          %v656 = vsel %vm655, %v654, 0.0
          %657 = vadd.xlane.f32.xlu0 %v656
          %v658 = vpop.xlane.xlu0 %657
          %v659 = vmul.f32 %v658, %v524
          %v660 = vsub.f32 %v654, %v659
          %661 = vst [vmem:[%s647] sm:$0xff] %v660
          %s662 = scalar_lea.vmem %s158, 72 [#allocation1]
          %v663 = vld [vmem:[%s662] sm:$0xff]
          %v664 = vadd.s32 %v527, 72
          %v665 = vstv %s258
          %vm666 = vcmp.gt.s32.totalorder %v664, %v665
          %v667 = vsel %vm666, %v519, 1.0
          %v668 = vrcp.pop %v667
          %v669 = vmul.f32 %v663, %v668
          %vm670 = vmand %vm666, %vm500
          %v671 = vsel %vm670, %v669, 0.0
          %672 = vadd.xlane.f32.xlu0 %v671
          %v673 = vpop.xlane.xlu0 %672
          %v674 = vmul.f32 %v673, %v524
          %v675 = vsub.f32 %v669, %v674
          %676 = vst [vmem:[%s662] sm:$0xff] %v675
          %s677 = scalar_lea.vmem %s158, 80 [#allocation1]
          %v678 = vld [vmem:[%s677] sm:$0xff]
          %v679 = vadd.s32 %v527, 80
          %v680 = vstv %s258
          %vm681 = vcmp.gt.s32.totalorder %v679, %v680
          %v682 = vsel %vm681, %v519, 1.0
          %v683 = vrcp.pop %v682
          %v684 = vmul.f32 %v678, %v683
          %vm685 = vmand %vm681, %vm500
          %v686 = vsel %vm685, %v684, 0.0
          %687 = vadd.xlane.f32.xlu0 %v686
          %v688 = vpop.xlane.xlu0 %687
          %v689 = vmul.f32 %v688, %v524
          %v690 = vsub.f32 %v684, %v689
          %691 = vst [vmem:[%s677] sm:$0xff] %v690
          %s692 = scalar_lea.vmem %s158, 88 [#allocation1]
          %v693 = vld [vmem:[%s692] sm:$0xff]
          %v694 = vadd.s32 %v527, 88
          %v695 = vstv %s258
          %vm696 = vcmp.gt.s32.totalorder %v694, %v695
          %v697 = vsel %vm696, %v519, 1.0
          %v698 = vrcp.pop %v697
          %v699 = vmul.f32 %v693, %v698
          %vm700 = vmand %vm696, %vm500
          %v701 = vsel %vm700, %v699, 0.0
          %702 = vadd.xlane.f32.xlu0 %v701
          %v703 = vpop.xlane.xlu0 %702
          %v704 = vmul.f32 %v703, %v524
          %v705 = vsub.f32 %v699, %v704
          %706 = vst [vmem:[%s692] sm:$0xff] %v705
          %s707 = scalar_lea.vmem %s158, 96 [#allocation1]
          %v708 = vld [vmem:[%s707] sm:$0xff]
          %v709 = vadd.s32 %v527, 96
          %v710 = vstv %s258
          %vm711 = vcmp.gt.s32.totalorder %v709, %v710
          %v712 = vsel %vm711, %v519, 1.0
          %v713 = vrcp.pop %v712
          %v714 = vmul.f32 %v708, %v713
          %vm715 = vmand %vm711, %vm500
          %v716 = vsel %vm715, %v714, 0.0
          %717 = vadd.xlane.f32.xlu0 %v716
          %v718 = vpop.xlane.xlu0 %717
          %v719 = vmul.f32 %v718, %v524
          %v720 = vsub.f32 %v714, %v719
          %721 = vst [vmem:[%s707] sm:$0xff] %v720
          %s722 = scalar_lea.vmem %s158, 104 [#allocation1]
          %v723 = vld [vmem:[%s722] sm:$0xff]
          %v724 = vadd.s32 %v527, 104
          %v725 = vstv %s258
          %vm726 = vcmp.gt.s32.totalorder %v724, %v725
          %v727 = vsel %vm726, %v519, 1.0
          %v728 = vrcp.pop %v727
          %v729 = vmul.f32 %v723, %v728
          %vm730 = vmand %vm726, %vm500
          %v731 = vsel %vm730, %v729, 0.0
          %732 = vadd.xlane.f32.xlu0 %v731
          %v733 = vpop.xlane.xlu0 %732
          %v734 = vmul.f32 %v733, %v524
          %v735 = vsub.f32 %v729, %v734
          %736 = vst [vmem:[%s722] sm:$0xff] %v735
          %s737 = scalar_lea.vmem %s158, 112 [#allocation1]
          %v738 = vld [vmem:[%s737] sm:$0xff]
          %v739 = vadd.s32 %v527, 112
          %v740 = vstv %s258
          %vm741 = vcmp.gt.s32.totalorder %v739, %v740
          %v742 = vsel %vm741, %v519, 1.0
          %v743 = vrcp.pop %v742
          %v744 = vmul.f32 %v738, %v743
          %vm745 = vmand %vm741, %vm500
          %v746 = vsel %vm745, %v744, 0.0
          %747 = vadd.xlane.f32.xlu0 %v746
          %v748 = vpop.xlane.xlu0 %747
          %v749 = vmul.f32 %v748, %v524
          %v750 = vsub.f32 %v744, %v749
          %751 = vst [vmem:[%s737] sm:$0xff] %v750
          %s752 = scalar_lea.vmem %s158, 120 [#allocation1]
          %v753 = vld [vmem:[%s752] sm:$0xff]
          %v754 = vadd.s32 %v527, 120
          %v755 = vstv %s258
          %vm756 = vcmp.gt.s32.totalorder %v754, %v755
          %v757 = vsel %vm756, %v519, 1.0
          %v758 = vrcp.pop %v757
          %v759 = vmul.f32 %v753, %v758
          %vm760 = vmand %vm756, %vm500
          %v761 = vsel %vm760, %v759, 0.0
          %762 = vadd.xlane.f32.xlu0 %v761
          %v763 = vpop.xlane.xlu0 %762
          %v764 = vmul.f32 %v763, %v524
          %v765 = vsub.f32 %v759, %v764
          %766 = vst [vmem:[%s752] sm:$0xff] %v765
        $region51: #{custom-call.5} parent=38 // loop_footer
          %s262 = sadd.s32 1, %s258
        $region52: #{custom-call.5} parent=38 // loop_footer_branch
          %257 = sbr.rel target = $region48
        $region53: #{custom-call.5} parent=38 // loop_exit
          _
        %v767 = vld [vmem:[#allocation8] sm:$0xff]
        %s768 = scalar_lea.vmem [#allocation8], 8
        %v769 = vld [vmem:[%s768] sm:$0xff]
        %s770 = scalar_lea.vmem [#allocation8], 16
        %v771 = vld [vmem:[%s770] sm:$0xff]
        %s772 = scalar_lea.vmem [#allocation8], 24
        %v773 = vld [vmem:[%s772] sm:$0xff]
        %s774 = scalar_lea.vmem [#allocation8], 32
        %v775 = vld [vmem:[%s774] sm:$0xff]
        %s776 = scalar_lea.vmem [#allocation8], 40
        %v777 = vld [vmem:[%s776] sm:$0xff]
        %s778 = scalar_lea.vmem [#allocation8], 48
        %v779 = vld [vmem:[%s778] sm:$0xff]
        %s780 = scalar_lea.vmem [#allocation8], 56
        %v781 = vld [vmem:[%s780] sm:$0xff]
        %s782 = scalar_lea.vmem [#allocation8], 64
        %v783 = vld [vmem:[%s782] sm:$0xff]
        %s784 = scalar_lea.vmem [#allocation8], 72
        %v785 = vld [vmem:[%s784] sm:$0xff]
        %s786 = scalar_lea.vmem [#allocation8], 80
        %v787 = vld [vmem:[%s786] sm:$0xff]
        %s788 = scalar_lea.vmem [#allocation8], 88
        %v789 = vld [vmem:[%s788] sm:$0xff]
        %s790 = scalar_lea.vmem [#allocation8], 96
        %v791 = vld [vmem:[%s790] sm:$0xff]
        %s792 = scalar_lea.vmem [#allocation8], 104
        %v793 = vld [vmem:[%s792] sm:$0xff]
        %s794 = scalar_lea.vmem [#allocation8], 112
        %v795 = vld [vmem:[%s794] sm:$0xff]
        %s796 = scalar_lea.vmem [#allocation8], 120
        %v797 = vld [vmem:[%s796] sm:$0xff]
        %798 = vxpose.xlu0.b32.start [1/16] %v767, 128
        %799 = vxpose.xlu0.b32.cont [2/16] %v769, 128
        %800 = vxpose.xlu0.b32.cont [3/16] %v771, 128
        %801 = vxpose.xlu0.b32.cont [4/16] %v773, 128
        %802 = vxpose.xlu0.b32.cont [5/16] %v775, 128
        %803 = vxpose.xlu0.b32.cont [6/16] %v777, 128
        %804 = vxpose.xlu0.b32.cont [7/16] %v779, 128
        %805 = vxpose.xlu0.b32.cont [8/16] %v781, 128
        %806 = vxpose.xlu0.b32.cont [9/16] %v783, 128
        %807 = vxpose.xlu0.b32.cont [10/16] %v785, 128
        %808 = vxpose.xlu0.b32.cont [11/16] %v787, 128
        %809 = vxpose.xlu0.b32.cont [12/16] %v789, 128
        %810 = vxpose.xlu0.b32.cont [13/16] %v791, 128
        %811 = vxpose.xlu0.b32.cont [14/16] %v793, 128
        %812 = vxpose.xlu0.b32.cont [15/16] %v795, 128
        %813 = vxpose.xlu0.b32.end [16/16] %v797, 128
        %v814 = vpop.trf.xlu0
        %v815 = vpop.trf.xlu0
        %v816 = vpop.trf.xlu0
        %v817 = vpop.trf.xlu0
        %v818 = vpop.trf.xlu0
        %v819 = vpop.trf.xlu0
        %v820 = vpop.trf.xlu0
        %v821 = vpop.trf.xlu0
        %v822 = vpop.trf.xlu0
        %v823 = vpop.trf.xlu0
        %v824 = vpop.trf.xlu0
        %v825 = vpop.trf.xlu0
        %v826 = vpop.trf.xlu0
        %v827 = vpop.trf.xlu0
        %v828 = vpop.trf.xlu0
        %v829 = vpop.trf.xlu0
        %830 = vst [vmem:[%s240] sm:$0x1] %v814
        %s832 = sshllo.u32 0, 4
        %v834 = vld [vmem:[#allocation2] sm:%s832]
        %s835 = sshllo.u32 0, 4
        %836 = vst [vmem:[%s165] sm:%s835] %v834
        %s838 = sshllo.u32 0, 4
        %v840 = vld [vmem:[#allocation5] sm:%s838]
        %s841 = sshllo.u32 0, 4
        %842 = vst [vmem:[%s172] sm:%s841] %v840
        %s843 = sand.u32 %s17, 1
        %s844 = sand.u32 %s17, 1
        %s845 = smul.addr %s844, 128
        %s846 = scalar_lea.vmem [#allocation1], %s845
        %s847 = sand.u32 %s27, 1
        %s848 = scalar_lea.sflag [#allocation4], %s847
        %s849 = sand.u32 %s27, 1
        %s850 = smul.addr %s849, 4
        %s851 = scalar_lea.vmem [#allocation3], %s850
        %s852 = sand.u32 %s55, 1
        %s853 = scalar_lea.sflag [#allocation7], %s852
        %s854 = sand.u32 %s55, 1
        %s855 = smul.addr %s854, 4
        %s856 = scalar_lea.vmem [#allocation6], %s855
        %s857 = smul.addr %s17, 128
        %s858 = scalar_lea.vmem %s1, %s857
        // Predicated region
        $region54: #{custom-call.5} parent=38 // pred_check
          _
        $region55: #{custom-call.5} parent=38 // pred_check_branch
          %860 = sbr.rel (0) target = $region57
        $region56: #{custom-call.5} parent=38 // pred_region
          // Predicated region
          $region58: #{custom-call.5} parent=56 // pred_check
            _
          $region59: #{custom-call.5} parent=56 // pred_check_branch
            %862 = sbr.rel (0) target = $region61
          $region60: #{custom-call.5} parent=56 // pred_region
            loop: start=0, step=1, limit=1
            $region62: #{custom-call.5} parent=60 // loop_pre_header
              _
            $region63: #{custom-call.5} parent=60 // loop_header
              %s864 = sphi 0, %s868
              %p865 = scmp.ge.s32.totalorder %s864, 1
              %s869 = sphi %s846, %s846
              %s870 = sphi %s858, %s858
            $region64: #{custom-call.5} parent=60 // loop_header_branch
              %867 = sbr.rel (%p865) target = $region68
            $region65: #{custom-call.5} parent=60 // loop_body
              %v871 = vld [vmem:[%s869] sm:$0xff]
              %872 = vst [vmem:[%s870] sm:$0xff] %v871
              %v873 = vld [vmem:[%s869 + $0x8] sm:$0xff]
              %874 = vst [vmem:[%s870 + $0x8] sm:$0xff] %v873
              %v875 = vld [vmem:[%s869 + $0x10] sm:$0xff]
              %876 = vst [vmem:[%s870 + $0x10] sm:$0xff] %v875
              %v877 = vld [vmem:[%s869 + $0x18] sm:$0xff]
              %878 = vst [vmem:[%s870 + $0x18] sm:$0xff] %v877
              %v879 = vld [vmem:[%s869 + $0x20] sm:$0xff]
              %880 = vst [vmem:[%s870 + $0x20] sm:$0xff] %v879
              %v881 = vld [vmem:[%s869 + $0x28] sm:$0xff]
              %882 = vst [vmem:[%s870 + $0x28] sm:$0xff] %v881
              %v883 = vld [vmem:[%s869 + $0x30] sm:$0xff]
              %884 = vst [vmem:[%s870 + $0x30] sm:$0xff] %v883
              %v885 = vld [vmem:[%s869 + $0x38] sm:$0xff]
              %886 = vst [vmem:[%s870 + $0x38] sm:$0xff] %v885
              %v887 = vld [vmem:[%s869 + $0x40] sm:$0xff]
              %888 = vst [vmem:[%s870 + $0x40] sm:$0xff] %v887
              %v889 = vld [vmem:[%s869 + $0x48] sm:$0xff]
              %890 = vst [vmem:[%s870 + $0x48] sm:$0xff] %v889
              %v891 = vld [vmem:[%s869 + $0x50] sm:$0xff]
              %892 = vst [vmem:[%s870 + $0x50] sm:$0xff] %v891
              %v893 = vld [vmem:[%s869 + $0x58] sm:$0xff]
              %894 = vst [vmem:[%s870 + $0x58] sm:$0xff] %v893
              %v895 = vld [vmem:[%s869 + $0x60] sm:$0xff]
              %896 = vst [vmem:[%s870 + $0x60] sm:$0xff] %v895
              %v897 = vld [vmem:[%s869 + $0x68] sm:$0xff]
              %898 = vst [vmem:[%s870 + $0x68] sm:$0xff] %v897
              %v899 = vld [vmem:[%s869 + $0x70] sm:$0xff]
              %900 = vst [vmem:[%s870 + $0x70] sm:$0xff] %v899
              %v901 = vld [vmem:[%s869 + $0x78] sm:$0xff]
              %902 = vst [vmem:[%s870 + $0x78] sm:$0xff] %v901
            $region66: #{custom-call.5} parent=60 // loop_footer
              %s868 = sadd.s32 1, %s864
            $region67: #{custom-call.5} parent=60 // loop_footer_branch
              %863 = sbr.rel target = $region63
            $region68: #{custom-call.5} parent=60 // loop_exit
              _
          $region61: #{custom-call.5} parent=56 // pred_fallthru
            _
          // Predicated region
          $region69: #{custom-call.5} parent=56 // pred_check
            _
          $region70: #{custom-call.5} parent=56 // pred_check_branch
            %904 = sbr.rel target = $region72
          $region71: #{custom-call.5} parent=56 // pred_region
            _
          $region72: #{custom-call.5} parent=56 // pred_fallthru
            _
        $region57: #{custom-call.5} parent=38 // pred_fallthru
          _
        %905 = vnop
        // Predicated region
        $region73: #{custom-call.5} parent=38 // pred_check
          %p906 = pneg %p37
        $region74: #{custom-call.5} parent=38 // pred_check_branch
          %908 = sbr.rel (%p906) target = $region76
        $region75: #{custom-call.5} parent=38 // pred_region
          %s909 = sshrl.u32 %s17, 3
          %s911 = ssub.s32 64, 64
          %912 = vsyncadd %s848, %s911
          %s913 = smul.addr %s909, 64
          %s914 = scalar_lea.hbm %s2, %s913
          %s916 = sshll.u32 %s851, 4
          %s917 = int_to_ptr.vmem [resolvable:$true] %s916
          %919 = dma.vmem_to_hbm [thread:$0]  %s917, 64, %s914, %s848
        $region76: #{custom-call.5} parent=38 // pred_fallthru
          _
        // Predicated region
        $region77: #{custom-call.5} parent=38 // pred_check
          %p920 = pneg %p65
        $region78: #{custom-call.5} parent=38 // pred_check_branch
          %922 = sbr.rel (%p920) target = $region80
        $region79: #{custom-call.5} parent=38 // pred_region
          %s923 = sshrl.u32 %s17, 3
          %s925 = ssub.s32 64, 64
          %926 = vsyncadd %s853, %s925
          %s927 = smul.addr %s923, 64
          %s928 = scalar_lea.hbm %s3, %s927
          %s930 = sshll.u32 %s856, 4
          %s931 = int_to_ptr.vmem [resolvable:$true] %s930
          %933 = dma.vmem_to_hbm [thread:$0]  %s931, 64, %s928, %s853
        $region80: #{custom-call.5} parent=38 // pred_fallthru
          _
      $region39: #{custom-call.5} parent=5 // pred_fallthru
        _
      %p934 = scmp.le.s32.totalorder 2, %s12
      // Predicated region
      $region81: #{custom-call.5} parent=5 // pred_check
        %p935 = pneg %p934
      $region82: #{custom-call.5} parent=5 // pred_check_branch
        %937 = sbr.rel (%p935) target = $region84
      $region83: #{custom-call.5} parent=5 // pred_region
        %s938 = ssub.s32 %s12, 2
        %s939 = sand.u32 %s18, 1
        %s940 = sand.u32 %s18, 1
        %s941 = smul.addr %s940, 128
        %s942 = scalar_lea.vmem [#allocation1], %s941
        // Predicated region
        $region85: #{custom-call.5} parent=83 // pred_check
          %p943 = pneg %p43
        $region86: #{custom-call.5} parent=83 // pred_check_branch
          %945 = sbr.rel (%p943) target = $region88
        $region87: #{custom-call.5} parent=83 // pred_region
          %s946 = sand.u32 %s28, 1
          %s947 = scalar_lea.sflag [#allocation4], %s946
          %s948 = sand.u32 %s28, 1
          %s949 = smul.addr %s948, 4
          %s950 = scalar_lea.vmem [#allocation3], %s949
          %951 = dma.done %s947, 64
        $region88: #{custom-call.5} parent=83 // pred_fallthru
          _
        // Predicated region
        $region89: #{custom-call.5} parent=83 // pred_check
          %p952 = pneg %p71
        $region90: #{custom-call.5} parent=83 // pred_check_branch
          %954 = sbr.rel (%p952) target = $region92
        $region91: #{custom-call.5} parent=83 // pred_region
          %s955 = sand.u32 %s56, 1
          %s956 = scalar_lea.sflag [#allocation7], %s955
          %s957 = sand.u32 %s56, 1
          %s958 = smul.addr %s957, 4
          %s959 = scalar_lea.vmem [#allocation6], %s958
          %960 = dma.done %s956, 64
        $region92: #{custom-call.5} parent=83 // pred_fallthru
          _
      $region84: #{custom-call.5} parent=5 // pred_fallthru
        _
    $region6: #{custom-call.5} parent=1 // loop_footer
      %s16 = sadd.s32 1, %s12
    $region7: #{custom-call.5} parent=1 // loop_footer_branch
      %11 = sbr.rel target = $region3
    $region8: #{custom-call.5} parent=1 // loop_exit
      _
    %961 = vsyncpa [#allocation4], 1
    %s962 = scalar_lea.sflag [#allocation4], 1
    %963 = vsyncpa %s962, 1
    %964 = vsyncpa [#allocation7], 1
    %s965 = scalar_lea.sflag [#allocation7], 1
    %966 = vsyncpa %s965, 1

// kernel: coding_rate_forward.1
$region0: #{coding_rate_forward.1}
  #allocation0 [shape = 'u32[]', space=smem, size = 0x4, offset = 0x4, fixed_abs, tag = 'smem constant byte address 0x4 - core index']
  #allocation1 [shape = 'u32[144,128]{1,0:T(1,128)}', space=vmem, size = 0x12000, scoped, tag = 'internal scratch']
  #allocation2 [shape = 'f32[512,128]{1,0:T(8,128)}', space=vmem, size = 0x40000, scoped, tag = 'scratch operand']
  %s0 = inlined_call_operand.vmem [shape: f32[4,128], index: 0, kind: input, shape index: {}]
  %s1 = inlined_call_operand.vmem [shape: f32[128,128], index: 1, kind: input, shape index: {}]
  %s2 = inlined_call_operand.vmem [shape: f32[512,128], index: 2, kind: output, shape index: {0}]
  %s3 = inlined_call_operand.vmem [shape: f32[4,128], index: 3, kind: output, shape index: {1}]
  %4 = xla_tuple %s2, %s3
  %s5 = sld [smem:[#allocation0]]
  $region30: #{coding_rate_forward.1} parent=0
    _
  %s7 = ssub.s32 1, %s5
  %s8 = scalar_select 0, %s7, %s5
  // Predicated region
  $region2: #{coding_rate_forward.1} parent=0 // pred_check
    _
  $region3: #{coding_rate_forward.1} parent=0 // pred_check_branch
    %10 = sbr.rel (0) target = $region5
  $region4: #{coding_rate_forward.1} parent=0 // pred_region
    _
  $region5: #{coding_rate_forward.1} parent=0 // pred_fallthru
    _
  // Predicated region
  $region6: #{coding_rate_forward.1} parent=0 // pred_check
    _
  $region7: #{coding_rate_forward.1} parent=0 // pred_check_branch
    %12 = sbr.rel (0) target = $region9
  $region8: #{coding_rate_forward.1} parent=0 // pred_region
    _
  $region9: #{coding_rate_forward.1} parent=0 // pred_fallthru
    _
  %p13 = scmp.eq.s32.totalorder 0, 0
  // Predicated region
  $region10: #{coding_rate_forward.1} parent=0 // pred_check
    %p14 = pneg %p13
  $region11: #{coding_rate_forward.1} parent=0 // pred_check_branch
    %16 = sbr.rel (%p14) target = $region13
  $region12: #{coding_rate_forward.1} parent=0 // pred_region
    %17 = vst [vmem:[%s2] sm:$0xff] 0.0
    %18 = vst [vmem:[%s2 + $0x8] sm:$0xff] 0.0
    %19 = vst [vmem:[%s2 + $0x10] sm:$0xff] 0.0
    %20 = vst [vmem:[%s2 + $0x18] sm:$0xff] 0.0
    %21 = vst [vmem:[%s2 + $0x20] sm:$0xff] 0.0
    %22 = vst [vmem:[%s2 + $0x28] sm:$0xff] 0.0
    %23 = vst [vmem:[%s2 + $0x30] sm:$0xff] 0.0
    %24 = vst [vmem:[%s2 + $0x38] sm:$0xff] 0.0
    %25 = vst [vmem:[%s2 + $0x40] sm:$0xff] 0.0
    %26 = vst [vmem:[%s2 + $0x48] sm:$0xff] 0.0
    %27 = vst [vmem:[%s2 + $0x50] sm:$0xff] 0.0
    %28 = vst [vmem:[%s2 + $0x58] sm:$0xff] 0.0
    %29 = vst [vmem:[%s2 + $0x60] sm:$0xff] 0.0
    %30 = vst [vmem:[%s2 + $0x68] sm:$0xff] 0.0
    %31 = vst [vmem:[%s2 + $0x70] sm:$0xff] 0.0
    %32 = vst [vmem:[%s2 + $0x78] sm:$0xff] 0.0
    %33 = vst [vmem:[%s2 + $0x80] sm:$0xff] 0.0
    %34 = vst [vmem:[%s2 + $0x88] sm:$0xff] 0.0
    %35 = vst [vmem:[%s2 + $0x90] sm:$0xff] 0.0
    %36 = vst [vmem:[%s2 + $0x98] sm:$0xff] 0.0
    %37 = vst [vmem:[%s2 + $0xa0] sm:$0xff] 0.0
    %38 = vst [vmem:[%s2 + $0xa8] sm:$0xff] 0.0
    %39 = vst [vmem:[%s2 + $0xb0] sm:$0xff] 0.0
    %40 = vst [vmem:[%s2 + $0xb8] sm:$0xff] 0.0
    %41 = vst [vmem:[%s2 + $0xc0] sm:$0xff] 0.0
    %42 = vst [vmem:[%s2 + $0xc8] sm:$0xff] 0.0
    %43 = vst [vmem:[%s2 + $0xd0] sm:$0xff] 0.0
    %44 = vst [vmem:[%s2 + $0xd8] sm:$0xff] 0.0
    %45 = vst [vmem:[%s2 + $0xe0] sm:$0xff] 0.0
    %46 = vst [vmem:[%s2 + $0xe8] sm:$0xff] 0.0
    %47 = vst [vmem:[%s2 + $0xf0] sm:$0xff] 0.0
    %48 = vst [vmem:[%s2 + $0xf8] sm:$0xff] 0.0
    %49 = vst [vmem:[%s2 + $0x100] sm:$0xff] 0.0
    %50 = vst [vmem:[%s2 + $0x108] sm:$0xff] 0.0
    %51 = vst [vmem:[%s2 + $0x110] sm:$0xff] 0.0
    %52 = vst [vmem:[%s2 + $0x118] sm:$0xff] 0.0
    %53 = vst [vmem:[%s2 + $0x120] sm:$0xff] 0.0
    %54 = vst [vmem:[%s2 + $0x128] sm:$0xff] 0.0
    %55 = vst [vmem:[%s2 + $0x130] sm:$0xff] 0.0
    %56 = vst [vmem:[%s2 + $0x138] sm:$0xff] 0.0
    %57 = vst [vmem:[%s2 + $0x140] sm:$0xff] 0.0
    %58 = vst [vmem:[%s2 + $0x148] sm:$0xff] 0.0
    %59 = vst [vmem:[%s2 + $0x150] sm:$0xff] 0.0
    %60 = vst [vmem:[%s2 + $0x158] sm:$0xff] 0.0
    %61 = vst [vmem:[%s2 + $0x160] sm:$0xff] 0.0
    %62 = vst [vmem:[%s2 + $0x168] sm:$0xff] 0.0
    %63 = vst [vmem:[%s2 + $0x170] sm:$0xff] 0.0
    %64 = vst [vmem:[%s2 + $0x178] sm:$0xff] 0.0
    %65 = vst [vmem:[%s2 + $0x180] sm:$0xff] 0.0
    %66 = vst [vmem:[%s2 + $0x188] sm:$0xff] 0.0
    %67 = vst [vmem:[%s2 + $0x190] sm:$0xff] 0.0
    %68 = vst [vmem:[%s2 + $0x198] sm:$0xff] 0.0
    %69 = vst [vmem:[%s2 + $0x1a0] sm:$0xff] 0.0
    %70 = vst [vmem:[%s2 + $0x1a8] sm:$0xff] 0.0
    %71 = vst [vmem:[%s2 + $0x1b0] sm:$0xff] 0.0
    %72 = vst [vmem:[%s2 + $0x1b8] sm:$0xff] 0.0
    %73 = vst [vmem:[%s2 + $0x1c0] sm:$0xff] 0.0
    %74 = vst [vmem:[%s2 + $0x1c8] sm:$0xff] 0.0
    %75 = vst [vmem:[%s2 + $0x1d0] sm:$0xff] 0.0
    %76 = vst [vmem:[%s2 + $0x1d8] sm:$0xff] 0.0
    %77 = vst [vmem:[%s2 + $0x1e0] sm:$0xff] 0.0
    %78 = vst [vmem:[%s2 + $0x1e8] sm:$0xff] 0.0
    %79 = vst [vmem:[%s2 + $0x1f0] sm:$0xff] 0.0
    %80 = vst [vmem:[%s2 + $0x1f8] sm:$0xff] 0.0
    %81 = vst [vmem:[%s3] sm:$0xf] 0.0
  $region13: #{coding_rate_forward.1} parent=0 // pred_fallthru
    _
  %v82 = vld [vmem:[%s1] sm:$0xff]
  %v83 = vld [vmem:[%s1 + $0x8] sm:$0xff]
  %v84 = vld [vmem:[%s1 + $0x10] sm:$0xff]
  %v85 = vld [vmem:[%s1 + $0x18] sm:$0xff]
  %v86 = vld [vmem:[%s1 + $0x20] sm:$0xff]
  %v87 = vld [vmem:[%s1 + $0x28] sm:$0xff]
  %v88 = vld [vmem:[%s1 + $0x30] sm:$0xff]
  %v89 = vld [vmem:[%s1 + $0x38] sm:$0xff]
  %v90 = vld [vmem:[%s1 + $0x40] sm:$0xff]
  %v91 = vld [vmem:[%s1 + $0x48] sm:$0xff]
  %v92 = vld [vmem:[%s1 + $0x50] sm:$0xff]
  %v93 = vld [vmem:[%s1 + $0x58] sm:$0xff]
  %v94 = vld [vmem:[%s1 + $0x60] sm:$0xff]
  %v95 = vld [vmem:[%s1 + $0x68] sm:$0xff]
  %v96 = vld [vmem:[%s1 + $0x70] sm:$0xff]
  %v97 = vld [vmem:[%s1 + $0x78] sm:$0xff]
  %v98 = vld [vmem:[%s0] sm:$0xf]
  %v99 = vlaneseq
  %v100 = vshrl.u32 %v99, 7
  %v101 = vsub.s32 0, %v100
  %v102 = vrot.slane %v98, %v101
  %v103 = vmul.f32 %v82, %v102
  %v104 = vmul.f32 %v83, %v102
  %v105 = vmul.f32 %v84, %v102
  %v106 = vmul.f32 %v85, %v102
  %v107 = vmul.f32 %v86, %v102
  %v108 = vmul.f32 %v87, %v102
  %v109 = vmul.f32 %v88, %v102
  %v110 = vmul.f32 %v89, %v102
  %v111 = vmul.f32 %v90, %v102
  %v112 = vmul.f32 %v91, %v102
  %v113 = vmul.f32 %v92, %v102
  %v114 = vmul.f32 %v93, %v102
  %v115 = vmul.f32 %v94, %v102
  %v116 = vmul.f32 %v95, %v102
  %v117 = vmul.f32 %v96, %v102
  %v118 = vmul.f32 %v97, %v102
  %119 = vst [vmem:[#allocation2] sm:$0xff] %v103
  %120 = vst [vmem:[#allocation2 + $0x8] sm:$0xff] %v104
  %121 = vst [vmem:[#allocation2 + $0x10] sm:$0xff] %v105
  %122 = vst [vmem:[#allocation2 + $0x18] sm:$0xff] %v106
  %123 = vst [vmem:[#allocation2 + $0x20] sm:$0xff] %v107
  %124 = vst [vmem:[#allocation2 + $0x28] sm:$0xff] %v108
  %125 = vst [vmem:[#allocation2 + $0x30] sm:$0xff] %v109
  %126 = vst [vmem:[#allocation2 + $0x38] sm:$0xff] %v110
  %127 = vst [vmem:[#allocation2 + $0x40] sm:$0xff] %v111
  %128 = vst [vmem:[#allocation2 + $0x48] sm:$0xff] %v112
  %129 = vst [vmem:[#allocation2 + $0x50] sm:$0xff] %v113
  %130 = vst [vmem:[#allocation2 + $0x58] sm:$0xff] %v114
  %131 = vst [vmem:[#allocation2 + $0x60] sm:$0xff] %v115
  %132 = vst [vmem:[#allocation2 + $0x68] sm:$0xff] %v116
  %133 = vst [vmem:[#allocation2 + $0x70] sm:$0xff] %v117
  %134 = vst [vmem:[#allocation2 + $0x78] sm:$0xff] %v118
  %v135 = vlaneseq
  %v136 = vshrl.u32 %v135, 7
  %v137 = vsub.s32 1, %v136
  %v138 = vrot.slane %v98, %v137
  %v139 = vmul.f32 %v82, %v138
  %v140 = vmul.f32 %v83, %v138
  %v141 = vmul.f32 %v84, %v138
  %v142 = vmul.f32 %v85, %v138
  %v143 = vmul.f32 %v86, %v138
  %v144 = vmul.f32 %v87, %v138
  %v145 = vmul.f32 %v88, %v138
  %v146 = vmul.f32 %v89, %v138
  %v147 = vmul.f32 %v90, %v138
  %v148 = vmul.f32 %v91, %v138
  %v149 = vmul.f32 %v92, %v138
  %v150 = vmul.f32 %v93, %v138
  %v151 = vmul.f32 %v94, %v138
  %v152 = vmul.f32 %v95, %v138
  %v153 = vmul.f32 %v96, %v138
  %v154 = vmul.f32 %v97, %v138
  %155 = vst [vmem:[#allocation2 + $0x80] sm:$0xff] %v139
  %156 = vst [vmem:[#allocation2 + $0x88] sm:$0xff] %v140
  %157 = vst [vmem:[#allocation2 + $0x90] sm:$0xff] %v141
  %158 = vst [vmem:[#allocation2 + $0x98] sm:$0xff] %v142
  %159 = vst [vmem:[#allocation2 + $0xa0] sm:$0xff] %v143
  %160 = vst [vmem:[#allocation2 + $0xa8] sm:$0xff] %v144
  %161 = vst [vmem:[#allocation2 + $0xb0] sm:$0xff] %v145
  %162 = vst [vmem:[#allocation2 + $0xb8] sm:$0xff] %v146
  %163 = vst [vmem:[#allocation2 + $0xc0] sm:$0xff] %v147
  %164 = vst [vmem:[#allocation2 + $0xc8] sm:$0xff] %v148
  %165 = vst [vmem:[#allocation2 + $0xd0] sm:$0xff] %v149
  %166 = vst [vmem:[#allocation2 + $0xd8] sm:$0xff] %v150
  %167 = vst [vmem:[#allocation2 + $0xe0] sm:$0xff] %v151
  %168 = vst [vmem:[#allocation2 + $0xe8] sm:$0xff] %v152
  %169 = vst [vmem:[#allocation2 + $0xf0] sm:$0xff] %v153
  %170 = vst [vmem:[#allocation2 + $0xf8] sm:$0xff] %v154
  %v171 = vlaneseq
  %v172 = vshrl.u32 %v171, 7
  %v173 = vsub.s32 2, %v172
  %v174 = vrot.slane %v98, %v173
  %v175 = vmul.f32 %v82, %v174
  %v176 = vmul.f32 %v83, %v174
  %v177 = vmul.f32 %v84, %v174
  %v178 = vmul.f32 %v85, %v174
  %v179 = vmul.f32 %v86, %v174
  %v180 = vmul.f32 %v87, %v174
  %v181 = vmul.f32 %v88, %v174
  %v182 = vmul.f32 %v89, %v174
  %v183 = vmul.f32 %v90, %v174
  %v184 = vmul.f32 %v91, %v174
  %v185 = vmul.f32 %v92, %v174
  %v186 = vmul.f32 %v93, %v174
  %v187 = vmul.f32 %v94, %v174
  %v188 = vmul.f32 %v95, %v174
  %v189 = vmul.f32 %v96, %v174
  %v190 = vmul.f32 %v97, %v174
  %191 = vst [vmem:[#allocation2 + $0x100] sm:$0xff] %v175
  %192 = vst [vmem:[#allocation2 + $0x108] sm:$0xff] %v176
  %193 = vst [vmem:[#allocation2 + $0x110] sm:$0xff] %v177
  %194 = vst [vmem:[#allocation2 + $0x118] sm:$0xff] %v178
  %195 = vst [vmem:[#allocation2 + $0x120] sm:$0xff] %v179
  %196 = vst [vmem:[#allocation2 + $0x128] sm:$0xff] %v180
  %197 = vst [vmem:[#allocation2 + $0x130] sm:$0xff] %v181
  %198 = vst [vmem:[#allocation2 + $0x138] sm:$0xff] %v182
  %199 = vst [vmem:[#allocation2 + $0x140] sm:$0xff] %v183
  %200 = vst [vmem:[#allocation2 + $0x148] sm:$0xff] %v184
  %201 = vst [vmem:[#allocation2 + $0x150] sm:$0xff] %v185
  %202 = vst [vmem:[#allocation2 + $0x158] sm:$0xff] %v186
  %203 = vst [vmem:[#allocation2 + $0x160] sm:$0xff] %v187
  %204 = vst [vmem:[#allocation2 + $0x168] sm:$0xff] %v188
  %205 = vst [vmem:[#allocation2 + $0x170] sm:$0xff] %v189
  %206 = vst [vmem:[#allocation2 + $0x178] sm:$0xff] %v190
  %v207 = vlaneseq
  %v208 = vshrl.u32 %v207, 7
  %v209 = vsub.s32 3, %v208
  %v210 = vrot.slane %v98, %v209
  %v211 = vmul.f32 %v82, %v210
  %v212 = vmul.f32 %v83, %v210
  %v213 = vmul.f32 %v84, %v210
  %v214 = vmul.f32 %v85, %v210
  %v215 = vmul.f32 %v86, %v210
  %v216 = vmul.f32 %v87, %v210
  %v217 = vmul.f32 %v88, %v210
  %v218 = vmul.f32 %v89, %v210
  %v219 = vmul.f32 %v90, %v210
  %v220 = vmul.f32 %v91, %v210
  %v221 = vmul.f32 %v92, %v210
  %v222 = vmul.f32 %v93, %v210
  %v223 = vmul.f32 %v94, %v210
  %v224 = vmul.f32 %v95, %v210
  %v225 = vmul.f32 %v96, %v210
  %v226 = vmul.f32 %v97, %v210
  %227 = vst [vmem:[#allocation2 + $0x180] sm:$0xff] %v211
  %228 = vst [vmem:[#allocation2 + $0x188] sm:$0xff] %v212
  %229 = vst [vmem:[#allocation2 + $0x190] sm:$0xff] %v213
  %230 = vst [vmem:[#allocation2 + $0x198] sm:$0xff] %v214
  %231 = vst [vmem:[#allocation2 + $0x1a0] sm:$0xff] %v215
  %232 = vst [vmem:[#allocation2 + $0x1a8] sm:$0xff] %v216
  %233 = vst [vmem:[#allocation2 + $0x1b0] sm:$0xff] %v217
  %234 = vst [vmem:[#allocation2 + $0x1b8] sm:$0xff] %v218
  %235 = vst [vmem:[#allocation2 + $0x1c0] sm:$0xff] %v219
  %236 = vst [vmem:[#allocation2 + $0x1c8] sm:$0xff] %v220
  %237 = vst [vmem:[#allocation2 + $0x1d0] sm:$0xff] %v221
  %238 = vst [vmem:[#allocation2 + $0x1d8] sm:$0xff] %v222
  %239 = vst [vmem:[#allocation2 + $0x1e0] sm:$0xff] %v223
  %240 = vst [vmem:[#allocation2 + $0x1e8] sm:$0xff] %v224
  %241 = vst [vmem:[#allocation2 + $0x1f0] sm:$0xff] %v225
  %242 = vst [vmem:[#allocation2 + $0x1f8] sm:$0xff] %v226
  %v243 = vld [vmem:[%s2] sm:$0xff]
  %v244 = vld [vmem:[%s2 + $0x8] sm:$0xff]
  %v245 = vld [vmem:[%s2 + $0x10] sm:$0xff]
  %v246 = vld [vmem:[%s2 + $0x18] sm:$0xff]
  %v247 = vld [vmem:[%s2 + $0x20] sm:$0xff]
  %v248 = vld [vmem:[%s2 + $0x28] sm:$0xff]
  %v249 = vld [vmem:[%s2 + $0x30] sm:$0xff]
  %v250 = vld [vmem:[%s2 + $0x38] sm:$0xff]
  %v251 = vld [vmem:[%s2 + $0x40] sm:$0xff]
  %v252 = vld [vmem:[%s2 + $0x48] sm:$0xff]
  %v253 = vld [vmem:[%s2 + $0x50] sm:$0xff]
  %v254 = vld [vmem:[%s2 + $0x58] sm:$0xff]
  %v255 = vld [vmem:[%s2 + $0x60] sm:$0xff]
  %v256 = vld [vmem:[%s2 + $0x68] sm:$0xff]
  %v257 = vld [vmem:[%s2 + $0x70] sm:$0xff]
  %v258 = vld [vmem:[%s2 + $0x78] sm:$0xff]
  %v259 = vld [vmem:[%s2 + $0x80] sm:$0xff]
  %v260 = vld [vmem:[%s2 + $0x88] sm:$0xff]
  %v261 = vld [vmem:[%s2 + $0x90] sm:$0xff]
  %v262 = vld [vmem:[%s2 + $0x98] sm:$0xff]
  %v263 = vld [vmem:[%s2 + $0xa0] sm:$0xff]
  %v264 = vld [vmem:[%s2 + $0xa8] sm:$0xff]
  %v265 = vld [vmem:[%s2 + $0xb0] sm:$0xff]
  %v266 = vld [vmem:[%s2 + $0xb8] sm:$0xff]
  %v267 = vld [vmem:[%s2 + $0xc0] sm:$0xff]
  %v268 = vld [vmem:[%s2 + $0xc8] sm:$0xff]
  %v269 = vld [vmem:[%s2 + $0xd0] sm:$0xff]
  %v270 = vld [vmem:[%s2 + $0xd8] sm:$0xff]
  %v271 = vld [vmem:[%s2 + $0xe0] sm:$0xff]
  %v272 = vld [vmem:[%s2 + $0xe8] sm:$0xff]
  %v273 = vld [vmem:[%s2 + $0xf0] sm:$0xff]
  %v274 = vld [vmem:[%s2 + $0xf8] sm:$0xff]
  %v275 = vld [vmem:[%s2 + $0x100] sm:$0xff]
  %v276 = vld [vmem:[%s2 + $0x108] sm:$0xff]
  %v277 = vld [vmem:[%s2 + $0x110] sm:$0xff]
  %v278 = vld [vmem:[%s2 + $0x118] sm:$0xff]
  %v279 = vld [vmem:[%s2 + $0x120] sm:$0xff]
  %v280 = vld [vmem:[%s2 + $0x128] sm:$0xff]
  %v281 = vld [vmem:[%s2 + $0x130] sm:$0xff]
  %v282 = vld [vmem:[%s2 + $0x138] sm:$0xff]
  %v283 = vld [vmem:[%s2 + $0x140] sm:$0xff]
  %v284 = vld [vmem:[%s2 + $0x148] sm:$0xff]
  %v285 = vld [vmem:[%s2 + $0x150] sm:$0xff]
  %v286 = vld [vmem:[%s2 + $0x158] sm:$0xff]
  %v287 = vld [vmem:[%s2 + $0x160] sm:$0xff]
  %v288 = vld [vmem:[%s2 + $0x168] sm:$0xff]
  %v289 = vld [vmem:[%s2 + $0x170] sm:$0xff]
  %v290 = vld [vmem:[%s2 + $0x178] sm:$0xff]
  %v291 = vld [vmem:[%s2 + $0x180] sm:$0xff]
  %v292 = vld [vmem:[%s2 + $0x188] sm:$0xff]
  %v293 = vld [vmem:[%s2 + $0x190] sm:$0xff]
  %v294 = vld [vmem:[%s2 + $0x198] sm:$0xff]
  %v295 = vld [vmem:[%s2 + $0x1a0] sm:$0xff]
  %v296 = vld [vmem:[%s2 + $0x1a8] sm:$0xff]
  %v297 = vld [vmem:[%s2 + $0x1b0] sm:$0xff]
  %v298 = vld [vmem:[%s2 + $0x1b8] sm:$0xff]
  %v299 = vld [vmem:[%s2 + $0x1c0] sm:$0xff]
  %v300 = vld [vmem:[%s2 + $0x1c8] sm:$0xff]
  %v301 = vld [vmem:[%s2 + $0x1d0] sm:$0xff]
  %v302 = vld [vmem:[%s2 + $0x1d8] sm:$0xff]
  %v303 = vld [vmem:[%s2 + $0x1e0] sm:$0xff]
  %v304 = vld [vmem:[%s2 + $0x1e8] sm:$0xff]
  %v305 = vld [vmem:[%s2 + $0x1f0] sm:$0xff]
  %v306 = vld [vmem:[%s2 + $0x1f8] sm:$0xff]
  %v307 = vld [vmem:[#allocation2] sm:$0xff]
  %v308 = vld [vmem:[#allocation2 + $0x8] sm:$0xff]
  %v309 = vld [vmem:[#allocation2 + $0x10] sm:$0xff]
  %v310 = vld [vmem:[#allocation2 + $0x18] sm:$0xff]
  %v311 = vld [vmem:[#allocation2 + $0x20] sm:$0xff]
  %v312 = vld [vmem:[#allocation2 + $0x28] sm:$0xff]
  %v313 = vld [vmem:[#allocation2 + $0x30] sm:$0xff]
  %v314 = vld [vmem:[#allocation2 + $0x38] sm:$0xff]
  %v315 = vld [vmem:[#allocation2 + $0x40] sm:$0xff]
  %v316 = vld [vmem:[#allocation2 + $0x48] sm:$0xff]
  %v317 = vld [vmem:[#allocation2 + $0x50] sm:$0xff]
  %v318 = vld [vmem:[#allocation2 + $0x58] sm:$0xff]
  %v319 = vld [vmem:[#allocation2 + $0x60] sm:$0xff]
  %v320 = vld [vmem:[#allocation2 + $0x68] sm:$0xff]
  %v321 = vld [vmem:[#allocation2 + $0x70] sm:$0xff]
  %v322 = vld [vmem:[#allocation2 + $0x78] sm:$0xff]
  %v323 = vld [vmem:[#allocation2 + $0x80] sm:$0xff]
  %v324 = vld [vmem:[#allocation2 + $0x88] sm:$0xff]
  %v325 = vld [vmem:[#allocation2 + $0x90] sm:$0xff]
  %v326 = vld [vmem:[#allocation2 + $0x98] sm:$0xff]
  %v327 = vld [vmem:[#allocation2 + $0xa0] sm:$0xff]
  %v328 = vld [vmem:[#allocation2 + $0xa8] sm:$0xff]
  %v329 = vld [vmem:[#allocation2 + $0xb0] sm:$0xff]
  %v330 = vld [vmem:[#allocation2 + $0xb8] sm:$0xff]
  %v331 = vld [vmem:[#allocation2 + $0xc0] sm:$0xff]
  %v332 = vld [vmem:[#allocation2 + $0xc8] sm:$0xff]
  %v333 = vld [vmem:[#allocation2 + $0xd0] sm:$0xff]
  %v334 = vld [vmem:[#allocation2 + $0xd8] sm:$0xff]
  %v335 = vld [vmem:[#allocation2 + $0xe0] sm:$0xff]
  %v336 = vld [vmem:[#allocation2 + $0xe8] sm:$0xff]
  %v337 = vld [vmem:[#allocation2 + $0xf0] sm:$0xff]
  %v338 = vld [vmem:[#allocation2 + $0xf8] sm:$0xff]
  %v339 = vld [vmem:[#allocation2 + $0x100] sm:$0xff]
  %v340 = vld [vmem:[#allocation2 + $0x108] sm:$0xff]
  %v341 = vld [vmem:[#allocation2 + $0x110] sm:$0xff]
  %v342 = vld [vmem:[#allocation2 + $0x118] sm:$0xff]
  %v343 = vld [vmem:[#allocation2 + $0x120] sm:$0xff]
  %v344 = vld [vmem:[#allocation2 + $0x128] sm:$0xff]
  %v345 = vld [vmem:[#allocation2 + $0x130] sm:$0xff]
  %v346 = vld [vmem:[#allocation2 + $0x138] sm:$0xff]
  %v347 = vld [vmem:[#allocation2 + $0x140] sm:$0xff]
  %v348 = vld [vmem:[#allocation2 + $0x148] sm:$0xff]
  %v349 = vld [vmem:[#allocation2 + $0x150] sm:$0xff]
  %v350 = vld [vmem:[#allocation2 + $0x158] sm:$0xff]
  %v351 = vld [vmem:[#allocation2 + $0x160] sm:$0xff]
  %v352 = vld [vmem:[#allocation2 + $0x168] sm:$0xff]
  %v353 = vld [vmem:[#allocation2 + $0x170] sm:$0xff]
  %v354 = vld [vmem:[#allocation2 + $0x178] sm:$0xff]
  %v355 = vld [vmem:[#allocation2 + $0x180] sm:$0xff]
  %v356 = vld [vmem:[#allocation2 + $0x188] sm:$0xff]
  %v357 = vld [vmem:[#allocation2 + $0x190] sm:$0xff]
  %v358 = vld [vmem:[#allocation2 + $0x198] sm:$0xff]
  %v359 = vld [vmem:[#allocation2 + $0x1a0] sm:$0xff]
  %v360 = vld [vmem:[#allocation2 + $0x1a8] sm:$0xff]
  %v361 = vld [vmem:[#allocation2 + $0x1b0] sm:$0xff]
  %v362 = vld [vmem:[#allocation2 + $0x1b8] sm:$0xff]
  %v363 = vld [vmem:[#allocation2 + $0x1c0] sm:$0xff]
  %v364 = vld [vmem:[#allocation2 + $0x1c8] sm:$0xff]
  %v365 = vld [vmem:[#allocation2 + $0x1d0] sm:$0xff]
  %v366 = vld [vmem:[#allocation2 + $0x1d8] sm:$0xff]
  %v367 = vld [vmem:[#allocation2 + $0x1e0] sm:$0xff]
  %v368 = vld [vmem:[#allocation2 + $0x1e8] sm:$0xff]
  %v369 = vld [vmem:[#allocation2 + $0x1f0] sm:$0xff]
  %v370 = vld [vmem:[#allocation2 + $0x1f8] sm:$0xff]
  %371 = vmatprep.subr.mxu0 0.0
  %372 = vmatpush1.xpose.msra.mxu0 %v82
  %373 = vmatprep.subr.mxu0 0.0
  %374 = vmatpush1.xpose.msra.mxu0 %v83
  %375 = vmatprep.subr.mxu0 0.0
  %376 = vmatpush1.xpose.msra.mxu0 %v84
  %377 = vmatprep.subr.mxu0 0.0
  %378 = vmatpush1.xpose.msra.mxu0 %v85
  %379 = vmatprep.subr.mxu0 0.0
  %380 = vmatpush1.xpose.msra.mxu0 %v86
  %381 = vmatprep.subr.mxu0 0.0
  %382 = vmatpush1.xpose.msra.mxu0 %v87
  %383 = vmatprep.subr.mxu0 0.0
  %384 = vmatpush1.xpose.msra.mxu0 %v88
  %385 = vmatprep.subr.mxu0 0.0
  %386 = vmatpush1.xpose.msra.mxu0 %v89
  %387 = vmatprep.subr.mxu0 0.0
  %388 = vmatpush1.xpose.msra.mxu0 %v90
  %389 = vmatprep.subr.mxu0 0.0
  %390 = vmatpush1.xpose.msra.mxu0 %v91
  %391 = vmatprep.subr.mxu0 0.0
  %392 = vmatpush1.xpose.msra.mxu0 %v92
  %393 = vmatprep.subr.mxu0 0.0
  %394 = vmatpush1.xpose.msra.mxu0 %v93
  %395 = vmatprep.subr.mxu0 0.0
  %396 = vmatpush1.xpose.msra.mxu0 %v94
  %397 = vmatprep.subr.mxu0 0.0
  %398 = vmatpush1.xpose.msra.mxu0 %v95
  %399 = vmatprep.subr.mxu0 0.0
  %400 = vmatpush1.xpose.msra.mxu0 %v96
  %401 = vmatprep.subr.mxu0 0.0
  %402 = vmatpush1.xpose.msra.mxu0 %v97
  %403 = vmatprep.subr.mxu0 0.0
  %404 = vmatpush1.xpose.msra.mxu0 0.0
  %405 = vmatprep.subr.mxu0 0.0
  %406 = vmatpush1.xpose.msra.mxu0 0.0
  %407 = vmatprep.subr.mxu0 0.0
  %408 = vmatpush1.xpose.msra.mxu0 0.0
  %409 = vmatprep.subr.mxu0 0.0
  %410 = vmatpush1.xpose.msra.mxu0 0.0
  %411 = vmatprep.subr.mxu0 0.0
  %412 = vmatpush1.xpose.msra.mxu0 0.0
  %413 = vmatprep.subr.mxu0 0.0
  %414 = vmatpush1.xpose.msra.mxu0 0.0
  %415 = vmatprep.subr.mxu0 0.0
  %416 = vmatpush1.xpose.msra.mxu0 0.0
  %417 = vmatprep.subr.mxu0 0.0
  %418 = vmatpush1.xpose.msra.mxu0 0.0
  %419 = vmatprep.subr.mxu0 0.0
  %420 = vmatpush1.xpose.msra.mxu0 0.0
  %421 = vmatprep.subr.mxu0 0.0
  %422 = vmatpush1.xpose.msra.mxu0 0.0
  %423 = vmatprep.subr.mxu0 0.0
  %424 = vmatpush1.xpose.msra.mxu0 0.0
  %425 = vmatprep.subr.mxu0 0.0
  %426 = vmatpush1.xpose.msra.mxu0 0.0
  %427 = vmatprep.subr.mxu0 0.0
  %428 = vmatpush1.xpose.msra.mxu0 0.0
  %429 = vmatprep.subr.mxu0 0.0
  %430 = vmatpush1.xpose.msra.mxu0 0.0
  %431 = vmatprep.subr.mxu0 0.0
  %432 = vmatpush1.xpose.msra.mxu0 0.0
  %433 = vmatprep.subr.mxu0 0.0
  %434 = vmatpush1.xpose.msra.mxu0 0.0
  %435 = vmatprep.mubr.f32.mxu0 0.0
  %436 = vmatmul.mubr.f32.gmra.mrb[0].mxu0 %v307
  %v437 = vpop.f32.mrb[0].mxu0
  %v438 = vadd.f32 0.0, %v437
  %v439 = vpop.f32.mrb[0].mxu0
  %440 = vmatprep.mubr.f32.mxu0 0.0
  %441 = vmatmul.mubr.f32.gmra.mrb[0].mxu0 %v308
  %v442 = vpop.f32.mrb[0].mxu0
  %v443 = vadd.f32 0.0, %v442
  %v444 = vpop.f32.mrb[0].mxu0
  %445 = vmatprep.mubr.f32.mxu0 0.0
  %446 = vmatmul.mubr.f32.gmra.mrb[0].mxu0 %v309
  %v447 = vpop.f32.mrb[0].mxu0
  %v448 = vadd.f32 0.0, %v447
  %v449 = vpop.f32.mrb[0].mxu0
  %450 = vmatprep.mubr.f32.mxu0 0.0
  %451 = vmatmul.mubr.f32.gmra.mrb[0].mxu0 %v310
  %v452 = vpop.f32.mrb[0].mxu0
  %v453 = vadd.f32 0.0, %v452
  %v454 = vpop.f32.mrb[0].mxu0
  %455 = vmatprep.mubr.f32.mxu0 0.0
  %456 = vmatmul.mubr.f32.gmra.mrb[0].mxu0 %v311
  %v457 = vpop.f32.mrb[0].mxu0
  %v458 = vadd.f32 0.0, %v457
  %v459 = vpop.f32.mrb[0].mxu0
  %460 = vmatprep.mubr.f32.mxu0 0.0
  %461 = vmatmul.mubr.f32.gmra.mrb[0].mxu0 %v312
  %v462 = vpop.f32.mrb[0].mxu0
  %v463 = vadd.f32 0.0, %v462
  %v464 = vpop.f32.mrb[0].mxu0
  %465 = vmatprep.mubr.f32.mxu0 0.0
  %466 = vmatmul.mubr.f32.gmra.mrb[0].mxu0 %v313
  %v467 = vpop.f32.mrb[0].mxu0
  %v468 = vadd.f32 0.0, %v467
  %v469 = vpop.f32.mrb[0].mxu0
  %470 = vmatprep.mubr.f32.mxu0 0.0
  %471 = vmatmul.mubr.f32.gmra.mrb[0].mxu0 %v314
  %v472 = vpop.f32.mrb[0].mxu0
  %v473 = vadd.f32 0.0, %v472
  %v474 = vpop.f32.mrb[0].mxu0
  %475 = vmatprep.mubr.f32.mxu0 0.0
  %476 = vmatmul.mubr.f32.gmra.mrb[0].mxu0 %v315
  %v477 = vpop.f32.mrb[0].mxu0
  %v478 = vadd.f32 0.0, %v477
  %v479 = vpop.f32.mrb[0].mxu0
  %480 = vmatprep.mubr.f32.mxu0 0.0
  %481 = vmatmul.mubr.f32.gmra.mrb[0].mxu0 %v316
  %v482 = vpop.f32.mrb[0].mxu0
  %v483 = vadd.f32 0.0, %v482
  %v484 = vpop.f32.mrb[0].mxu0
  %485 = vmatprep.mubr.f32.mxu0 0.0
  %486 = vmatmul.mubr.f32.gmra.mrb[0].mxu0 %v317
  %v487 = vpop.f32.mrb[0].mxu0
  %v488 = vadd.f32 0.0, %v487
  %v489 = vpop.f32.mrb[0].mxu0
  %490 = vmatprep.mubr.f32.mxu0 0.0
  %491 = vmatmul.mubr.f32.gmra.mrb[0].mxu0 %v318
  %v492 = vpop.f32.mrb[0].mxu0
  %v493 = vadd.f32 0.0, %v492
  %v494 = vpop.f32.mrb[0].mxu0
  %495 = vmatprep.mubr.f32.mxu0 0.0
  %496 = vmatmul.mubr.f32.gmra.mrb[0].mxu0 %v319
  %v497 = vpop.f32.mrb[0].mxu0
  %v498 = vadd.f32 0.0, %v497
  %v499 = vpop.f32.mrb[0].mxu0
  %500 = vmatprep.mubr.f32.mxu0 0.0
  %501 = vmatmul.mubr.f32.gmra.mrb[0].mxu0 %v320
  %v502 = vpop.f32.mrb[0].mxu0
  %v503 = vadd.f32 0.0, %v502
  %v504 = vpop.f32.mrb[0].mxu0
  %505 = vmatprep.mubr.f32.mxu0 0.0
  %506 = vmatmul.mubr.f32.gmra.mrb[0].mxu0 %v321
  %v507 = vpop.f32.mrb[0].mxu0
  %v508 = vadd.f32 0.0, %v507
  %v509 = vpop.f32.mrb[0].mxu0
  %510 = vmatprep.mubr.f32.mxu0 0.0
  %511 = vmatmul.mubr.f32.gmra.mrb[0].mxu0 %v322
  %v512 = vpop.f32.mrb[0].mxu0
  %v513 = vadd.f32 0.0, %v512
  %v514 = vpop.f32.mrb[0].mxu0
  %515 = vmatprep.mubr.f32.mxu0 0.0
  %516 = vmatmul.mubr.f32.gmra.mrb[0].mxu0 %v323
  %v517 = vpop.f32.mrb[0].mxu0
  %v518 = vadd.f32 0.0, %v517
  %v519 = vpop.f32.mrb[0].mxu0
  %520 = vmatprep.mubr.f32.mxu0 0.0
  %521 = vmatmul.mubr.f32.gmra.mrb[0].mxu0 %v324
  %v522 = vpop.f32.mrb[0].mxu0
  %v523 = vadd.f32 0.0, %v522
  %v524 = vpop.f32.mrb[0].mxu0
  %525 = vmatprep.mubr.f32.mxu0 0.0
  %526 = vmatmul.mubr.f32.gmra.mrb[0].mxu0 %v325
  %v527 = vpop.f32.mrb[0].mxu0
  %v528 = vadd.f32 0.0, %v527
  %v529 = vpop.f32.mrb[0].mxu0
  %530 = vmatprep.mubr.f32.mxu0 0.0
  %531 = vmatmul.mubr.f32.gmra.mrb[0].mxu0 %v326
  %v532 = vpop.f32.mrb[0].mxu0
  %v533 = vadd.f32 0.0, %v532
  %v534 = vpop.f32.mrb[0].mxu0
  %535 = vmatprep.mubr.f32.mxu0 0.0
  %536 = vmatmul.mubr.f32.gmra.mrb[0].mxu0 %v327
  %v537 = vpop.f32.mrb[0].mxu0
  %v538 = vadd.f32 0.0, %v537
  %v539 = vpop.f32.mrb[0].mxu0
  %540 = vmatprep.mubr.f32.mxu0 0.0
  %541 = vmatmul.mubr.f32.gmra.mrb[0].mxu0 %v328
  %v542 = vpop.f32.mrb[0].mxu0
  %v543 = vadd.f32 0.0, %v542
  %v544 = vpop.f32.mrb[0].mxu0
  %545 = vmatprep.mubr.f32.mxu0 0.0
  %546 = vmatmul.mubr.f32.gmra.mrb[0].mxu0 %v329
  %v547 = vpop.f32.mrb[0].mxu0
  %v548 = vadd.f32 0.0, %v547
  %v549 = vpop.f32.mrb[0].mxu0
  %550 = vmatprep.mubr.f32.mxu0 0.0
  %551 = vmatmul.mubr.f32.gmra.mrb[0].mxu0 %v330
  %v552 = vpop.f32.mrb[0].mxu0
  %v553 = vadd.f32 0.0, %v552
  %v554 = vpop.f32.mrb[0].mxu0
  %555 = vmatprep.mubr.f32.mxu0 0.0
  %556 = vmatmul.mubr.f32.gmra.mrb[0].mxu0 %v331
  %v557 = vpop.f32.mrb[0].mxu0
  %v558 = vadd.f32 0.0, %v557
  %v559 = vpop.f32.mrb[0].mxu0
  %560 = vmatprep.mubr.f32.mxu0 0.0
  %561 = vmatmul.mubr.f32.gmra.mrb[0].mxu0 %v332
  %v562 = vpop.f32.mrb[0].mxu0
  %v563 = vadd.f32 0.0, %v562
  %v564 = vpop.f32.mrb[0].mxu0
  %565 = vmatprep.mubr.f32.mxu0 0.0
  %566 = vmatmul.mubr.f32.gmra.mrb[0].mxu0 %v333
  %v567 = vpop.f32.mrb[0].mxu0
  %v568 = vadd.f32 0.0, %v567
  %v569 = vpop.f32.mrb[0].mxu0
  %570 = vmatprep.mubr.f32.mxu0 0.0
  %571 = vmatmul.mubr.f32.gmra.mrb[0].mxu0 %v334
  %v572 = vpop.f32.mrb[0].mxu0
  %v573 = vadd.f32 0.0, %v572
  %v574 = vpop.f32.mrb[0].mxu0
  %575 = vmatprep.mubr.f32.mxu0 0.0
  %576 = vmatmul.mubr.f32.gmra.mrb[0].mxu0 %v335
  %v577 = vpop.f32.mrb[0].mxu0
  %v578 = vadd.f32 0.0, %v577
  %v579 = vpop.f32.mrb[0].mxu0
  %580 = vmatprep.mubr.f32.mxu0 0.0
  %581 = vmatmul.mubr.f32.gmra.mrb[0].mxu0 %v336
  %v582 = vpop.f32.mrb[0].mxu0
  %v583 = vadd.f32 0.0, %v582
  %v584 = vpop.f32.mrb[0].mxu0
  %585 = vmatprep.mubr.f32.mxu0 0.0
  %586 = vmatmul.mubr.f32.gmra.mrb[0].mxu0 %v337
  %v587 = vpop.f32.mrb[0].mxu0
  %v588 = vadd.f32 0.0, %v587
  %v589 = vpop.f32.mrb[0].mxu0
  %590 = vmatprep.mubr.f32.mxu0 0.0
  %591 = vmatmul.mubr.f32.gmra.mrb[0].mxu0 %v338
  %v592 = vpop.f32.mrb[0].mxu0
  %v593 = vadd.f32 0.0, %v592
  %v594 = vpop.f32.mrb[0].mxu0
  %595 = vmatprep.mubr.f32.mxu0 0.0
  %596 = vmatmul.mubr.f32.gmra.mrb[0].mxu0 %v339
  %v597 = vpop.f32.mrb[0].mxu0
  %v598 = vadd.f32 0.0, %v597
  %v599 = vpop.f32.mrb[0].mxu0
  %600 = vmatprep.mubr.f32.mxu0 0.0
  %601 = vmatmul.mubr.f32.gmra.mrb[0].mxu0 %v340
  %v602 = vpop.f32.mrb[0].mxu0
  %v603 = vadd.f32 0.0, %v602
  %v604 = vpop.f32.mrb[0].mxu0
  %605 = vmatprep.mubr.f32.mxu0 0.0
  %606 = vmatmul.mubr.f32.gmra.mrb[0].mxu0 %v341
  %v607 = vpop.f32.mrb[0].mxu0
  %v608 = vadd.f32 0.0, %v607
  %v609 = vpop.f32.mrb[0].mxu0
  %610 = vmatprep.mubr.f32.mxu0 0.0
  %611 = vmatmul.mubr.f32.gmra.mrb[0].mxu0 %v342
  %v612 = vpop.f32.mrb[0].mxu0
  %v613 = vadd.f32 0.0, %v612
  %v614 = vpop.f32.mrb[0].mxu0
  %615 = vmatprep.mubr.f32.mxu0 0.0
  %616 = vmatmul.mubr.f32.gmra.mrb[0].mxu0 %v343
  %v617 = vpop.f32.mrb[0].mxu0
  %v618 = vadd.f32 0.0, %v617
  %v619 = vpop.f32.mrb[0].mxu0
  %620 = vmatprep.mubr.f32.mxu0 0.0
  %621 = vmatmul.mubr.f32.gmra.mrb[0].mxu0 %v344
  %v622 = vpop.f32.mrb[0].mxu0
  %v623 = vadd.f32 0.0, %v622
  %v624 = vpop.f32.mrb[0].mxu0
  %625 = vmatprep.mubr.f32.mxu0 0.0
  %626 = vmatmul.mubr.f32.gmra.mrb[0].mxu0 %v345
  %v627 = vpop.f32.mrb[0].mxu0
  %v628 = vadd.f32 0.0, %v627
  %v629 = vpop.f32.mrb[0].mxu0
  %630 = vmatprep.mubr.f32.mxu0 0.0
  %631 = vmatmul.mubr.f32.gmra.mrb[0].mxu0 %v346
  %v632 = vpop.f32.mrb[0].mxu0
  %v633 = vadd.f32 0.0, %v632
  %v634 = vpop.f32.mrb[0].mxu0
  %635 = vmatprep.mubr.f32.mxu0 0.0
  %636 = vmatmul.mubr.f32.gmra.mrb[0].mxu0 %v347
  %v637 = vpop.f32.mrb[0].mxu0
  %v638 = vadd.f32 0.0, %v637
  %v639 = vpop.f32.mrb[0].mxu0
  %640 = vmatprep.mubr.f32.mxu0 0.0
  %641 = vmatmul.mubr.f32.gmra.mrb[0].mxu0 %v348
  %v642 = vpop.f32.mrb[0].mxu0
  %v643 = vadd.f32 0.0, %v642
  %v644 = vpop.f32.mrb[0].mxu0
  %645 = vmatprep.mubr.f32.mxu0 0.0
  %646 = vmatmul.mubr.f32.gmra.mrb[0].mxu0 %v349
  %v647 = vpop.f32.mrb[0].mxu0
  %v648 = vadd.f32 0.0, %v647
  %v649 = vpop.f32.mrb[0].mxu0
  %650 = vmatprep.mubr.f32.mxu0 0.0
  %651 = vmatmul.mubr.f32.gmra.mrb[0].mxu0 %v350
  %v652 = vpop.f32.mrb[0].mxu0
  %v653 = vadd.f32 0.0, %v652
  %v654 = vpop.f32.mrb[0].mxu0
  %655 = vmatprep.mubr.f32.mxu0 0.0
  %656 = vmatmul.mubr.f32.gmra.mrb[0].mxu0 %v351
  %v657 = vpop.f32.mrb[0].mxu0
  %v658 = vadd.f32 0.0, %v657
  %v659 = vpop.f32.mrb[0].mxu0
  %660 = vmatprep.mubr.f32.mxu0 0.0
  %661 = vmatmul.mubr.f32.gmra.mrb[0].mxu0 %v352
  %v662 = vpop.f32.mrb[0].mxu0
  %v663 = vadd.f32 0.0, %v662
  %v664 = vpop.f32.mrb[0].mxu0
  %665 = vmatprep.mubr.f32.mxu0 0.0
  %666 = vmatmul.mubr.f32.gmra.mrb[0].mxu0 %v353
  %v667 = vpop.f32.mrb[0].mxu0
  %v668 = vadd.f32 0.0, %v667
  %v669 = vpop.f32.mrb[0].mxu0
  %670 = vmatprep.mubr.f32.mxu0 0.0
  %671 = vmatmul.mubr.f32.gmra.mrb[0].mxu0 %v354
  %v672 = vpop.f32.mrb[0].mxu0
  %v673 = vadd.f32 0.0, %v672
  %v674 = vpop.f32.mrb[0].mxu0
  %675 = vmatprep.mubr.f32.mxu0 0.0
  %676 = vmatmul.mubr.f32.gmra.mrb[0].mxu0 %v355
  %v677 = vpop.f32.mrb[0].mxu0
  %v678 = vadd.f32 0.0, %v677
  %v679 = vpop.f32.mrb[0].mxu0
  %680 = vmatprep.mubr.f32.mxu0 0.0
  %681 = vmatmul.mubr.f32.gmra.mrb[0].mxu0 %v356
  %v682 = vpop.f32.mrb[0].mxu0
  %v683 = vadd.f32 0.0, %v682
  %v684 = vpop.f32.mrb[0].mxu0
  %685 = vmatprep.mubr.f32.mxu0 0.0
  %686 = vmatmul.mubr.f32.gmra.mrb[0].mxu0 %v357
  %v687 = vpop.f32.mrb[0].mxu0
  %v688 = vadd.f32 0.0, %v687
  %v689 = vpop.f32.mrb[0].mxu0
  %690 = vmatprep.mubr.f32.mxu0 0.0
  %691 = vmatmul.mubr.f32.gmra.mrb[0].mxu0 %v358
  %v692 = vpop.f32.mrb[0].mxu0
  %v693 = vadd.f32 0.0, %v692
  %v694 = vpop.f32.mrb[0].mxu0
  %695 = vmatprep.mubr.f32.mxu0 0.0
  %696 = vmatmul.mubr.f32.gmra.mrb[0].mxu0 %v359
  %v697 = vpop.f32.mrb[0].mxu0
  %v698 = vadd.f32 0.0, %v697
  %v699 = vpop.f32.mrb[0].mxu0
  %700 = vmatprep.mubr.f32.mxu0 0.0
  %701 = vmatmul.mubr.f32.gmra.mrb[0].mxu0 %v360
  %v702 = vpop.f32.mrb[0].mxu0
  %v703 = vadd.f32 0.0, %v702
  %v704 = vpop.f32.mrb[0].mxu0
  %705 = vmatprep.mubr.f32.mxu0 0.0
  %706 = vmatmul.mubr.f32.gmra.mrb[0].mxu0 %v361
  %v707 = vpop.f32.mrb[0].mxu0
  %v708 = vadd.f32 0.0, %v707
  %v709 = vpop.f32.mrb[0].mxu0
  %710 = vmatprep.mubr.f32.mxu0 0.0
  %711 = vmatmul.mubr.f32.gmra.mrb[0].mxu0 %v362
  %v712 = vpop.f32.mrb[0].mxu0
  %v713 = vadd.f32 0.0, %v712
  %v714 = vpop.f32.mrb[0].mxu0
  %715 = vmatprep.mubr.f32.mxu0 0.0
  %716 = vmatmul.mubr.f32.gmra.mrb[0].mxu0 %v363
  %v717 = vpop.f32.mrb[0].mxu0
  %v718 = vadd.f32 0.0, %v717
  %v719 = vpop.f32.mrb[0].mxu0
  %720 = vmatprep.mubr.f32.mxu0 0.0
  %721 = vmatmul.mubr.f32.gmra.mrb[0].mxu0 %v364
  %v722 = vpop.f32.mrb[0].mxu0
  %v723 = vadd.f32 0.0, %v722
  %v724 = vpop.f32.mrb[0].mxu0
  %725 = vmatprep.mubr.f32.mxu0 0.0
  %726 = vmatmul.mubr.f32.gmra.mrb[0].mxu0 %v365
  %v727 = vpop.f32.mrb[0].mxu0
  %v728 = vadd.f32 0.0, %v727
  %v729 = vpop.f32.mrb[0].mxu0
  %730 = vmatprep.mubr.f32.mxu0 0.0
  %731 = vmatmul.mubr.f32.gmra.mrb[0].mxu0 %v366
  %v732 = vpop.f32.mrb[0].mxu0
  %v733 = vadd.f32 0.0, %v732
  %v734 = vpop.f32.mrb[0].mxu0
  %735 = vmatprep.mubr.f32.mxu0 0.0
  %736 = vmatmul.mubr.f32.gmra.mrb[0].mxu0 %v367
  %v737 = vpop.f32.mrb[0].mxu0
  %v738 = vadd.f32 0.0, %v737
  %v739 = vpop.f32.mrb[0].mxu0
  %740 = vmatprep.mubr.f32.mxu0 0.0
  %741 = vmatmul.mubr.f32.gmra.mrb[0].mxu0 %v368
  %v742 = vpop.f32.mrb[0].mxu0
  %v743 = vadd.f32 0.0, %v742
  %v744 = vpop.f32.mrb[0].mxu0
  %745 = vmatprep.mubr.f32.mxu0 0.0
  %746 = vmatmul.mubr.f32.gmra.mrb[0].mxu0 %v369
  %v747 = vpop.f32.mrb[0].mxu0
  %v748 = vadd.f32 0.0, %v747
  %v749 = vpop.f32.mrb[0].mxu0
  %750 = vmatprep.mubr.f32.mxu0 0.0
  %751 = vmatmul.mubr.f32.gmra.mrb[0].mxu0 %v370
  %v752 = vpop.f32.mrb[0].mxu0
  %v753 = vadd.f32 0.0, %v752
  %v754 = vpop.f32.mrb[0].mxu0
  %755 = vdwg.mxu0
  %v756 = vadd.f32 %v243, %v438
  %v757 = vadd.f32 %v244, %v443
  %v758 = vadd.f32 %v245, %v448
  %v759 = vadd.f32 %v246, %v453
  %v760 = vadd.f32 %v247, %v458
  %v761 = vadd.f32 %v248, %v463
  %v762 = vadd.f32 %v249, %v468
  %v763 = vadd.f32 %v250, %v473
  %v764 = vadd.f32 %v251, %v478
  %v765 = vadd.f32 %v252, %v483
  %v766 = vadd.f32 %v253, %v488
  %v767 = vadd.f32 %v254, %v493
  %v768 = vadd.f32 %v255, %v498
  %v769 = vadd.f32 %v256, %v503
  %v770 = vadd.f32 %v257, %v508
  %v771 = vadd.f32 %v258, %v513
  %v772 = vadd.f32 %v259, %v518
  %v773 = vadd.f32 %v260, %v523
  %v774 = vadd.f32 %v261, %v528
  %v775 = vadd.f32 %v262, %v533
  %v776 = vadd.f32 %v263, %v538
  %v777 = vadd.f32 %v264, %v543
  %v778 = vadd.f32 %v265, %v548
  %v779 = vadd.f32 %v266, %v553
  %v780 = vadd.f32 %v267, %v558
  %v781 = vadd.f32 %v268, %v563
  %v782 = vadd.f32 %v269, %v568
  %v783 = vadd.f32 %v270, %v573
  %v784 = vadd.f32 %v271, %v578
  %v785 = vadd.f32 %v272, %v583
  %v786 = vadd.f32 %v273, %v588
  %v787 = vadd.f32 %v274, %v593
  %v788 = vadd.f32 %v275, %v598
  %v789 = vadd.f32 %v276, %v603
  %v790 = vadd.f32 %v277, %v608
  %v791 = vadd.f32 %v278, %v613
  %v792 = vadd.f32 %v279, %v618
  %v793 = vadd.f32 %v280, %v623
  %v794 = vadd.f32 %v281, %v628
  %v795 = vadd.f32 %v282, %v633
  %v796 = vadd.f32 %v283, %v638
  %v797 = vadd.f32 %v284, %v643
  %v798 = vadd.f32 %v285, %v648
  %v799 = vadd.f32 %v286, %v653
  %v800 = vadd.f32 %v287, %v658
  %v801 = vadd.f32 %v288, %v663
  %v802 = vadd.f32 %v289, %v668
  %v803 = vadd.f32 %v290, %v673
  %v804 = vadd.f32 %v291, %v678
  %v805 = vadd.f32 %v292, %v683
  %v806 = vadd.f32 %v293, %v688
  %v807 = vadd.f32 %v294, %v693
  %v808 = vadd.f32 %v295, %v698
  %v809 = vadd.f32 %v296, %v703
  %v810 = vadd.f32 %v297, %v708
  %v811 = vadd.f32 %v298, %v713
  %v812 = vadd.f32 %v299, %v718
  %v813 = vadd.f32 %v300, %v723
  %v814 = vadd.f32 %v301, %v728
  %v815 = vadd.f32 %v302, %v733
  %v816 = vadd.f32 %v303, %v738
  %v817 = vadd.f32 %v304, %v743
  %v818 = vadd.f32 %v305, %v748
  %v819 = vadd.f32 %v306, %v753
  %820 = vst [vmem:[%s2] sm:$0xff] %v756
  %821 = vst [vmem:[%s2 + $0x8] sm:$0xff] %v757
  %822 = vst [vmem:[%s2 + $0x10] sm:$0xff] %v758
  %823 = vst [vmem:[%s2 + $0x18] sm:$0xff] %v759
  %824 = vst [vmem:[%s2 + $0x20] sm:$0xff] %v760
  %825 = vst [vmem:[%s2 + $0x28] sm:$0xff] %v761
  %826 = vst [vmem:[%s2 + $0x30] sm:$0xff] %v762
  %827 = vst [vmem:[%s2 + $0x38] sm:$0xff] %v763
  %828 = vst [vmem:[%s2 + $0x40] sm:$0xff] %v764
  %829 = vst [vmem:[%s2 + $0x48] sm:$0xff] %v765
  %830 = vst [vmem:[%s2 + $0x50] sm:$0xff] %v766
  %831 = vst [vmem:[%s2 + $0x58] sm:$0xff] %v767
  %832 = vst [vmem:[%s2 + $0x60] sm:$0xff] %v768
  %833 = vst [vmem:[%s2 + $0x68] sm:$0xff] %v769
  %834 = vst [vmem:[%s2 + $0x70] sm:$0xff] %v770
  %835 = vst [vmem:[%s2 + $0x78] sm:$0xff] %v771
  %836 = vst [vmem:[%s2 + $0x80] sm:$0xff] %v772
  %837 = vst [vmem:[%s2 + $0x88] sm:$0xff] %v773
  %838 = vst [vmem:[%s2 + $0x90] sm:$0xff] %v774
  %839 = vst [vmem:[%s2 + $0x98] sm:$0xff] %v775
  %840 = vst [vmem:[%s2 + $0xa0] sm:$0xff] %v776
  %841 = vst [vmem:[%s2 + $0xa8] sm:$0xff] %v777
  %842 = vst [vmem:[%s2 + $0xb0] sm:$0xff] %v778
  %843 = vst [vmem:[%s2 + $0xb8] sm:$0xff] %v779
  %844 = vst [vmem:[%s2 + $0xc0] sm:$0xff] %v780
  %845 = vst [vmem:[%s2 + $0xc8] sm:$0xff] %v781
  %846 = vst [vmem:[%s2 + $0xd0] sm:$0xff] %v782
  %847 = vst [vmem:[%s2 + $0xd8] sm:$0xff] %v783
  %848 = vst [vmem:[%s2 + $0xe0] sm:$0xff] %v784
  %849 = vst [vmem:[%s2 + $0xe8] sm:$0xff] %v785
  %850 = vst [vmem:[%s2 + $0xf0] sm:$0xff] %v786
  %851 = vst [vmem:[%s2 + $0xf8] sm:$0xff] %v787
  %852 = vst [vmem:[%s2 + $0x100] sm:$0xff] %v788
  %853 = vst [vmem:[%s2 + $0x108] sm:$0xff] %v789
  %854 = vst [vmem:[%s2 + $0x110] sm:$0xff] %v790
  %855 = vst [vmem:[%s2 + $0x118] sm:$0xff] %v791
  %856 = vst [vmem:[%s2 + $0x120] sm:$0xff] %v792
  %857 = vst [vmem:[%s2 + $0x128] sm:$0xff] %v793
  %858 = vst [vmem:[%s2 + $0x130] sm:$0xff] %v794
  %859 = vst [vmem:[%s2 + $0x138] sm:$0xff] %v795
  %860 = vst [vmem:[%s2 + $0x140] sm:$0xff] %v796
  %861 = vst [vmem:[%s2 + $0x148] sm:$0xff] %v797
  %862 = vst [vmem:[%s2 + $0x150] sm:$0xff] %v798
  %863 = vst [vmem:[%s2 + $0x158] sm:$0xff] %v799
  %864 = vst [vmem:[%s2 + $0x160] sm:$0xff] %v800
  %865 = vst [vmem:[%s2 + $0x168] sm:$0xff] %v801
  %866 = vst [vmem:[%s2 + $0x170] sm:$0xff] %v802
  %867 = vst [vmem:[%s2 + $0x178] sm:$0xff] %v803
  %868 = vst [vmem:[%s2 + $0x180] sm:$0xff] %v804
  %869 = vst [vmem:[%s2 + $0x188] sm:$0xff] %v805
  %870 = vst [vmem:[%s2 + $0x190] sm:$0xff] %v806
  %871 = vst [vmem:[%s2 + $0x198] sm:$0xff] %v807
  %872 = vst [vmem:[%s2 + $0x1a0] sm:$0xff] %v808
  %873 = vst [vmem:[%s2 + $0x1a8] sm:$0xff] %v809
  %874 = vst [vmem:[%s2 + $0x1b0] sm:$0xff] %v810
  %875 = vst [vmem:[%s2 + $0x1b8] sm:$0xff] %v811
  %876 = vst [vmem:[%s2 + $0x1c0] sm:$0xff] %v812
  %877 = vst [vmem:[%s2 + $0x1c8] sm:$0xff] %v813
  %878 = vst [vmem:[%s2 + $0x1d0] sm:$0xff] %v814
  %879 = vst [vmem:[%s2 + $0x1d8] sm:$0xff] %v815
  %880 = vst [vmem:[%s2 + $0x1e0] sm:$0xff] %v816
  %881 = vst [vmem:[%s2 + $0x1e8] sm:$0xff] %v817
  %882 = vst [vmem:[%s2 + $0x1f0] sm:$0xff] %v818
  %883 = vst [vmem:[%s2 + $0x1f8] sm:$0xff] %v819
  %v884 = vld [vmem:[%s3] sm:$0xf]
  %885 = vmatprep.subr.mxu0 0.0
  %886 = vmatpush1.xpose.msra.mxu0 %v82
  %887 = vmatprep.subr.mxu0 0.0
  %888 = vmatpush1.xpose.msra.mxu0 %v83
  %889 = vmatprep.subr.mxu0 0.0
  %890 = vmatpush1.xpose.msra.mxu0 %v84
  %891 = vmatprep.subr.mxu0 0.0
  %892 = vmatpush1.xpose.msra.mxu0 %v85
  %893 = vmatprep.subr.mxu0 0.0
  %894 = vmatpush1.xpose.msra.mxu0 %v86
  %895 = vmatprep.subr.mxu0 0.0
  %896 = vmatpush1.xpose.msra.mxu0 %v87
  %897 = vmatprep.subr.mxu0 0.0
  %898 = vmatpush1.xpose.msra.mxu0 %v88
  %899 = vmatprep.subr.mxu0 0.0
  %900 = vmatpush1.xpose.msra.mxu0 %v89
  %901 = vmatprep.subr.mxu0 0.0
  %902 = vmatpush1.xpose.msra.mxu0 %v90
  %903 = vmatprep.subr.mxu0 0.0
  %904 = vmatpush1.xpose.msra.mxu0 %v91
  %905 = vmatprep.subr.mxu0 0.0
  %906 = vmatpush1.xpose.msra.mxu0 %v92
  %907 = vmatprep.subr.mxu0 0.0
  %908 = vmatpush1.xpose.msra.mxu0 %v93
  %909 = vmatprep.subr.mxu0 0.0
  %910 = vmatpush1.xpose.msra.mxu0 %v94
  %911 = vmatprep.subr.mxu0 0.0
  %912 = vmatpush1.xpose.msra.mxu0 %v95
  %913 = vmatprep.subr.mxu0 0.0
  %914 = vmatpush1.xpose.msra.mxu0 %v96
  %915 = vmatprep.subr.mxu0 0.0
  %916 = vmatpush1.xpose.msra.mxu0 %v97
  %917 = vmatprep.subr.mxu0 0.0
  %918 = vmatpush1.xpose.msra.mxu0 0.0
  %919 = vmatprep.subr.mxu0 0.0
  %920 = vmatpush1.xpose.msra.mxu0 0.0
  %921 = vmatprep.subr.mxu0 0.0
  %922 = vmatpush1.xpose.msra.mxu0 0.0
  %923 = vmatprep.subr.mxu0 0.0
  %924 = vmatpush1.xpose.msra.mxu0 0.0
  %925 = vmatprep.subr.mxu0 0.0
  %926 = vmatpush1.xpose.msra.mxu0 0.0
  %927 = vmatprep.subr.mxu0 0.0
  %928 = vmatpush1.xpose.msra.mxu0 0.0
  %929 = vmatprep.subr.mxu0 0.0
  %930 = vmatpush1.xpose.msra.mxu0 0.0
  %931 = vmatprep.subr.mxu0 0.0
  %932 = vmatpush1.xpose.msra.mxu0 0.0
  %933 = vmatprep.subr.mxu0 0.0
  %934 = vmatpush1.xpose.msra.mxu0 0.0
  %935 = vmatprep.subr.mxu0 0.0
  %936 = vmatpush1.xpose.msra.mxu0 0.0
  %937 = vmatprep.subr.mxu0 0.0
  %938 = vmatpush1.xpose.msra.mxu0 0.0
  %939 = vmatprep.subr.mxu0 0.0
  %940 = vmatpush1.xpose.msra.mxu0 0.0
  %941 = vmatprep.subr.mxu0 0.0
  %942 = vmatpush1.xpose.msra.mxu0 0.0
  %943 = vmatprep.subr.mxu0 0.0
  %944 = vmatpush1.xpose.msra.mxu0 0.0
  %945 = vmatprep.subr.mxu0 0.0
  %946 = vmatpush1.xpose.msra.mxu0 0.0
  %947 = vmatprep.subr.mxu0 0.0
  %948 = vmatpush1.xpose.msra.mxu0 0.0
  %949 = vmatprep.mubr.f32.mxu0 0.0
  %950 = vmatmul.mubr.f32.gmra.mrb[0].mxu0 %v98
  %v951 = vpop.f32.mrb[0].mxu0
  %v952 = vadd.f32 0.0, %v951
  %v953 = vpop.f32.mrb[0].mxu0
  %954 = vdwg.mxu0
  %v955 = vadd.f32 %v884, %v952
  %956 = vst [vmem:[%s3] sm:$0xf] %v955
  // Predicated region
  $region14: #{coding_rate_forward.1} parent=0 // pred_check
    _
  $region15: #{coding_rate_forward.1} parent=0 // pred_check_branch
    %958 = sbr.rel (0) target = $region17
  $region16: #{coding_rate_forward.1} parent=0 // pred_region
    _
  $region17: #{coding_rate_forward.1} parent=0 // pred_fallthru
    _
  // Predicated region
  $region18: #{coding_rate_forward.1} parent=0 // pred_check
    _
  $region19: #{coding_rate_forward.1} parent=0 // pred_check_branch
    %960 = sbr.rel (0) target = $region21
  $region20: #{coding_rate_forward.1} parent=0 // pred_region
    _
  $region21: #{coding_rate_forward.1} parent=0 // pred_fallthru
    _
  // Predicated region
  $region22: #{coding_rate_forward.1} parent=0 // pred_check
    _
  $region23: #{coding_rate_forward.1} parent=0 // pred_check_branch
    %962 = sbr.rel (0) target = $region25
  $region24: #{coding_rate_forward.1} parent=0 // pred_region
    _
  $region25: #{coding_rate_forward.1} parent=0 // pred_fallthru
    _
  // Predicated region
  $region26: #{coding_rate_forward.1} parent=0 // pred_check
    _
  $region27: #{coding_rate_forward.1} parent=0 // pred_check_branch
    %964 = sbr.rel (0) target = $region29
  $region28: #{coding_rate_forward.1} parent=0 // pred_region
    _
  $region29: #{coding_rate_forward.1} parent=0 // pred_fallthru
    _

</llo_original>
